<compile_context>
chip_gen: v6e
topology: v6e:2x2x1
jax: 0.10.0
libtpu: 0.0.40
codegen_flags: <defaults>
</compile_context>

<pallas_src>
import functools

import jax
import jax.numpy as jnp
from jax import lax
from jax.experimental import pallas as pl
from jax.experimental.pallas import tpu as pltpu

LEAKY_SLOPE = 0.2
BN_EPS = 1e-5
KSIZE = 4
STRIDE = 2


# ---------------------------------------------------------------------------
# JAX-side prep (pure data movement / layout; no heavy compute)
# ---------------------------------------------------------------------------
def build_taps(x_cnhw, pad):
    """(C, N, H, W) -> (16*C, N*OH*OW) bf16 merged-K conv taps.

    Tap row t*C + c with t = kh*4 + kw holds x_pad[c, n, 2*oh+kh, 2*ow+kw] at
    lane n*OH*OW + oh*OW + ow -- i.e. 16 offset-free stride-2 phase views
    stacked along the contraction dim so the whole conv is one MXU matmul.
    """
    c, n, h, w = x_cnhw.shape
    xp = jnp.pad(x_cnhw, ((0, 0), (0, 0), (pad, pad), (pad, pad))) if pad else x_cnhw
    hp, wp = h + 2 * pad, w + 2 * pad
    oh = (hp - KSIZE) // STRIDE + 1
    ow = (wp - KSIZE) // STRIDE + 1
    views = []
    for kh in range(KSIZE):
        for kw in range(KSIZE):
            views.append(xp[:, :, kh::STRIDE, kw::STRIDE][:, :, :oh, :ow])
    taps = jnp.stack(views, axis=0)                       # (16, C, N, OH, OW)
    taps = taps.reshape(KSIZE * KSIZE * c, n * oh * ow)
    return taps.astype(jnp.bfloat16), oh, ow


def conv_weight_matrix(w_oihw):
    """PyTorch (Cout, Cin, 4, 4) -> (Cout, 16*Cin) bf16 matching build_taps."""
    cout, cin = w_oihw.shape[0], w_oihw.shape[1]
    wm = jnp.transpose(w_oihw, (0, 2, 3, 1)).reshape(cout, KSIZE * KSIZE * cin)
    return wm.astype(jnp.bfloat16)


def _pick_lane_block(nb, m):
    """Lane-chunk size (multiple of the per-image extent m) for conv0/conv4."""
    nbm = nb * m
    if m % 128 != 0 or nb < 2:
        return nbm                               # full-extent block (always legal)
    imgs = max(1, min(nb // 2, -(-512 // m)))    # aim >=512 lanes, keep >=2 steps
    while nb % imgs:
        imgs -= 1
    return imgs * m


def _pick_cout_block(cout):
    """Cout chunk: sublane aligned, divides cout, >=2 parallel grid steps."""
    for blk in (256, 128, 64, 32, 16, 8):
        if blk <= cout // 2 and cout % blk == 0:
            return blk
    return cout


def _vmem_limit(block_bytes):
    """Explicit scoped-VMEM budget: double-buffered blocks + margin."""
    return int(min(max(2 * block_bytes + (16 << 20), 32 << 20), 64 << 20))


# ---------------------------------------------------------------------------
# Pallas kernels
# ---------------------------------------------------------------------------
def _conv_bias_act_kernel(t_ref, w_ref, b_ref, o_ref, *, act):
    """conv (single merged-K MXU matmul) + bias + activation."""
    y = jnp.dot(w_ref[...], t_ref[...], preferred_element_type=jnp.float32)
    y = y + b_ref[...]
    if act == "leaky":
        y = jnp.where(y > 0, y, LEAKY_SLOPE * y)
    else:  # sigmoid
        y = 1.0 / (1.0 + jnp.exp(-y))
    o_ref[...] = y.astype(o_ref.dtype)


def _conv_bn_lrelu_kernel(t_ref, w_ref, g_ref, b_ref, o_ref, *, count):
    """conv + BatchNorm(batch stats, mean-subtracted var) + LeakyReLU.

    Grid is over Cout chunks; the lane extent of every block is the FULL
    batch*spatial axis, so the per-channel statistics computed here are the
    complete batch statistics for this channel chunk.
    """
    y = jnp.dot(w_ref[...], t_ref[...], preferred_element_type=jnp.float32)
    inv = 1.0 / count
    mean = jnp.sum(y, axis=1, keepdims=True) * inv
    d = y - mean
    var = jnp.sum(d * d, axis=1, keepdims=True) * inv        # stable (no E[x^2]-E[x]^2)
    scale = g_ref[...] * lax.rsqrt(var + BN_EPS)
    z = d * scale + b_ref[...]
    o_ref[...] = jnp.where(z > 0, z, LEAKY_SLOPE * z).astype(o_ref.dtype)


# ---------------------------------------------------------------------------
# Pallas wrappers
# ---------------------------------------------------------------------------
def conv_bias_act(taps, w_mat, bias, *, act, out_dtype, lane_block):
    k, nbm = taps.shape
    cout = w_mat.shape[0]
    grid = nbm // lane_block
    out_isz = jnp.dtype(out_dtype).itemsize
    block_bytes = (k * lane_block * 2 + cout * k * 2 + cout * 4
                   + cout * lane_block * out_isz)
    cost = pl.CostEstimate(
        flops=2 * cout * k * nbm,
        transcendentals=cout * nbm if act == "sigmoid" else 0,
        bytes_accessed=int(taps.size * 2 + w_mat.size * 2 + cout * 4
                           + cout * nbm * out_isz))
    return pl.pallas_call(
        functools.partial(_conv_bias_act_kernel, act=act),
        out_shape=jax.ShapeDtypeStruct((cout, nbm), out_dtype),
        grid=(grid,),
        in_specs=[
            pl.BlockSpec((k, lane_block), lambda i: (0, i)),
            pl.BlockSpec((cout, k), lambda i: (0, 0)),
            pl.BlockSpec((cout, 1), lambda i: (0, 0)),
        ],
        out_specs=pl.BlockSpec((cout, lane_block), lambda i: (0, i)),
        compiler_params=pltpu.CompilerParams(
            dimension_semantics=("parallel",),
            vmem_limit_bytes=_vmem_limit(block_bytes)),
        cost_estimate=cost,
    )(taps, w_mat, bias)


def conv_bn_lrelu(taps, w_mat, gamma, beta, *, out_dtype):
    k, nbm = taps.shape
    cout = w_mat.shape[0]
    cblk = _pick_cout_block(cout)
    grid = cout // cblk
    out_isz = jnp.dtype(out_dtype).itemsize
    block_bytes = (k * nbm * 2 + cblk * k * 2 + 2 * cblk * 4 + cblk * nbm * out_isz)
    cost = pl.CostEstimate(
        flops=2 * cout * k * nbm + 8 * cout * nbm,
        transcendentals=cout,
        bytes_accessed=int(taps.size * 2 + w_mat.size * 2 + 2 * cout * 4
                           + cout * nbm * out_isz))
    return pl.pallas_call(
        functools.partial(_conv_bn_lrelu_kernel, count=float(nbm)),
        out_shape=jax.ShapeDtypeStruct((cout, nbm), out_dtype),
        grid=(grid,),
        in_specs=[
            pl.BlockSpec((k, nbm), lambda j: (0, 0)),      # taps: resident across steps
            pl.BlockSpec((cblk, k), lambda j: (j, 0)),
            pl.BlockSpec((cblk, 1), lambda j: (j, 0)),
            pl.BlockSpec((cblk, 1), lambda j: (j, 0)),
        ],
        out_specs=pl.BlockSpec((cblk, nbm), lambda j: (j, 0)),
        compiler_params=pltpu.CompilerParams(
            dimension_semantics=("parallel",),
            vmem_limit_bytes=_vmem_limit(block_bytes)),
        cost_estimate=cost,
    )(taps, w_mat, gamma, beta)


# ---------------------------------------------------------------------------
# Discriminator forward (input/output in NCHW, like the PyTorch module)
# ---------------------------------------------------------------------------
def discriminator_forward(x_nchw, params):
    nb = x_nchw.shape[0]
    # channel-major, batch folded next to spatial (lane axis of every kernel)
    x = jnp.transpose(x_nchw.astype(jnp.float32), (1, 0, 2, 3))   # (C, N, H, W)

    # Conv2d(channels_img, fd, 4, 2, 1, bias=True) + LeakyReLU(0.2)
    w, b = params["conv0"]
    taps, oh, ow = build_taps(x, pad=1)
    y = conv_bias_act(taps, conv_weight_matrix(w),
                      b.reshape(-1, 1).astype(jnp.float32),
                      act="leaky", out_dtype=jnp.bfloat16,
                      lane_block=_pick_lane_block(nb, oh * ow))
    x = y.reshape(w.shape[0], nb, oh, ow)

    # Three _block()s: Conv(no bias) + BatchNorm2d(batch stats) + LeakyReLU(0.2)
    for name in ("block1", "block2", "block3"):
        w, gamma, beta = params[name]
        taps, oh, ow = build_taps(x, pad=1)
        y = conv_bn_lrelu(taps, conv_weight_matrix(w),
                          gamma.reshape(-1, 1).astype(jnp.float32),
                          beta.reshape(-1, 1).astype(jnp.float32),
                          out_dtype=jnp.bfloat16)
        x = y.reshape(w.shape[0], nb, oh, ow)

    # Conv2d(fd*8, 1, 4, 2, 0, bias=True) + Sigmoid
    w, b = params["conv4"]
    taps, oh, ow = build_taps(x, pad=0)
    y = conv_bias_act(taps, conv_weight_matrix(w),
                      b.reshape(-1, 1).astype(jnp.float32),
                      act="sigmoid", out_dtype=jnp.float32,
                      lane_block=nb * oh * ow)
    return jnp.transpose(y.reshape(1, nb, oh, ow), (1, 0, 2, 3))  # (N, 1, OH, OW)


# ---------------------------------------------------------------------------
# Pure-JAX reference (f32 end-to-end) for a tolerance check
# ---------------------------------------------------------------------------
def _conv_ref(x, w, b, pad):
    y = lax.conv_general_dilated(x, w, window_strides=(STRIDE, STRIDE),
                                 padding=((pad, pad), (pad, pad)),
                                 dimension_numbers=("NCHW", "OIHW", "NCHW"))
    if b is not None:
        y = y + b.reshape(1, -1, 1, 1)
    return y


def _leaky(x):
    return jnp.where(x > 0, x, LEAKY_SLOPE * x)


def discriminator_reference(x, params):
    w, b = params["conv0"]
    y = _leaky(_conv_ref(x, w, b, 1))
    for name in ("block1", "block2", "block3"):
        w, gamma, beta = params[name]
        y = _conv_ref(y, w, None, 1)
        mean = jnp.mean(y, axis=(0, 2, 3), keepdims=True)
        var = jnp.mean((y - mean) ** 2, axis=(0, 2, 3), keepdims=True)
        y = (y - mean) * lax.rsqrt(var + BN_EPS)
        y = _leaky(y * gamma.reshape(1, -1, 1, 1) + beta.reshape(1, -1, 1, 1))
    w, b = params["conv4"]
    return jax.nn.sigmoid(_conv_ref(y, w, b, 0))


# ---------------------------------------------------------------------------
# Deterministic parameter init (synthetic; matches the nn.Module's shapes)
# ---------------------------------------------------------------------------
def init_params(key, channels_img, features_d):
    fd = features_d
    ks = jax.random.split(key, 12)
    f32 = jnp.float32

    def nrm(k, shape, s=0.05):
        return s * jax.random.normal(k, shape, f32)

    return {
        "conv0": (nrm(ks[0], (fd, channels_img, 4, 4)), nrm(ks[1], (fd,))),
        "block1": (nrm(ks[2], (2 * fd, fd, 4, 4)),
                   1.0 + nrm(ks[3], (2 * fd,), 0.1), nrm(ks[4], (2 * fd,), 0.1)),
        "block2": (nrm(ks[5], (4 * fd, 2 * fd, 4, 4)),
                   1.0 + nrm(ks[6], (4 * fd,), 0.1), nrm(ks[7], (4 * fd,), 0.1)),
        "block3": (nrm(ks[8], (8 * fd, 4 * fd, 4, 4)),
                   1.0 + nrm(ks[9], (8 * fd,), 0.1), nrm(ks[10], (8 * fd,), 0.1)),
        "conv4": (nrm(ks[11], (1, 8 * fd, 4, 4)), jnp.zeros((1,), f32)),
    }


if __name__ == "__main__":
    key = jax.random.PRNGKey(0)
    k_x, k_p = jax.random.split(key)

    # 64x64 input is what the module implies (4 stride-2 convs -> 4x4 -> valid 4x4 conv -> 1x1).
    batch, channels_img, features_d, img_size = 2, 3, 8, 64
    x = jax.random.normal(k_x, (batch, channels_img, img_size, img_size), jnp.float32)
    params = init_params(k_p, channels_img, features_d)

    fwd = jax.jit(discriminator_forward)
    out = jax.block_until_ready(fwd(x, params))

    assert out.shape == (batch, 1, 1, 1), out.shape
    assert bool(jnp.all((out >= 0.0) & (out <= 1.0)))

    ref = discriminator_reference(x, params)
    err = float(jnp.max(jnp.abs(out - ref)))
    assert err < 0.075, f"max |kernel - reference| = {err}"   # bf16 activations vs f32 ref
    print("KERNEL_OK")
</pallas_src>

<mosaic_0001>
module attributes {stable_mosaic.version = 11 : i64} {
  func.func @_conv_bias_act_kernel(%arg0: i32, %arg1: memref<48x1024xbf16, #tpu.memory_space<vmem>>, %arg2: memref<8x48xbf16, #tpu.memory_space<vmem>>, %arg3: memref<8x1xf32, #tpu.memory_space<vmem>>, %arg4: memref<8x1024xbf16, #tpu.memory_space<vmem>>) attributes {dimension_semantics = [#tpu.dimension_semantics<parallel>], iteration_bounds = array<i64: 2>, scalar_prefetch = 0 : i64, scratch_operands = 0 : i64, tpu.core_type = #tpu.core_type<tc>, window_params = [{transform_indices = @transform_0, window_bounds = array<i64: 48, 1024>}, {pipeline_mode = #tpu.pipeline_mode<synchronous>, transform_indices = @transform_1, window_bounds = array<i64: 8, 48>}, {pipeline_mode = #tpu.pipeline_mode<synchronous>, transform_indices = @transform_2, window_bounds = array<i64: 8, 1>}, {transform_indices = @transform_3, window_bounds = array<i64: 8, 1024>}]} {
    %c0 = arith.constant 0 : index
    %c0_0 = arith.constant 0 : index
    %0 = vector.load %arg2[%c0, %c0_0] : memref<8x48xbf16, #tpu.memory_space<vmem>>, vector<8x48xbf16>
    %c0_1 = arith.constant 0 : index
    %c0_2 = arith.constant 0 : index
    %1 = vector.load %arg1[%c0_1, %c0_2] : memref<48x1024xbf16, #tpu.memory_space<vmem>>, vector<48x1024xbf16>
    %cst = arith.constant dense<0.000000e+00> : vector<8x1024xf32>
    %2 = tpu.matmul %0, %1, %cst {dimension_numbers = #tpu.dot_dimension_numbers<[1], [0], [0], [1], [0, 0, 1, 1], [], []>} : vector<8x48xbf16>, vector<48x1024xbf16>, vector<8x1024xf32> -> vector<8x1024xf32>
    %c0_3 = arith.constant 0 : index
    %c0_4 = arith.constant 0 : index
    %3 = vector.load %arg3[%c0_3, %c0_4] : memref<8x1xf32, #tpu.memory_space<vmem>>, vector<8x1xf32>
    %4 = vector.broadcast %3 : vector<8x1xf32> to vector<8x1024xf32>
    %5 = arith.addf %2, %4 : vector<8x1024xf32>
    %cst_5 = arith.constant 0.000000e+00 : f32
    %6 = vector.broadcast %cst_5 : f32 to vector<8x1024xf32>
    %7 = arith.cmpf ogt, %5, %6 : vector<8x1024xf32>
    %cst_6 = arith.constant 2.000000e-01 : f32
    %8 = vector.broadcast %cst_6 : f32 to vector<8x1024xf32>
    %9 = arith.mulf %8, %5 : vector<8x1024xf32>
    %10 = arith.select %7, %5, %9 : vector<8x1024xi1>, vector<8x1024xf32>
    %11 = arith.truncf %10 : vector<8x1024xf32> to vector<8x1024xbf16>
    %c0_7 = arith.constant 0 : index
    %c0_8 = arith.constant 0 : index
    %12 = vector.load %arg4[%c0_7, %c0_8] : memref<8x1024xbf16, #tpu.memory_space<vmem>>, vector<8x1024xbf16>
    tpu.vector_store %arg4[%c0_7, %c0_8], %11 {strides = array<i32>} : memref<8x1024xbf16, #tpu.memory_space<vmem>>, vector<8x1024xbf16>,
    return
  }
  func.func @transform_0(%arg0: i32) -> (i32, i32) {
    %c0_i32 = arith.constant 0 : i32
    %c0_i32_0 = arith.constant 0 : i32
    return %c0_i32, %arg0 : i32, i32
  }
  func.func @transform_1(%arg0: i32) -> (i32, i32) {
    %c0_i32 = arith.constant 0 : i32
    %c0_i32_0 = arith.constant 0 : i32
    %c0_i32_1 = arith.constant 0 : i32
    return %c0_i32, %c0_i32_0 : i32, i32
  }
  func.func @transform_2(%arg0: i32) -> (i32, i32) {
    %c0_i32 = arith.constant 0 : i32
    %c0_i32_0 = arith.constant 0 : i32
    %c0_i32_1 = arith.constant 0 : i32
    return %c0_i32, %c0_i32_0 : i32, i32
  }
  func.func @transform_3(%arg0: i32) -> (i32, i32) {
    %c0_i32 = arith.constant 0 : i32
    %c0_i32_0 = arith.constant 0 : i32
    return %c0_i32, %arg0 : i32, i32
  }
}

module attributes {stable_mosaic.version = 11 : i64} {
  func.func @_conv_bn_lrelu_kernel(%arg0: i32, %arg1: memref<128x512xbf16, #tpu.memory_space<vmem>>, %arg2: memref<8x128xbf16, #tpu.memory_space<vmem>>, %arg3: memref<8x1xf32, #tpu.memory_space<vmem>>, %arg4: memref<8x1xf32, #tpu.memory_space<vmem>>, %arg5: memref<8x512xbf16, #tpu.memory_space<vmem>>) attributes {dimension_semantics = [#tpu.dimension_semantics<parallel>], iteration_bounds = array<i64: 2>, scalar_prefetch = 0 : i64, scratch_operands = 0 : i64, tpu.core_type = #tpu.core_type<tc>, window_params = [{pipeline_mode = #tpu.pipeline_mode<synchronous>, transform_indices = @transform_0, window_bounds = array<i64: 128, 512>}, {transform_indices = @transform_1, window_bounds = array<i64: 8, 128>}, {transform_indices = @transform_2, window_bounds = array<i64: 8, 1>}, {transform_indices = @transform_3, window_bounds = array<i64: 8, 1>}, {transform_indices = @transform_4, window_bounds = array<i64: 8, 512>}]} {
    %c0 = arith.constant 0 : index
    %c0_0 = arith.constant 0 : index
    %0 = vector.load %arg2[%c0, %c0_0] : memref<8x128xbf16, #tpu.memory_space<vmem>>, vector<8x128xbf16>
    %c0_1 = arith.constant 0 : index
    %c0_2 = arith.constant 0 : index
    %1 = vector.load %arg1[%c0_1, %c0_2] : memref<128x512xbf16, #tpu.memory_space<vmem>>, vector<128x512xbf16>
    %cst = arith.constant dense<0.000000e+00> : vector<8x512xf32>
    %2 = tpu.matmul %0, %1, %cst {dimension_numbers = #tpu.dot_dimension_numbers<[1], [0], [0], [1], [0, 0, 1, 1], [], []>} : vector<8x128xbf16>, vector<128x512xbf16>, vector<8x512xf32> -> vector<8x512xf32>
    %cst_3 = arith.constant dense<0.000000e+00> : vector<8xf32>
    %3 = vector.multi_reduction <add>, %2, %cst_3 [1] : vector<8x512xf32> to vector<8xf32>
    %4 = vector.shape_cast %3 : vector<8xf32> to vector<8x1xf32>
    %cst_4 = arith.constant 0.001953125 : f32
    %5 = vector.broadcast %cst_4 : f32 to vector<8x1xf32>
    %6 = arith.mulf %4, %5 : vector<8x1xf32>
    %7 = vector.broadcast %6 : vector<8x1xf32> to vector<8x512xf32>
    %8 = arith.subf %2, %7 : vector<8x512xf32>
    %9 = arith.mulf %8, %8 : vector<8x512xf32>
    %cst_5 = arith.constant dense<0.000000e+00> : vector<8xf32>
    %10 = vector.multi_reduction <add>, %9, %cst_5 [1] : vector<8x512xf32> to vector<8xf32>
    %11 = vector.shape_cast %10 : vector<8xf32> to vector<8x1xf32>
    %cst_6 = arith.constant 0.001953125 : f32
    %12 = vector.broadcast %cst_6 : f32 to vector<8x1xf32>
    %13 = arith.mulf %11, %12 : vector<8x1xf32>
    %c0_7 = arith.constant 0 : index
    %c0_8 = arith.constant 0 : index
    %14 = vector.load %arg3[%c0_7, %c0_8] : memref<8x1xf32, #tpu.memory_space<vmem>>, vector<8x1xf32>
    %cst_9 = arith.constant 9.99999974E-6 : f32
    %15 = vector.broadcast %cst_9 : f32 to vector<8x1xf32>
    %16 = arith.addf %13, %15 : vector<8x1xf32>
    %17 = math.rsqrt %16 : vector<8x1xf32>
    %18 = arith.mulf %14, %17 : vector<8x1xf32>
    %19 = vector.broadcast %18 : vector<8x1xf32> to vector<8x512xf32>
    %20 = arith.mulf %8, %19 : vector<8x512xf32>
    %c0_10 = arith.constant 0 : index
    %c0_11 = arith.constant 0 : index
    %21 = vector.load %arg4[%c0_10, %c0_11] : memref<8x1xf32, #tpu.memory_space<vmem>>, vector<8x1xf32>
    %22 = vector.broadcast %21 : vector<8x1xf32> to vector<8x512xf32>
    %23 = arith.addf %20, %22 : vector<8x512xf32>
    %cst_12 = arith.constant 0.000000e+00 : f32
    %24 = vector.broadcast %cst_12 : f32 to vector<8x512xf32>
    %25 = arith.cmpf ogt, %23, %24 : vector<8x512xf32>
    %cst_13 = arith.constant 2.000000e-01 : f32
    %26 = vector.broadcast %cst_13 : f32 to vector<8x512xf32>
    %27 = arith.mulf %26, %23 : vector<8x512xf32>
    %28 = arith.select %25, %23, %27 : vector<8x512xi1>, vector<8x512xf32>
    %29 = arith.truncf %28 : vector<8x512xf32> to vector<8x512xbf16>
    %c0_14 = arith.constant 0 : index
    %c0_15 = arith.constant 0 : index
    %30 = vector.load %arg5[%c0_14, %c0_15] : memref<8x512xbf16, #tpu.memory_space<vmem>>, vector<8x512xbf16>
    tpu.vector_store %arg5[%c0_14, %c0_15], %29 {strides = array<i32>} : memref<8x512xbf16, #tpu.memory_space<vmem>>, vector<8x512xbf16>,
    return
  }
  func.func @transform_0(%arg0: i32) -> (i32, i32) {
    %c0_i32 = arith.constant 0 : i32
    %c0_i32_0 = arith.constant 0 : i32
    %c0_i32_1 = arith.constant 0 : i32
    return %c0_i32, %c0_i32_0 : i32, i32
  }
  func.func @transform_1(%arg0: i32) -> (i32, i32) {
    %c0_i32 = arith.constant 0 : i32
    %c0_i32_0 = arith.constant 0 : i32
    return %arg0, %c0_i32 : i32, i32
  }
  func.func @transform_2(%arg0: i32) -> (i32, i32) {
    %c0_i32 = arith.constant 0 : i32
    %c0_i32_0 = arith.constant 0 : i32
    return %arg0, %c0_i32 : i32, i32
  }
  func.func @transform_3(%arg0: i32) -> (i32, i32) {
    %c0_i32 = arith.constant 0 : i32
    %c0_i32_0 = arith.constant 0 : i32
    return %arg0, %c0_i32 : i32, i32
  }
  func.func @transform_4(%arg0: i32) -> (i32, i32) {
    %c0_i32 = arith.constant 0 : i32
    %c0_i32_0 = arith.constant 0 : i32
    return %arg0, %c0_i32 : i32, i32
  }
}

module attributes {stable_mosaic.version = 11 : i64} {
  func.func @_conv_bn_lrelu_kernel(%arg0: i32, %arg1: memref<256x128xbf16, #tpu.memory_space<vmem>>, %arg2: memref<16x256xbf16, #tpu.memory_space<vmem>>, %arg3: memref<16x1xf32, #tpu.memory_space<vmem>>, %arg4: memref<16x1xf32, #tpu.memory_space<vmem>>, %arg5: memref<16x128xbf16, #tpu.memory_space<vmem>>) attributes {dimension_semantics = [#tpu.dimension_semantics<parallel>], iteration_bounds = array<i64: 2>, scalar_prefetch = 0 : i64, scratch_operands = 0 : i64, tpu.core_type = #tpu.core_type<tc>, window_params = [{pipeline_mode = #tpu.pipeline_mode<synchronous>, transform_indices = @transform_0, window_bounds = array<i64: 256, 128>}, {transform_indices = @transform_1, window_bounds = array<i64: 16, 256>}, {transform_indices = @transform_2, window_bounds = array<i64: 16, 1>}, {transform_indices = @transform_3, window_bounds = array<i64: 16, 1>}, {transform_indices = @transform_4, window_bounds = array<i64: 16, 128>}]} {
    %c0 = arith.constant 0 : index
    %c0_0 = arith.constant 0 : index
    %0 = vector.load %arg2[%c0, %c0_0] : memref<16x256xbf16, #tpu.memory_space<vmem>>, vector<16x256xbf16>
    %c0_1 = arith.constant 0 : index
    %c0_2 = arith.constant 0 : index
    %1 = vector.load %arg1[%c0_1, %c0_2] : memref<256x128xbf16, #tpu.memory_space<vmem>>, vector<256x128xbf16>
    %cst = arith.constant dense<0.000000e+00> : vector<16x128xf32>
    %2 = tpu.matmul %0, %1, %cst {dimension_numbers = #tpu.dot_dimension_numbers<[1], [0], [0], [1], [0, 0, 1, 1], [], []>} : vector<16x256xbf16>, vector<256x128xbf16>, vector<16x128xf32> -> vector<16x128xf32>
    %cst_3 = arith.constant dense<0.000000e+00> : vector<16xf32>
    %3 = vector.multi_reduction <add>, %2, %cst_3 [1] : vector<16x128xf32> to vector<16xf32>
    %4 = vector.shape_cast %3 : vector<16xf32> to vector<16x1xf32>
    %cst_4 = arith.constant 7.812500e-03 : f32
    %5 = vector.broadcast %cst_4 : f32 to vector<16x1xf32>
    %6 = arith.mulf %4, %5 : vector<16x1xf32>
    %7 = vector.broadcast %6 : vector<16x1xf32> to vector<16x128xf32>
    %8 = arith.subf %2, %7 : vector<16x128xf32>
    %9 = arith.mulf %8, %8 : vector<16x128xf32>
    %cst_5 = arith.constant dense<0.000000e+00> : vector<16xf32>
    %10 = vector.multi_reduction <add>, %9, %cst_5 [1] : vector<16x128xf32> to vector<16xf32>
    %11 = vector.shape_cast %10 : vector<16xf32> to vector<16x1xf32>
    %cst_6 = arith.constant 7.812500e-03 : f32
    %12 = vector.broadcast %cst_6 : f32 to vector<16x1xf32>
    %13 = arith.mulf %11, %12 : vector<16x1xf32>
    %c0_7 = arith.constant 0 : index
    %c0_8 = arith.constant 0 : index
    %14 = vector.load %arg3[%c0_7, %c0_8] : memref<16x1xf32, #tpu.memory_space<vmem>>, vector<16x1xf32>
    %cst_9 = arith.constant 9.99999974E-6 : f32
    %15 = vector.broadcast %cst_9 : f32 to vector<16x1xf32>
    %16 = arith.addf %13, %15 : vector<16x1xf32>
    %17 = math.rsqrt %16 : vector<16x1xf32>
    %18 = arith.mulf %14, %17 : vector<16x1xf32>
    %19 = vector.broadcast %18 : vector<16x1xf32> to vector<16x128xf32>
    %20 = arith.mulf %8, %19 : vector<16x128xf32>
    %c0_10 = arith.constant 0 : index
    %c0_11 = arith.constant 0 : index
    %21 = vector.load %arg4[%c0_10, %c0_11] : memref<16x1xf32, #tpu.memory_space<vmem>>, vector<16x1xf32>
    %22 = vector.broadcast %21 : vector<16x1xf32> to vector<16x128xf32>
    %23 = arith.addf %20, %22 : vector<16x128xf32>
    %cst_12 = arith.constant 0.000000e+00 : f32
    %24 = vector.broadcast %cst_12 : f32 to vector<16x128xf32>
    %25 = arith.cmpf ogt, %23, %24 : vector<16x128xf32>
    %cst_13 = arith.constant 2.000000e-01 : f32
    %26 = vector.broadcast %cst_13 : f32 to vector<16x128xf32>
    %27 = arith.mulf %26, %23 : vector<16x128xf32>
    %28 = arith.select %25, %23, %27 : vector<16x128xi1>, vector<16x128xf32>
    %29 = arith.truncf %28 : vector<16x128xf32> to vector<16x128xbf16>
    %c0_14 = arith.constant 0 : index
    %c0_15 = arith.constant 0 : index
    %30 = vector.load %arg5[%c0_14, %c0_15] : memref<16x128xbf16, #tpu.memory_space<vmem>>, vector<16x128xbf16>
    tpu.vector_store %arg5[%c0_14, %c0_15], %29 {strides = array<i32>} : memref<16x128xbf16, #tpu.memory_space<vmem>>, vector<16x128xbf16>,
    return
  }
  func.func @transform_0(%arg0: i32) -> (i32, i32) {
    %c0_i32 = arith.constant 0 : i32
    %c0_i32_0 = arith.constant 0 : i32
    %c0_i32_1 = arith.constant 0 : i32
    return %c0_i32, %c0_i32_0 : i32, i32
  }
  func.func @transform_1(%arg0: i32) -> (i32, i32) {
    %c0_i32 = arith.constant 0 : i32
    %c0_i32_0 = arith.constant 0 : i32
    return %arg0, %c0_i32 : i32, i32
  }
  func.func @transform_2(%arg0: i32) -> (i32, i32) {
    %c0_i32 = arith.constant 0 : i32
    %c0_i32_0 = arith.constant 0 : i32
    return %arg0, %c0_i32 : i32, i32
  }
  func.func @transform_3(%arg0: i32) -> (i32, i32) {
    %c0_i32 = arith.constant 0 : i32
    %c0_i32_0 = arith.constant 0 : i32
    return %arg0, %c0_i32 : i32, i32
  }
  func.func @transform_4(%arg0: i32) -> (i32, i32) {
    %c0_i32 = arith.constant 0 : i32
    %c0_i32_0 = arith.constant 0 : i32
    return %arg0, %c0_i32 : i32, i32
  }
}

module attributes {stable_mosaic.version = 11 : i64} {
  func.func @_conv_bn_lrelu_kernel(%arg0: i32, %arg1: memref<512x32xbf16, #tpu.memory_space<vmem>>, %arg2: memref<32x512xbf16, #tpu.memory_space<vmem>>, %arg3: memref<32x1xf32, #tpu.memory_space<vmem>>, %arg4: memref<32x1xf32, #tpu.memory_space<vmem>>, %arg5: memref<32x32xbf16, #tpu.memory_space<vmem>>) attributes {dimension_semantics = [#tpu.dimension_semantics<parallel>], iteration_bounds = array<i64: 2>, scalar_prefetch = 0 : i64, scratch_operands = 0 : i64, tpu.core_type = #tpu.core_type<tc>, window_params = [{pipeline_mode = #tpu.pipeline_mode<synchronous>, transform_indices = @transform_0, window_bounds = array<i64: 512, 32>}, {transform_indices = @transform_1, window_bounds = array<i64: 32, 512>}, {transform_indices = @transform_2, window_bounds = array<i64: 32, 1>}, {transform_indices = @transform_3, window_bounds = array<i64: 32, 1>}, {transform_indices = @transform_4, window_bounds = array<i64: 32, 32>}]} {
    %c0 = arith.constant 0 : index
    %c0_0 = arith.constant 0 : index
    %0 = vector.load %arg2[%c0, %c0_0] : memref<32x512xbf16, #tpu.memory_space<vmem>>, vector<32x512xbf16>
    %c0_1 = arith.constant 0 : index
    %c0_2 = arith.constant 0 : index
    %1 = vector.load %arg1[%c0_1, %c0_2] : memref<512x32xbf16, #tpu.memory_space<vmem>>, vector<512x32xbf16>
    %cst = arith.constant dense<0.000000e+00> : vector<32x32xf32>
    %2 = tpu.matmul %0, %1, %cst {dimension_numbers = #tpu.dot_dimension_numbers<[1], [0], [0], [1], [0, 0, 1, 1], [], []>} : vector<32x512xbf16>, vector<512x32xbf16>, vector<32x32xf32> -> vector<32x32xf32>
    %cst_3 = arith.constant dense<0.000000e+00> : vector<32xf32>
    %3 = vector.multi_reduction <add>, %2, %cst_3 [1] : vector<32x32xf32> to vector<32xf32>
    %4 = vector.shape_cast %3 : vector<32xf32> to vector<32x1xf32>
    %cst_4 = arith.constant 3.125000e-02 : f32
    %5 = vector.broadcast %cst_4 : f32 to vector<32x1xf32>
    %6 = arith.mulf %4, %5 : vector<32x1xf32>
    %7 = vector.broadcast %6 : vector<32x1xf32> to vector<32x32xf32>
    %8 = arith.subf %2, %7 : vector<32x32xf32>
    %9 = arith.mulf %8, %8 : vector<32x32xf32>
    %cst_5 = arith.constant dense<0.000000e+00> : vector<32xf32>
    %10 = vector.multi_reduction <add>, %9, %cst_5 [1] : vector<32x32xf32> to vector<32xf32>
    %11 = vector.shape_cast %10 : vector<32xf32> to vector<32x1xf32>
    %cst_6 = arith.constant 3.125000e-02 : f32
    %12 = vector.broadcast %cst_6 : f32 to vector<32x1xf32>
    %13 = arith.mulf %11, %12 : vector<32x1xf32>
    %c0_7 = arith.constant 0 : index
    %c0_8 = arith.constant 0 : index
    %14 = vector.load %arg3[%c0_7, %c0_8] : memref<32x1xf32, #tpu.memory_space<vmem>>, vector<32x1xf32>
    %cst_9 = arith.constant 9.99999974E-6 : f32
    %15 = vector.broadcast %cst_9 : f32 to vector<32x1xf32>
    %16 = arith.addf %13, %15 : vector<32x1xf32>
    %17 = math.rsqrt %16 : vector<32x1xf32>
    %18 = arith.mulf %14, %17 : vector<32x1xf32>
    %19 = vector.broadcast %18 : vector<32x1xf32> to vector<32x32xf32>
    %20 = arith.mulf %8, %19 : vector<32x32xf32>
    %c0_10 = arith.constant 0 : index
    %c0_11 = arith.constant 0 : index
    %21 = vector.load %arg4[%c0_10, %c0_11] : memref<32x1xf32, #tpu.memory_space<vmem>>, vector<32x1xf32>
    %22 = vector.broadcast %21 : vector<32x1xf32> to vector<32x32xf32>
    %23 = arith.addf %20, %22 : vector<32x32xf32>
    %cst_12 = arith.constant 0.000000e+00 : f32
    %24 = vector.broadcast %cst_12 : f32 to vector<32x32xf32>
    %25 = arith.cmpf ogt, %23, %24 : vector<32x32xf32>
    %cst_13 = arith.constant 2.000000e-01 : f32
    %26 = vector.broadcast %cst_13 : f32 to vector<32x32xf32>
    %27 = arith.mulf %26, %23 : vector<32x32xf32>
    %28 = arith.select %25, %23, %27 : vector<32x32xi1>, vector<32x32xf32>
    %29 = arith.truncf %28 : vector<32x32xf32> to vector<32x32xbf16>
    %c0_14 = arith.constant 0 : index
    %c0_15 = arith.constant 0 : index
    %30 = vector.load %arg5[%c0_14, %c0_15] : memref<32x32xbf16, #tpu.memory_space<vmem>>, vector<32x32xbf16>
    tpu.vector_store %arg5[%c0_14, %c0_15], %29 {strides = array<i32>} : memref<32x32xbf16, #tpu.memory_space<vmem>>, vector<32x32xbf16>,
    return
  }
  func.func @transform_0(%arg0: i32) -> (i32, i32) {
    %c0_i32 = arith.constant 0 : i32
    %c0_i32_0 = arith.constant 0 : i32
    %c0_i32_1 = arith.constant 0 : i32
    return %c0_i32, %c0_i32_0 : i32, i32
  }
  func.func @transform_1(%arg0: i32) -> (i32, i32) {
    %c0_i32 = arith.constant 0 : i32
    %c0_i32_0 = arith.constant 0 : i32
    return %arg0, %c0_i32 : i32, i32
  }
  func.func @transform_2(%arg0: i32) -> (i32, i32) {
    %c0_i32 = arith.constant 0 : i32
    %c0_i32_0 = arith.constant 0 : i32
    return %arg0, %c0_i32 : i32, i32
  }
  func.func @transform_3(%arg0: i32) -> (i32, i32) {
    %c0_i32 = arith.constant 0 : i32
    %c0_i32_0 = arith.constant 0 : i32
    return %arg0, %c0_i32 : i32, i32
  }
  func.func @transform_4(%arg0: i32) -> (i32, i32) {
    %c0_i32 = arith.constant 0 : i32
    %c0_i32_0 = arith.constant 0 : i32
    return %arg0, %c0_i32 : i32, i32
  }
}

module attributes {stable_mosaic.version = 11 : i64} {
  func.func @_conv_bias_act_kernel(%arg0: i32, %arg1: memref<1024x2xbf16, #tpu.memory_space<vmem>>, %arg2: memref<1x1024xbf16, #tpu.memory_space<vmem>>, %arg3: memref<1x1xf32, #tpu.memory_space<vmem>>, %arg4: memref<1x2xf32, #tpu.memory_space<vmem>>) attributes {dimension_semantics = [#tpu.dimension_semantics<parallel>], iteration_bounds = array<i64: 1>, scalar_prefetch = 0 : i64, scratch_operands = 0 : i64, tpu.core_type = #tpu.core_type<tc>, window_params = [{transform_indices = @transform_0, window_bounds = array<i64: 1024, 2>}, {pipeline_mode = #tpu.pipeline_mode<synchronous>, transform_indices = @transform_1, window_bounds = array<i64: 1, 1024>}, {pipeline_mode = #tpu.pipeline_mode<synchronous>, transform_indices = @transform_2, window_bounds = array<i64: 1, 1>}, {transform_indices = @transform_3, window_bounds = array<i64: 1, 2>}]} {
    %c0 = arith.constant 0 : index
    %c0_0 = arith.constant 0 : index
    %0 = vector.load %arg2[%c0, %c0_0] : memref<1x1024xbf16, #tpu.memory_space<vmem>>, vector<1x1024xbf16>
    %c0_1 = arith.constant 0 : index
    %c0_2 = arith.constant 0 : index
    %1 = vector.load %arg1[%c0_1, %c0_2] : memref<1024x2xbf16, #tpu.memory_space<vmem>>, vector<1024x2xbf16>
    %cst = arith.constant dense<0.000000e+00> : vector<1x2xf32>
    %2 = tpu.matmul %0, %1, %cst {dimension_numbers = #tpu.dot_dimension_numbers<[1], [0], [0], [1], [0, 0, 1, 1], [], []>} : vector<1x1024xbf16>, vector<1024x2xbf16>, vector<1x2xf32> -> vector<1x2xf32>
    %c0_3 = arith.constant 0 : index
    %c0_4 = arith.constant 0 : index
    %3 = vector.load %arg3[%c0_3, %c0_4] : memref<1x1xf32, #tpu.memory_space<vmem>>, vector<1x1xf32>
    %4 = vector.broadcast %3 : vector<1x1xf32> to vector<1x2xf32>
    %5 = arith.addf %2, %4 : vector<1x2xf32>
    %cst_5 = arith.constant 0.000000e+00 : f32
    %6 = vector.broadcast %cst_5 : f32 to vector<1x2xf32>
    %7 = arith.subf %6, %5 : vector<1x2xf32>
    %8 = math.exp %7 : vector<1x2xf32>
    %cst_6 = arith.constant 1.000000e+00 : f32
    %9 = vector.broadcast %cst_6 : f32 to vector<1x2xf32>
    %10 = arith.addf %9, %8 : vector<1x2xf32>
    %cst_7 = arith.constant 1.000000e+00 : f32
    %11 = vector.broadcast %cst_7 : f32 to vector<1x2xf32>
    %12 = arith.divf %11, %10 : vector<1x2xf32>
    %c0_8 = arith.constant 0 : index
    %c0_9 = arith.constant 0 : index
    %13 = vector.load %arg4[%c0_8, %c0_9] : memref<1x2xf32, #tpu.memory_space<vmem>>, vector<1x2xf32>
    tpu.vector_store %arg4[%c0_8, %c0_9], %12 {strides = array<i32>} : memref<1x2xf32, #tpu.memory_space<vmem>>, vector<1x2xf32>,
    return
  }
  func.func @transform_0(%arg0: i32) -> (i32, i32) {
    %c0_i32 = arith.constant 0 : i32
    %c0_i32_0 = arith.constant 0 : i32
    return %c0_i32, %arg0 : i32, i32
  }
  func.func @transform_1(%arg0: i32) -> (i32, i32) {
    %c0_i32 = arith.constant 0 : i32
    %c0_i32_0 = arith.constant 0 : i32
    %c0_i32_1 = arith.constant 0 : i32
    return %c0_i32, %c0_i32_0 : i32, i32
  }
  func.func @transform_2(%arg0: i32) -> (i32, i32) {
    %c0_i32 = arith.constant 0 : i32
    %c0_i32_0 = arith.constant 0 : i32
    %c0_i32_1 = arith.constant 0 : i32
    return %c0_i32, %c0_i32_0 : i32, i32
  }
  func.func @transform_3(%arg0: i32) -> (i32, i32) {
    %c0_i32 = arith.constant 0 : i32
    %c0_i32_0 = arith.constant 0 : i32
    return %c0_i32, %arg0 : i32, i32
  }
}

</mosaic_0001>

<llo_original>
// kernel: discriminator_forward.5
$region0: #{discriminator_forward.5}
  #allocation0 [shape = 'u32[]', space=smem, size = 0x4, offset = 0x4, fixed_abs, tag = 'smem constant byte address 0x4 - core index']
  #allocation1 [shape = 'u32[144,128]{1,0:T(1,128)}', space=vmem, size = 0x12000, scoped, tag = 'internal scratch']
  %s0 = inlined_call_operand.vmem [shape: bf16[48,2048], index: 0, kind: input, shape index: {}]
  %s1 = inlined_call_operand.vmem [shape: bf16[8,48], index: 1, kind: input, shape index: {}]
  %s2 = inlined_call_operand.vmem [shape: f32[8,1], index: 2, kind: input, shape index: {}]
  %s3 = inlined_call_operand.vmem [shape: bf16[8,2048], index: 3, kind: output, shape index: {}]
  %s4 = sld [smem:[#allocation0]]
  $region68: #{discriminator_forward.5} parent=0
    _
  %s6 = ssub.s32 1, %s4
  %s7 = scalar_select 0, %s6, %s4
  $region1: #{discriminator_forward.5} parent=0
    #allocation2 [shape = 'u8[196608]{0}', space=vmem, size = 0x30000, scoped, tag = 'input window, operand 0']
    loop: start=0, step=1, limit=4
    $region2: #{discriminator_forward.5} parent=1 // loop_pre_header
      _
    $region3: #{discriminator_forward.5} parent=1 // loop_header
      %s9 = sphi 0, %s13
      %p10 = scmp.ge.s32.totalorder %s9, 4
      %s19 = sphi 0, %s21
      %s22 = sphi 0, %s19
      %s23 = sphi 0, %s22
      %s39 = sphi 0, %s23
      %s43 = sphi 0, %s43
      %s45 = sphi 0, %s43
      %s46 = sphi 0, %s45
      %s60 = sphi 0, %s46
      %s64 = sphi 0, %s64
      %s66 = sphi 0, %s64
      %s67 = sphi 0, %s66
      %s81 = sphi 0, %s67
      %s87 = sphi 0, %s89
      %s90 = sphi 0, %s87
      %s91 = sphi 0, %s90
      %s107 = sphi 0, %s91
    $region4: #{discriminator_forward.5} parent=1 // loop_header_branch
      %12 = sbr.rel (%p10) target = $region8
    $region5: #{discriminator_forward.5} parent=1 // loop_body
      %s14 = ssub.s32 %s9, 1
      %s15 = ssub.s32 %s9, 2
      %s16 = sadd.s32 %s9, 1
      %s17 = ssub.s32 %s9, %s16
      %p18 = scmp.eq.s32.totalorder %s17, 0
      %s20 = sadd.s32 %s19, 1
      %s21 = scalar_select %p18, %s19, %s20
      %p24 = pneg %p18
      %p25 = scmp.eq.s32.totalorder %s9, 1
      %p26 = por %p24, %p25
      %p27 = scmp.ne.s32.totalorder %s19, %s22
      %p28 = scmp.eq.s32.totalorder %s9, 0
      %p29 = por %p27, %p28
      %p30 = scmp.ne.s32.totalorder %s19, %s22
      %p31 = scmp.eq.s32.totalorder %s14, 1
      %p32 = por %p30, %p31
      %p33 = scmp.ne.s32.totalorder %s22, %s23
      %p34 = scmp.eq.s32.totalorder %s14, 0
      %p35 = por %p33, %p34
      %p36 = scmp.ne.s32.totalorder %s22, %s23
      %p37 = scmp.eq.s32.totalorder %s15, 1
      %p38 = por %p36, %p37
      %p40 = scmp.ne.s32.totalorder %s23, %s39
      %p41 = scmp.eq.s32.totalorder %s15, 0
      %p42 = por %p40, %p41
      %s44 = sadd.s32 %s43, 1
      %p47 = scmp.eq.s32.totalorder %s9, 1
      %p48 = scmp.ne.s32.totalorder %s43, %s45
      %p49 = scmp.eq.s32.totalorder %s9, 0
      %p50 = por %p48, %p49
      %p51 = scmp.ne.s32.totalorder %s43, %s45
      %p52 = scmp.eq.s32.totalorder %s14, 1
      %p53 = por %p51, %p52
      %p54 = scmp.ne.s32.totalorder %s45, %s46
      %p55 = scmp.eq.s32.totalorder %s14, 0
      %p56 = por %p54, %p55
      %p57 = scmp.ne.s32.totalorder %s45, %s46
      %p58 = scmp.eq.s32.totalorder %s15, 1
      %p59 = por %p57, %p58
      %p61 = scmp.ne.s32.totalorder %s46, %s60
      %p62 = scmp.eq.s32.totalorder %s15, 0
      %p63 = por %p61, %p62
      %s65 = sadd.s32 %s64, 1
      %p68 = scmp.eq.s32.totalorder %s9, 1
      %p69 = scmp.ne.s32.totalorder %s64, %s66
      %p70 = scmp.eq.s32.totalorder %s9, 0
      %p71 = por %p69, %p70
      %p72 = scmp.ne.s32.totalorder %s64, %s66
      %p73 = scmp.eq.s32.totalorder %s14, 1
      %p74 = por %p72, %p73
      %p75 = scmp.ne.s32.totalorder %s66, %s67
      %p76 = scmp.eq.s32.totalorder %s14, 0
      %p77 = por %p75, %p76
      %p78 = scmp.ne.s32.totalorder %s66, %s67
      %p79 = scmp.eq.s32.totalorder %s15, 1
      %p80 = por %p78, %p79
      %p82 = scmp.ne.s32.totalorder %s67, %s81
      %p83 = scmp.eq.s32.totalorder %s15, 0
      %p84 = por %p82, %p83
      %s85 = ssub.s32 %s9, %s16
      %p86 = scmp.eq.s32.totalorder %s85, 0
      %s88 = sadd.s32 %s87, 1
      %s89 = scalar_select %p86, %s87, %s88
      %p92 = pneg %p86
      %p93 = scmp.eq.s32.totalorder %s9, 1
      %p94 = por %p92, %p93
      %p95 = scmp.ne.s32.totalorder %s87, %s90
      %p96 = scmp.eq.s32.totalorder %s9, 0
      %p97 = por %p95, %p96
      %p98 = scmp.ne.s32.totalorder %s87, %s90
      %p99 = scmp.eq.s32.totalorder %s14, 1
      %p100 = por %p98, %p99
      %p101 = scmp.ne.s32.totalorder %s90, %s91
      %p102 = scmp.eq.s32.totalorder %s14, 0
      %p103 = por %p101, %p102
      %p104 = scmp.ne.s32.totalorder %s90, %s91
      %p105 = scmp.eq.s32.totalorder %s15, 1
      %p106 = por %p104, %p105
      %p108 = scmp.ne.s32.totalorder %s91, %s107
      %p109 = scmp.eq.s32.totalorder %s15, 0
      %p110 = por %p108, %p109
      %p111 = scmp.le.s32.totalorder 1, %s9
      %p112 = scmp.lt.s32.totalorder %s9, 3
      %p113 = pnand %p111, %p112
      %p114 = pneg %p113
      // Predicated region
      $region9: #{discriminator_forward.5} parent=5 // pred_check
        _
      $region10: #{discriminator_forward.5} parent=5 // pred_check_branch
        %116 = sbr.rel (%p113) target = $region12
      $region11: #{discriminator_forward.5} parent=5 // pred_region
        %s117 = ssub.s32 %s9, 1
        // Predicated region
        $region13: #{discriminator_forward.5} parent=11 // pred_check
          %p118 = pneg %p56
        $region14: #{discriminator_forward.5} parent=11 // pred_check_branch
          %120 = sbr.rel (%p118) target = $region16
        $region15: #{discriminator_forward.5} parent=11 // pred_region
          _
        $region16: #{discriminator_forward.5} parent=11 // pred_fallthru
          _
        // Predicated region
        $region17: #{discriminator_forward.5} parent=11 // pred_check
          %p121 = pneg %p77
        $region18: #{discriminator_forward.5} parent=11 // pred_check_branch
          %123 = sbr.rel (%p121) target = $region20
        $region19: #{discriminator_forward.5} parent=11 // pred_region
          _
        $region20: #{discriminator_forward.5} parent=11 // pred_fallthru
          _
      $region12: #{discriminator_forward.5} parent=5 // pred_fallthru
        _
      %p124 = scmp.lt.s32.totalorder %s9, 2
      // Predicated region
      $region21: #{discriminator_forward.5} parent=5 // pred_check
        %p125 = pneg %p124
      $region22: #{discriminator_forward.5} parent=5 // pred_check_branch
        %127 = sbr.rel (%p125) target = $region24
      $region23: #{discriminator_forward.5} parent=5 // pred_region
        // Predicated region
        $region25: #{discriminator_forward.5} parent=23 // pred_check
          %p128 = pneg %p29
        $region26: #{discriminator_forward.5} parent=23 // pred_check_branch
          %130 = sbr.rel (%p128) target = $region28
        $region27: #{discriminator_forward.5} parent=23 // pred_region
          %s131 = sand.u32 %s19, 1
          %s132 = sand.u32 %s19, 1
          %s133 = smul.addr %s132, 192
          %s134 = scalar_lea.vmem [#allocation2], %s133
          %s135 = smul.u32 8, %s9
          %s136 = smul.addr %s135, 4
          %s137 = scalar_lea.vmem %s0, %s136
          // Predicated region
          $region29: #{discriminator_forward.5} parent=27 // pred_check
            _
          $region30: #{discriminator_forward.5} parent=27 // pred_check_branch
            %139 = sbr.rel (0) target = $region32
          $region31: #{discriminator_forward.5} parent=27 // pred_region
            // Predicated region
            $region33: #{discriminator_forward.5} parent=31 // pred_check
              _
            $region34: #{discriminator_forward.5} parent=31 // pred_check_branch
              %141 = sbr.rel (0) target = $region36
            $region35: #{discriminator_forward.5} parent=31 // pred_region
              loop: start=0, step=1, limit=1
              $region37: #{discriminator_forward.5} parent=35 // loop_pre_header
                _
              $region38: #{discriminator_forward.5} parent=35 // loop_header
                %s143 = sphi 0, %s147
                %p144 = scmp.ge.s32.totalorder %s143, 1
                %s148 = sphi %s137, %s137
                %s149 = sphi %s134, %s134
              $region39: #{discriminator_forward.5} parent=35 // loop_header_branch
                %146 = sbr.rel (%p144) target = $region43
              $region40: #{discriminator_forward.5} parent=35 // loop_body
                %v150 = vld [vmem:[%s148] sm:$0xff]
                %151 = vst [vmem:[%s149] sm:$0xff] %v150
                %v152 = vld [vmem:[%s148 + $0x8] sm:$0xff]
                %153 = vst [vmem:[%s149 + $0x8] sm:$0xff] %v152
                %v154 = vld [vmem:[%s148 + $0x10] sm:$0xff]
                %155 = vst [vmem:[%s149 + $0x10] sm:$0xff] %v154
                %v156 = vld [vmem:[%s148 + $0x18] sm:$0xff]
                %157 = vst [vmem:[%s149 + $0x18] sm:$0xff] %v156
                %v158 = vld [vmem:[%s148 + $0x40] sm:$0xff]
                %159 = vst [vmem:[%s149 + $0x20] sm:$0xff] %v158
                %v160 = vld [vmem:[%s148 + $0x48] sm:$0xff]
                %161 = vst [vmem:[%s149 + $0x28] sm:$0xff] %v160
                %v162 = vld [vmem:[%s148 + $0x50] sm:$0xff]
                %163 = vst [vmem:[%s149 + $0x30] sm:$0xff] %v162
                %v164 = vld [vmem:[%s148 + $0x58] sm:$0xff]
                %165 = vst [vmem:[%s149 + $0x38] sm:$0xff] %v164
                %v166 = vld [vmem:[%s148 + $0x80] sm:$0xff]
                %167 = vst [vmem:[%s149 + $0x40] sm:$0xff] %v166
                %v168 = vld [vmem:[%s148 + $0x88] sm:$0xff]
                %169 = vst [vmem:[%s149 + $0x48] sm:$0xff] %v168
                %v170 = vld [vmem:[%s148 + $0x90] sm:$0xff]
                %171 = vst [vmem:[%s149 + $0x50] sm:$0xff] %v170
                %v172 = vld [vmem:[%s148 + $0x98] sm:$0xff]
                %173 = vst [vmem:[%s149 + $0x58] sm:$0xff] %v172
                %v174 = vld [vmem:[%s148 + $0xc0] sm:$0xff]
                %175 = vst [vmem:[%s149 + $0x60] sm:$0xff] %v174
                %v176 = vld [vmem:[%s148 + $0xc8] sm:$0xff]
                %177 = vst [vmem:[%s149 + $0x68] sm:$0xff] %v176
                %v178 = vld [vmem:[%s148 + $0xd0] sm:$0xff]
                %179 = vst [vmem:[%s149 + $0x70] sm:$0xff] %v178
                %v180 = vld [vmem:[%s148 + $0xd8] sm:$0xff]
                %181 = vst [vmem:[%s149 + $0x78] sm:$0xff] %v180
                %v182 = vld [vmem:[%s148 + $0x100] sm:$0xff]
                %183 = vst [vmem:[%s149 + $0x80] sm:$0xff] %v182
                %v184 = vld [vmem:[%s148 + $0x108] sm:$0xff]
                %185 = vst [vmem:[%s149 + $0x88] sm:$0xff] %v184
                %v186 = vld [vmem:[%s148 + $0x110] sm:$0xff]
                %187 = vst [vmem:[%s149 + $0x90] sm:$0xff] %v186
                %v188 = vld [vmem:[%s148 + $0x118] sm:$0xff]
                %189 = vst [vmem:[%s149 + $0x98] sm:$0xff] %v188
                %v190 = vld [vmem:[%s148 + $0x140] sm:$0xff]
                %191 = vst [vmem:[%s149 + $0xa0] sm:$0xff] %v190
                %v192 = vld [vmem:[%s148 + $0x148] sm:$0xff]
                %193 = vst [vmem:[%s149 + $0xa8] sm:$0xff] %v192
                %v194 = vld [vmem:[%s148 + $0x150] sm:$0xff]
                %195 = vst [vmem:[%s149 + $0xb0] sm:$0xff] %v194
                %v196 = vld [vmem:[%s148 + $0x158] sm:$0xff]
                %197 = vst [vmem:[%s149 + $0xb8] sm:$0xff] %v196
              $region41: #{discriminator_forward.5} parent=35 // loop_footer
                %s147 = sadd.s32 1, %s143
              $region42: #{discriminator_forward.5} parent=35 // loop_footer_branch
                %142 = sbr.rel target = $region38
              $region43: #{discriminator_forward.5} parent=35 // loop_exit
                _
            $region36: #{discriminator_forward.5} parent=31 // pred_fallthru
              _
            // Predicated region
            $region44: #{discriminator_forward.5} parent=31 // pred_check
              _
            $region45: #{discriminator_forward.5} parent=31 // pred_check_branch
              %199 = sbr.rel target = $region47
            $region46: #{discriminator_forward.5} parent=31 // pred_region
              _
            $region47: #{discriminator_forward.5} parent=31 // pred_fallthru
              _
          $region32: #{discriminator_forward.5} parent=27 // pred_fallthru
            _
          %200 = vnop
        $region28: #{discriminator_forward.5} parent=23 // pred_fallthru
          _
      $region24: #{discriminator_forward.5} parent=5 // pred_fallthru
        _
      %p201 = scmp.le.s32.totalorder 1, %s9
      %p202 = scmp.lt.s32.totalorder %s9, 3
      %p203 = pnand %p201, %p202
      %p204 = pneg %p203
      // Predicated region
      $region48: #{discriminator_forward.5} parent=5 // pred_check
        _
      $region49: #{discriminator_forward.5} parent=5 // pred_check_branch
        %206 = sbr.rel (%p203) target = $region51
      $region50: #{discriminator_forward.5} parent=5 // pred_region
        %s207 = ssub.s32 %s9, 1
        %s208 = sand.u32 %s22, 1
        %s209 = sand.u32 %s22, 1
        %s210 = smul.addr %s209, 192
        %s211 = scalar_lea.vmem [#allocation2], %s210
        // Predicated region
        $region52: #{discriminator_forward.5} parent=50 // pred_check
          %p212 = pneg %p35
        $region53: #{discriminator_forward.5} parent=50 // pred_check_branch
          %214 = sbr.rel (%p212) target = $region55
        $region54: #{discriminator_forward.5} parent=50 // pred_region
          _
        $region55: #{discriminator_forward.5} parent=50 // pred_fallthru
          _
        %s215 = sand.u32 %s22, 1
        %s216 = sand.u32 %s22, 1
        %s217 = smul.addr %s216, 192
        %s218 = scalar_lea.vmem [#allocation2], %s217
        %p219 = pneg %p35
        %p220 = pneg %p32
        %p221 = pneg %p56
        %p222 = pneg %p53
        %p223 = pneg %p77
        %p224 = pneg %p74
        %p225 = pneg %p103
        %p226 = pneg %p100
        %s227 = smul.u32 8, %s14
        %p228 = scmp.lt.s32.totalorder %s227, 15
        %s229 = scalar_select %p228, %s227, 15
        %s230 = smul.addr %s229, 4
        %s231 = scalar_lea.vmem %s3, %s230
        %s232 = smul.u32 8, %s14
        %s233 = smul.u32 8, %s14
        %p234 = scmp.lt.s32.totalorder %s233, 15
        %s235 = scalar_select %p234, %s233, 15
        %s236 = smul.addr %s235, 4
        %s237 = scalar_lea.vmem %s3, %s236
        %s238 = smul.u32 8, %s14
        %v240 = vld [vmem:[%s1] sm:$0xf]
        %v241 = vld [vmem:[%s211] sm:$0xff]
        %v242 = vld [vmem:[%s211 + $0x8] sm:$0xff]
        %v243 = vld [vmem:[%s211 + $0x10] sm:$0xff]
        %v244 = vld [vmem:[%s211 + $0x18] sm:$0xff]
        %v245 = vld [vmem:[%s211 + $0x20] sm:$0xff]
        %v246 = vld [vmem:[%s211 + $0x28] sm:$0xff]
        %v247 = vld [vmem:[%s211 + $0x30] sm:$0xff]
        %v248 = vld [vmem:[%s211 + $0x38] sm:$0xff]
        %v249 = vld [vmem:[%s211 + $0x40] sm:$0xff]
        %v250 = vld [vmem:[%s211 + $0x48] sm:$0xff]
        %v251 = vld [vmem:[%s211 + $0x50] sm:$0xff]
        %v252 = vld [vmem:[%s211 + $0x58] sm:$0xff]
        %v253 = vld [vmem:[%s211 + $0x60] sm:$0xff]
        %v254 = vld [vmem:[%s211 + $0x68] sm:$0xff]
        %v255 = vld [vmem:[%s211 + $0x70] sm:$0xff]
        %v256 = vld [vmem:[%s211 + $0x78] sm:$0xff]
        %v257 = vld [vmem:[%s211 + $0x80] sm:$0xff]
        %v258 = vld [vmem:[%s211 + $0x88] sm:$0xff]
        %v259 = vld [vmem:[%s211 + $0x90] sm:$0xff]
        %v260 = vld [vmem:[%s211 + $0x98] sm:$0xff]
        %v261 = vld [vmem:[%s211 + $0xa0] sm:$0xff]
        %v262 = vld [vmem:[%s211 + $0xa8] sm:$0xff]
        %v263 = vld [vmem:[%s211 + $0xb0] sm:$0xff]
        %v264 = vld [vmem:[%s211 + $0xb8] sm:$0xff]
        %v265 = vld [vmem:[%s2] sm:$0xff]
        %267 = vset.pattern.permute.xlu0 0
        %268 = vperm.xlu0 %267, %v265
        %v269 = vpop.permute.xlu0 %268
        %v295 = vunpack.c.l.b16 %v241
        %v296 = vunpack.c.h.b16 %v241
        %v297 = vunpack.c.l.b16 %v242
        %v298 = vunpack.c.h.b16 %v242
        %v299 = vunpack.c.l.b16 %v243
        %v300 = vunpack.c.h.b16 %v243
        %v301 = vunpack.c.l.b16 %v244
        %v302 = vunpack.c.h.b16 %v244
        %v303 = vunpack.c.l.b16 %v245
        %v304 = vunpack.c.h.b16 %v245
        %v305 = vunpack.c.l.b16 %v246
        %v306 = vunpack.c.h.b16 %v246
        %v307 = vunpack.c.l.b16 %v247
        %v308 = vunpack.c.h.b16 %v247
        %v309 = vunpack.c.l.b16 %v248
        %v310 = vunpack.c.h.b16 %v248
        %v311 = vunpack.c.l.b16 %v249
        %v312 = vunpack.c.h.b16 %v249
        %v313 = vunpack.c.l.b16 %v250
        %v314 = vunpack.c.h.b16 %v250
        %v315 = vunpack.c.l.b16 %v251
        %v316 = vunpack.c.h.b16 %v251
        %v317 = vunpack.c.l.b16 %v252
        %v318 = vunpack.c.h.b16 %v252
        %v319 = vunpack.c.l.b16 %v253
        %v320 = vunpack.c.h.b16 %v253
        %v321 = vunpack.c.l.b16 %v254
        %v322 = vunpack.c.h.b16 %v254
        %v323 = vunpack.c.l.b16 %v255
        %v324 = vunpack.c.h.b16 %v255
        %v325 = vunpack.c.l.b16 %v256
        %v326 = vunpack.c.h.b16 %v256
        %v327 = vunpack.c.l.b16 %v257
        %v328 = vunpack.c.h.b16 %v257
        %v329 = vunpack.c.l.b16 %v258
        %v330 = vunpack.c.h.b16 %v258
        %v331 = vunpack.c.l.b16 %v259
        %v332 = vunpack.c.h.b16 %v259
        %v333 = vunpack.c.l.b16 %v260
        %v334 = vunpack.c.h.b16 %v260
        %v335 = vunpack.c.l.b16 %v261
        %v336 = vunpack.c.h.b16 %v261
        %v337 = vunpack.c.l.b16 %v262
        %v338 = vunpack.c.h.b16 %v262
        %v339 = vunpack.c.l.b16 %v263
        %v340 = vunpack.c.h.b16 %v263
        %v341 = vunpack.c.l.b16 %v264
        %v342 = vunpack.c.h.b16 %v264
        %v343 = vpack.c.b16 %v303, %v295
        %v344 = vpack.c.b16 %v304, %v296
        %v345 = vpack.c.b16 %v305, %v297
        %v346 = vpack.c.b16 %v306, %v298
        %v347 = vpack.c.b16 %v307, %v299
        %v348 = vpack.c.b16 %v308, %v300
        %v349 = vpack.c.b16 %v309, %v301
        %v350 = vpack.c.b16 %v310, %v302
        %v351 = vpack.c.b16 %v319, %v311
        %v352 = vpack.c.b16 %v320, %v312
        %v353 = vpack.c.b16 %v321, %v313
        %v354 = vpack.c.b16 %v322, %v314
        %v355 = vpack.c.b16 %v323, %v315
        %v356 = vpack.c.b16 %v324, %v316
        %v357 = vpack.c.b16 %v325, %v317
        %v358 = vpack.c.b16 %v326, %v318
        %v359 = vpack.c.b16 %v335, %v327
        %v360 = vpack.c.b16 %v336, %v328
        %v361 = vpack.c.b16 %v337, %v329
        %v362 = vpack.c.b16 %v338, %v330
        %v363 = vpack.c.b16 %v339, %v331
        %v364 = vpack.c.b16 %v340, %v332
        %v365 = vpack.c.b16 %v341, %v333
        %v366 = vpack.c.b16 %v342, %v334
        %vm391 = vcmask 392192
        %v393 = vsel %vm391, %v240, 0
        %395 = vmatprep.subr.bf16.mxu0 0
        %396 = vmatpush1.bf16.msra.mxu0 0
        %397 = vmatprep.subr.bf16.mxu0 0
        %398 = vmatpush1.bf16.msra.mxu0 0
        %399 = vmatprep.subr.bf16.mxu0 0
        %400 = vmatpush1.bf16.msra.mxu0 0
        %401 = vmatprep.subr.bf16.mxu0 0
        %402 = vmatpush1.bf16.msra.mxu0 0
        %403 = vmatprep.subr.bf16.mxu0 0
        %404 = vmatpush1.bf16.msra.mxu0 0
        %405 = vmatprep.subr.bf16.mxu0 %v360
        %406 = vmatpush1.bf16.msra.mxu0 %v359
        %407 = vmatprep.subr.bf16.mxu0 %v352
        %408 = vmatpush1.bf16.msra.mxu0 %v351
        %409 = vmatprep.subr.bf16.mxu0 %v344
        %410 = vmatpush1.bf16.msra.mxu0 %v343
        %411 = vmatprep.subr.bf16.mxu0 0
        %412 = vmatpush2.bf16.msra.mxu0 0
        %413 = vmatprep.subr.bf16.mxu0 0
        %414 = vmatpush2.bf16.msra.mxu0 0
        %415 = vmatprep.subr.bf16.mxu0 0
        %416 = vmatpush2.bf16.msra.mxu0 0
        %417 = vmatprep.subr.bf16.mxu0 0
        %418 = vmatpush2.bf16.msra.mxu0 0
        %419 = vmatprep.subr.bf16.mxu0 0
        %420 = vmatpush2.bf16.msra.mxu0 0
        %421 = vmatprep.subr.bf16.mxu0 0
        %422 = vmatpush2.bf16.msra.mxu0 0
        %423 = vmatprep.subr.bf16.mxu0 0
        %424 = vmatpush2.bf16.msra.mxu0 0
        %425 = vmatprep.subr.bf16.mxu0 0
        %426 = vmatpush2.bf16.msra.mxu0 0
        %427 = vmatprep.mubr.bf16.mxu0 0
        %428 = vmatmul.mubr.bf16.gmra.mxu0 %v393
        %v429 = vpop.f32.mrf.mxu0
        %v430 = vadd.f32 %v269, %v429
        %v431 = vpop.f32.mrf.mxu0
        %v432 = vadd.f32 %v269, %v431
        %v433 = vpop.f32.mrf.mxu0
        %v434 = vpop.f32.mrf.mxu0
        %435 = vdwg.mxu0
        %436 = vmatprep.subr.bf16.mxu0 0
        %437 = vmatpush1.bf16.msra.mxu0 0
        %438 = vmatprep.subr.bf16.mxu0 0
        %439 = vmatpush1.bf16.msra.mxu0 0
        %440 = vmatprep.subr.bf16.mxu0 0
        %441 = vmatpush1.bf16.msra.mxu0 0
        %442 = vmatprep.subr.bf16.mxu0 0
        %443 = vmatpush1.bf16.msra.mxu0 0
        %444 = vmatprep.subr.bf16.mxu0 0
        %445 = vmatpush1.bf16.msra.mxu0 0
        %446 = vmatprep.subr.bf16.mxu0 %v362
        %447 = vmatpush1.bf16.msra.mxu0 %v361
        %448 = vmatprep.subr.bf16.mxu0 %v354
        %449 = vmatpush1.bf16.msra.mxu0 %v353
        %450 = vmatprep.subr.bf16.mxu0 %v346
        %451 = vmatpush1.bf16.msra.mxu0 %v345
        %452 = vmatprep.subr.bf16.mxu0 0
        %453 = vmatpush2.bf16.msra.mxu0 0
        %454 = vmatprep.subr.bf16.mxu0 0
        %455 = vmatpush2.bf16.msra.mxu0 0
        %456 = vmatprep.subr.bf16.mxu0 0
        %457 = vmatpush2.bf16.msra.mxu0 0
        %458 = vmatprep.subr.bf16.mxu0 0
        %459 = vmatpush2.bf16.msra.mxu0 0
        %460 = vmatprep.subr.bf16.mxu0 0
        %461 = vmatpush2.bf16.msra.mxu0 0
        %462 = vmatprep.subr.bf16.mxu0 0
        %463 = vmatpush2.bf16.msra.mxu0 0
        %464 = vmatprep.subr.bf16.mxu0 0
        %465 = vmatpush2.bf16.msra.mxu0 0
        %466 = vmatprep.subr.bf16.mxu0 0
        %467 = vmatpush2.bf16.msra.mxu0 0
        %468 = vmatprep.mubr.bf16.mxu0 0
        %469 = vmatmul.mubr.bf16.gmra.mxu0 %v393
        %v470 = vpop.f32.mrf.mxu0
        %v471 = vadd.f32 %v269, %v470
        %v472 = vpop.f32.mrf.mxu0
        %v473 = vadd.f32 %v269, %v472
        %v474 = vpop.f32.mrf.mxu0
        %v475 = vpop.f32.mrf.mxu0
        %476 = vdwg.mxu0
        %477 = vmatprep.subr.bf16.mxu0 0
        %478 = vmatpush1.bf16.msra.mxu0 0
        %479 = vmatprep.subr.bf16.mxu0 0
        %480 = vmatpush1.bf16.msra.mxu0 0
        %481 = vmatprep.subr.bf16.mxu0 0
        %482 = vmatpush1.bf16.msra.mxu0 0
        %483 = vmatprep.subr.bf16.mxu0 0
        %484 = vmatpush1.bf16.msra.mxu0 0
        %485 = vmatprep.subr.bf16.mxu0 0
        %486 = vmatpush1.bf16.msra.mxu0 0
        %487 = vmatprep.subr.bf16.mxu0 %v364
        %488 = vmatpush1.bf16.msra.mxu0 %v363
        %489 = vmatprep.subr.bf16.mxu0 %v356
        %490 = vmatpush1.bf16.msra.mxu0 %v355
        %491 = vmatprep.subr.bf16.mxu0 %v348
        %492 = vmatpush1.bf16.msra.mxu0 %v347
        %493 = vmatprep.subr.bf16.mxu0 0
        %494 = vmatpush2.bf16.msra.mxu0 0
        %495 = vmatprep.subr.bf16.mxu0 0
        %496 = vmatpush2.bf16.msra.mxu0 0
        %497 = vmatprep.subr.bf16.mxu0 0
        %498 = vmatpush2.bf16.msra.mxu0 0
        %499 = vmatprep.subr.bf16.mxu0 0
        %500 = vmatpush2.bf16.msra.mxu0 0
        %501 = vmatprep.subr.bf16.mxu0 0
        %502 = vmatpush2.bf16.msra.mxu0 0
        %503 = vmatprep.subr.bf16.mxu0 0
        %504 = vmatpush2.bf16.msra.mxu0 0
        %505 = vmatprep.subr.bf16.mxu0 0
        %506 = vmatpush2.bf16.msra.mxu0 0
        %507 = vmatprep.subr.bf16.mxu0 0
        %508 = vmatpush2.bf16.msra.mxu0 0
        %509 = vmatprep.mubr.bf16.mxu0 0
        %510 = vmatmul.mubr.bf16.gmra.mxu0 %v393
        %v511 = vpop.f32.mrf.mxu0
        %v512 = vadd.f32 %v269, %v511
        %v513 = vpop.f32.mrf.mxu0
        %v514 = vadd.f32 %v269, %v513
        %v515 = vpop.f32.mrf.mxu0
        %v516 = vpop.f32.mrf.mxu0
        %517 = vdwg.mxu0
        %518 = vmatprep.subr.bf16.mxu0 0
        %519 = vmatpush1.bf16.msra.mxu0 0
        %520 = vmatprep.subr.bf16.mxu0 0
        %521 = vmatpush1.bf16.msra.mxu0 0
        %522 = vmatprep.subr.bf16.mxu0 0
        %523 = vmatpush1.bf16.msra.mxu0 0
        %524 = vmatprep.subr.bf16.mxu0 0
        %525 = vmatpush1.bf16.msra.mxu0 0
        %526 = vmatprep.subr.bf16.mxu0 0
        %527 = vmatpush1.bf16.msra.mxu0 0
        %528 = vmatprep.subr.bf16.mxu0 %v366
        %529 = vmatpush1.bf16.msra.mxu0 %v365
        %530 = vmatprep.subr.bf16.mxu0 %v358
        %531 = vmatpush1.bf16.msra.mxu0 %v357
        %532 = vmatprep.subr.bf16.mxu0 %v350
        %533 = vmatpush1.bf16.msra.mxu0 %v349
        %534 = vmatprep.subr.bf16.mxu0 0
        %535 = vmatpush2.bf16.msra.mxu0 0
        %536 = vmatprep.subr.bf16.mxu0 0
        %537 = vmatpush2.bf16.msra.mxu0 0
        %538 = vmatprep.subr.bf16.mxu0 0
        %539 = vmatpush2.bf16.msra.mxu0 0
        %540 = vmatprep.subr.bf16.mxu0 0
        %541 = vmatpush2.bf16.msra.mxu0 0
        %542 = vmatprep.subr.bf16.mxu0 0
        %543 = vmatpush2.bf16.msra.mxu0 0
        %544 = vmatprep.subr.bf16.mxu0 0
        %545 = vmatpush2.bf16.msra.mxu0 0
        %546 = vmatprep.subr.bf16.mxu0 0
        %547 = vmatpush2.bf16.msra.mxu0 0
        %548 = vmatprep.subr.bf16.mxu0 0
        %549 = vmatpush2.bf16.msra.mxu0 0
        %550 = vmatprep.mubr.bf16.mxu0 0
        %551 = vmatmul.mubr.bf16.gmra.mxu0 %v393
        %v552 = vpop.f32.mrf.mxu0
        %v553 = vadd.f32 %v269, %v552
        %v554 = vpop.f32.mrf.mxu0
        %v555 = vadd.f32 %v269, %v554
        %v556 = vpop.f32.mrf.mxu0
        %v557 = vpop.f32.mrf.mxu0
        %558 = vdwg.mxu0
        %vm559 = vcmp.gt.f32.partialorder %v430, 0.0
        %vm560 = vcmp.gt.f32.partialorder %v432, 0.0
        %vm561 = vcmp.gt.f32.partialorder %v471, 0.0
        %vm562 = vcmp.gt.f32.partialorder %v473, 0.0
        %vm563 = vcmp.gt.f32.partialorder %v512, 0.0
        %vm564 = vcmp.gt.f32.partialorder %v514, 0.0
        %vm565 = vcmp.gt.f32.partialorder %v553, 0.0
        %vm566 = vcmp.gt.f32.partialorder %v555, 0.0
        %v567 = vmul.f32 %v430, 0.2
        %v568 = vmul.f32 %v432, 0.2
        %v569 = vmul.f32 %v471, 0.2
        %v570 = vmul.f32 %v473, 0.2
        %v571 = vmul.f32 %v512, 0.2
        %v572 = vmul.f32 %v514, 0.2
        %v573 = vmul.f32 %v553, 0.2
        %v574 = vmul.f32 %v555, 0.2
        %v575 = vsel %vm559, %v430, %v567
        %v576 = vsel %vm560, %v432, %v568
        %v577 = vsel %vm561, %v471, %v569
        %v578 = vsel %vm562, %v473, %v570
        %v579 = vsel %vm563, %v512, %v571
        %v580 = vsel %vm564, %v514, %v572
        %v581 = vsel %vm565, %v553, %v573
        %v582 = vsel %vm566, %v555, %v574
        %v583 = vpack.c.bf16 %v575, %v575
        %v584 = vpack.c.bf16 %v576, %v576
        %v585 = vpack.c.bf16 %v577, %v577
        %v586 = vpack.c.bf16 %v578, %v578
        %v587 = vpack.c.bf16 %v579, %v579
        %v588 = vpack.c.bf16 %v580, %v580
        %v589 = vpack.c.bf16 %v581, %v581
        %v590 = vpack.c.bf16 %v582, %v582
        %v599 = vunpack.c.l.b16 %v583
        %v600 = vunpack.c.l.b16 %v584
        %v601 = vunpack.c.l.b16 %v585
        %v602 = vunpack.c.l.b16 %v586
        %v603 = vunpack.c.l.b16 %v587
        %v604 = vunpack.c.l.b16 %v588
        %v605 = vunpack.c.l.b16 %v589
        %v606 = vunpack.c.l.b16 %v590
        %v607 = vpack.c.b16 %v600, %v599
        %v608 = vpack.c.b16 %v602, %v601
        %v609 = vpack.c.b16 %v604, %v603
        %v610 = vpack.c.b16 %v606, %v605
        %615 = vst [vmem:[%s237] sm:$0xff] %v607
        %616 = vst [vmem:[%s237 + $0x8] sm:$0xff] %v608
        %617 = vst [vmem:[%s237 + $0x10] sm:$0xff] %v609
        %618 = vst [vmem:[%s237 + $0x18] sm:$0xff] %v610
        %s619 = smul.u32 8, %s14
        %p620 = scmp.lt.s32.totalorder %s619, 15
        %s621 = scalar_select %p620, %s619, 15
        %s622 = smul.addr %s621, 4
        %s623 = scalar_lea.vmem %s3, %s622
        // Predicated region
        $region56: #{discriminator_forward.5} parent=50 // pred_check
          %p624 = pneg %p100
        $region57: #{discriminator_forward.5} parent=50 // pred_check_branch
          %626 = sbr.rel (%p624) target = $region59
        $region58: #{discriminator_forward.5} parent=50 // pred_region
          %s627 = smul.u32 8, %s14
        $region59: #{discriminator_forward.5} parent=50 // pred_fallthru
          _
      $region51: #{discriminator_forward.5} parent=5 // pred_fallthru
        _
      %p628 = scmp.le.s32.totalorder 2, %s9
      // Predicated region
      $region60: #{discriminator_forward.5} parent=5 // pred_check
        %p629 = pneg %p628
      $region61: #{discriminator_forward.5} parent=5 // pred_check_branch
        %631 = sbr.rel (%p629) target = $region63
      $region62: #{discriminator_forward.5} parent=5 // pred_region
        %s632 = ssub.s32 %s9, 2
        // Predicated region
        $region64: #{discriminator_forward.5} parent=62 // pred_check
          %p633 = pneg %p106
        $region65: #{discriminator_forward.5} parent=62 // pred_check_branch
          %635 = sbr.rel (%p633) target = $region67
        $region66: #{discriminator_forward.5} parent=62 // pred_region
          %s636 = smul.u32 8, %s15
          %p637 = scmp.lt.s32.totalorder %s636, 15
          %s638 = scalar_select %p637, %s636, 15
          %s639 = smul.addr %s638, 4
          %s640 = scalar_lea.vmem %s3, %s639
        $region67: #{discriminator_forward.5} parent=62 // pred_fallthru
          _
      $region63: #{discriminator_forward.5} parent=5 // pred_fallthru
        _
    $region6: #{discriminator_forward.5} parent=1 // loop_footer
      %s13 = sadd.s32 1, %s9
    $region7: #{discriminator_forward.5} parent=1 // loop_footer_branch
      %8 = sbr.rel target = $region3
    $region8: #{discriminator_forward.5} parent=1 // loop_exit
      _

// kernel: discriminator_forward.6
$region0: #{discriminator_forward.6}
  #allocation0 [shape = 'u32[]', space=smem, size = 0x4, offset = 0x4, fixed_abs, tag = 'smem constant byte address 0x4 - core index']
  #allocation1 [shape = 'u32[144,128]{1,0:T(1,128)}', space=vmem, size = 0x12000, scoped, tag = 'internal scratch']
  %s0 = inlined_call_operand.vmem [shape: bf16[128,512], index: 0, kind: input, shape index: {}]
  %s1 = inlined_call_operand.vmem [shape: bf16[16,128], index: 1, kind: input, shape index: {}]
  %s2 = inlined_call_operand.vmem [shape: f32[16,1], index: 2, kind: input, shape index: {}]
  %s3 = inlined_call_operand.vmem [shape: f32[16,1], index: 3, kind: input, shape index: {}]
  %s4 = inlined_call_operand.vmem [shape: bf16[16,512], index: 4, kind: output, shape index: {}]
  %s5 = sld [smem:[#allocation0]]
  $region49: #{discriminator_forward.6} parent=0
    _
  %s7 = ssub.s32 1, %s5
  %s8 = scalar_select 0, %s7, %s5
  loop: start=0, step=1, limit=4
  $region2: #{discriminator_forward.6} parent=0 // loop_pre_header
    _
  $region3: #{discriminator_forward.6} parent=0 // loop_header
    %s10 = sphi 0, %s14
    %p11 = scmp.ge.s32.totalorder %s10, 4
    %s18 = sphi 0, %s18
    %s20 = sphi 0, %s18
    %s21 = sphi 0, %s20
    %s35 = sphi 0, %s21
    %s41 = sphi 0, %s43
    %s44 = sphi 0, %s41
    %s45 = sphi 0, %s44
    %s61 = sphi 0, %s45
    %s67 = sphi 0, %s69
    %s70 = sphi 0, %s67
    %s71 = sphi 0, %s70
    %s87 = sphi 0, %s71
    %s93 = sphi 0, %s95
    %s96 = sphi 0, %s93
    %s97 = sphi 0, %s96
    %s113 = sphi 0, %s97
    %s119 = sphi 0, %s121
    %s122 = sphi 0, %s119
    %s123 = sphi 0, %s122
    %s139 = sphi 0, %s123
  $region4: #{discriminator_forward.6} parent=0 // loop_header_branch
    %13 = sbr.rel (%p11) target = $region8
  $region5: #{discriminator_forward.6} parent=0 // loop_body
    %s15 = ssub.s32 %s10, 1
    %s16 = ssub.s32 %s10, 2
    %s17 = sadd.s32 %s10, 1
    %s19 = sadd.s32 %s18, 1
    %p22 = scmp.eq.s32.totalorder %s10, 1
    %p23 = scmp.ne.s32.totalorder %s18, %s20
    %p24 = scmp.eq.s32.totalorder %s10, 0
    %p25 = por %p23, %p24
    %p26 = scmp.ne.s32.totalorder %s18, %s20
    %p27 = scmp.eq.s32.totalorder %s15, 1
    %p28 = por %p26, %p27
    %p29 = scmp.ne.s32.totalorder %s20, %s21
    %p30 = scmp.eq.s32.totalorder %s15, 0
    %p31 = por %p29, %p30
    %p32 = scmp.ne.s32.totalorder %s20, %s21
    %p33 = scmp.eq.s32.totalorder %s16, 1
    %p34 = por %p32, %p33
    %p36 = scmp.ne.s32.totalorder %s21, %s35
    %p37 = scmp.eq.s32.totalorder %s16, 0
    %p38 = por %p36, %p37
    %s39 = ssub.s32 %s10, %s17
    %p40 = scmp.eq.s32.totalorder %s39, 0
    %s42 = sadd.s32 %s41, 1
    %s43 = scalar_select %p40, %s41, %s42
    %p46 = pneg %p40
    %p47 = scmp.eq.s32.totalorder %s10, 1
    %p48 = por %p46, %p47
    %p49 = scmp.ne.s32.totalorder %s41, %s44
    %p50 = scmp.eq.s32.totalorder %s10, 0
    %p51 = por %p49, %p50
    %p52 = scmp.ne.s32.totalorder %s41, %s44
    %p53 = scmp.eq.s32.totalorder %s15, 1
    %p54 = por %p52, %p53
    %p55 = scmp.ne.s32.totalorder %s44, %s45
    %p56 = scmp.eq.s32.totalorder %s15, 0
    %p57 = por %p55, %p56
    %p58 = scmp.ne.s32.totalorder %s44, %s45
    %p59 = scmp.eq.s32.totalorder %s16, 1
    %p60 = por %p58, %p59
    %p62 = scmp.ne.s32.totalorder %s45, %s61
    %p63 = scmp.eq.s32.totalorder %s16, 0
    %p64 = por %p62, %p63
    %s65 = ssub.s32 %s10, %s17
    %p66 = scmp.eq.s32.totalorder %s65, 0
    %s68 = sadd.s32 %s67, 1
    %s69 = scalar_select %p66, %s67, %s68
    %p72 = pneg %p66
    %p73 = scmp.eq.s32.totalorder %s10, 1
    %p74 = por %p72, %p73
    %p75 = scmp.ne.s32.totalorder %s67, %s70
    %p76 = scmp.eq.s32.totalorder %s10, 0
    %p77 = por %p75, %p76
    %p78 = scmp.ne.s32.totalorder %s67, %s70
    %p79 = scmp.eq.s32.totalorder %s15, 1
    %p80 = por %p78, %p79
    %p81 = scmp.ne.s32.totalorder %s70, %s71
    %p82 = scmp.eq.s32.totalorder %s15, 0
    %p83 = por %p81, %p82
    %p84 = scmp.ne.s32.totalorder %s70, %s71
    %p85 = scmp.eq.s32.totalorder %s16, 1
    %p86 = por %p84, %p85
    %p88 = scmp.ne.s32.totalorder %s71, %s87
    %p89 = scmp.eq.s32.totalorder %s16, 0
    %p90 = por %p88, %p89
    %s91 = ssub.s32 %s10, %s17
    %p92 = scmp.eq.s32.totalorder %s91, 0
    %s94 = sadd.s32 %s93, 1
    %s95 = scalar_select %p92, %s93, %s94
    %p98 = pneg %p92
    %p99 = scmp.eq.s32.totalorder %s10, 1
    %p100 = por %p98, %p99
    %p101 = scmp.ne.s32.totalorder %s93, %s96
    %p102 = scmp.eq.s32.totalorder %s10, 0
    %p103 = por %p101, %p102
    %p104 = scmp.ne.s32.totalorder %s93, %s96
    %p105 = scmp.eq.s32.totalorder %s15, 1
    %p106 = por %p104, %p105
    %p107 = scmp.ne.s32.totalorder %s96, %s97
    %p108 = scmp.eq.s32.totalorder %s15, 0
    %p109 = por %p107, %p108
    %p110 = scmp.ne.s32.totalorder %s96, %s97
    %p111 = scmp.eq.s32.totalorder %s16, 1
    %p112 = por %p110, %p111
    %p114 = scmp.ne.s32.totalorder %s97, %s113
    %p115 = scmp.eq.s32.totalorder %s16, 0
    %p116 = por %p114, %p115
    %s117 = ssub.s32 %s10, %s17
    %p118 = scmp.eq.s32.totalorder %s117, 0
    %s120 = sadd.s32 %s119, 1
    %s121 = scalar_select %p118, %s119, %s120
    %p124 = pneg %p118
    %p125 = scmp.eq.s32.totalorder %s10, 1
    %p126 = por %p124, %p125
    %p127 = scmp.ne.s32.totalorder %s119, %s122
    %p128 = scmp.eq.s32.totalorder %s10, 0
    %p129 = por %p127, %p128
    %p130 = scmp.ne.s32.totalorder %s119, %s122
    %p131 = scmp.eq.s32.totalorder %s15, 1
    %p132 = por %p130, %p131
    %p133 = scmp.ne.s32.totalorder %s122, %s123
    %p134 = scmp.eq.s32.totalorder %s15, 0
    %p135 = por %p133, %p134
    %p136 = scmp.ne.s32.totalorder %s122, %s123
    %p137 = scmp.eq.s32.totalorder %s16, 1
    %p138 = por %p136, %p137
    %p140 = scmp.ne.s32.totalorder %s123, %s139
    %p141 = scmp.eq.s32.totalorder %s16, 0
    %p142 = por %p140, %p141
    %p143 = scmp.le.s32.totalorder 1, %s10
    %p144 = scmp.lt.s32.totalorder %s10, 3
    %p145 = pnand %p143, %p144
    %p146 = pneg %p145
    // Predicated region
    $region9: #{discriminator_forward.6} parent=5 // pred_check
      _
    $region10: #{discriminator_forward.6} parent=5 // pred_check_branch
      %148 = sbr.rel (%p145) target = $region12
    $region11: #{discriminator_forward.6} parent=5 // pred_region
      %s149 = ssub.s32 %s10, 1
      // Predicated region
      $region13: #{discriminator_forward.6} parent=11 // pred_check
        %p150 = pneg %p31
      $region14: #{discriminator_forward.6} parent=11 // pred_check_branch
        %152 = sbr.rel (%p150) target = $region16
      $region15: #{discriminator_forward.6} parent=11 // pred_region
        _
      $region16: #{discriminator_forward.6} parent=11 // pred_fallthru
        _
    $region12: #{discriminator_forward.6} parent=5 // pred_fallthru
      _
    %p153 = scmp.lt.s32.totalorder %s10, 2
    // Predicated region
    $region17: #{discriminator_forward.6} parent=5 // pred_check
      %p154 = pneg %p153
    $region18: #{discriminator_forward.6} parent=5 // pred_check_branch
      %156 = sbr.rel (%p154) target = $region20
    $region19: #{discriminator_forward.6} parent=5 // pred_region
      // Predicated region
      $region21: #{discriminator_forward.6} parent=19 // pred_check
        %p157 = pneg %p51
      $region22: #{discriminator_forward.6} parent=19 // pred_check_branch
        %159 = sbr.rel (%p157) target = $region24
      $region23: #{discriminator_forward.6} parent=19 // pred_region
        %p160 = scmp.lt.s32.totalorder %s10, 1
        %s161 = scalar_select %p160, %s10, 1
        %s162 = smul.addr %s161, 4
        %s163 = scalar_lea.vmem %s1, %s162
      $region24: #{discriminator_forward.6} parent=19 // pred_fallthru
        _
      // Predicated region
      $region25: #{discriminator_forward.6} parent=19 // pred_check
        %p164 = pneg %p77
      $region26: #{discriminator_forward.6} parent=19 // pred_check_branch
        %166 = sbr.rel (%p164) target = $region28
      $region27: #{discriminator_forward.6} parent=19 // pred_region
        %p167 = scmp.lt.s32.totalorder %s10, 1
        %s168 = scalar_select %p167, %s10, 1
        %s169 = smul.addr %s168, 8
        %s170 = scalar_lea.vmem %s2, %s169
      $region28: #{discriminator_forward.6} parent=19 // pred_fallthru
        _
      // Predicated region
      $region29: #{discriminator_forward.6} parent=19 // pred_check
        %p171 = pneg %p103
      $region30: #{discriminator_forward.6} parent=19 // pred_check_branch
        %173 = sbr.rel (%p171) target = $region32
      $region31: #{discriminator_forward.6} parent=19 // pred_region
        %p174 = scmp.lt.s32.totalorder %s10, 1
        %s175 = scalar_select %p174, %s10, 1
        %s176 = smul.addr %s175, 8
        %s177 = scalar_lea.vmem %s3, %s176
      $region32: #{discriminator_forward.6} parent=19 // pred_fallthru
        _
    $region20: #{discriminator_forward.6} parent=5 // pred_fallthru
      _
    %p178 = scmp.le.s32.totalorder 1, %s10
    %p179 = scmp.lt.s32.totalorder %s10, 3
    %p180 = pnand %p178, %p179
    %p181 = pneg %p180
    // Predicated region
    $region33: #{discriminator_forward.6} parent=5 // pred_check
      _
    $region34: #{discriminator_forward.6} parent=5 // pred_check_branch
      %183 = sbr.rel (%p180) target = $region36
    $region35: #{discriminator_forward.6} parent=5 // pred_region
      %s184 = ssub.s32 %s10, 1
      %p185 = pneg %p31
      %p186 = pneg %p28
      %p187 = scmp.lt.s32.totalorder %s15, 1
      %s188 = scalar_select %p187, %s15, 1
      %s189 = smul.addr %s188, 4
      %s190 = scalar_lea.vmem %s1, %s189
      %p191 = pneg %p57
      %p192 = pneg %p54
      %p193 = scmp.lt.s32.totalorder %s15, 1
      %s194 = scalar_select %p193, %s15, 1
      %s195 = smul.addr %s194, 8
      %s196 = scalar_lea.vmem %s2, %s195
      %p197 = pneg %p83
      %p198 = pneg %p80
      %p199 = scmp.lt.s32.totalorder %s15, 1
      %s200 = scalar_select %p199, %s15, 1
      %s201 = smul.addr %s200, 8
      %s202 = scalar_lea.vmem %s3, %s201
      %p203 = pneg %p109
      %p204 = pneg %p106
      %p205 = pneg %p135
      %p206 = pneg %p132
      %p207 = scmp.lt.s32.totalorder %s15, 1
      %s208 = scalar_select %p207, %s15, 1
      %s209 = smul.addr %s208, 4
      %s210 = smul.addr %s209, 4
      %s211 = scalar_lea.vmem %s4, %s210
      %p212 = scmp.lt.s32.totalorder %s15, 1
      %s213 = scalar_select %p212, %s15, 1
      %s214 = smul.addr %s213, 4
      %s215 = scalar_lea.vmem %s1, %s214
      %p216 = scmp.lt.s32.totalorder %s15, 1
      %s217 = scalar_select %p216, %s15, 1
      %s218 = smul.addr %s217, 8
      %s219 = scalar_lea.vmem %s2, %s218
      %p220 = scmp.lt.s32.totalorder %s15, 1
      %s221 = scalar_select %p220, %s15, 1
      %s222 = smul.addr %s221, 8
      %s223 = scalar_lea.vmem %s3, %s222
      %p224 = scmp.lt.s32.totalorder %s15, 1
      %s225 = scalar_select %p224, %s15, 1
      %s226 = smul.addr %s225, 4
      %s227 = smul.addr %s226, 4
      %s228 = scalar_lea.vmem %s4, %s227
      %v230 = vld [vmem:[%s215] sm:$0xf]
      %v231 = vld [vmem:[%s0] sm:$0xff]
      %v232 = vld [vmem:[%s0 + $0x8] sm:$0xff]
      %v233 = vld [vmem:[%s0 + $0x10] sm:$0xff]
      %v234 = vld [vmem:[%s0 + $0x18] sm:$0xff]
      %v235 = vld [vmem:[%s0 + $0x20] sm:$0xff]
      %v236 = vld [vmem:[%s0 + $0x28] sm:$0xff]
      %v237 = vld [vmem:[%s0 + $0x30] sm:$0xff]
      %v238 = vld [vmem:[%s0 + $0x38] sm:$0xff]
      %v239 = vld [vmem:[%s0 + $0x40] sm:$0xff]
      %v240 = vld [vmem:[%s0 + $0x48] sm:$0xff]
      %v241 = vld [vmem:[%s0 + $0x50] sm:$0xff]
      %v242 = vld [vmem:[%s0 + $0x58] sm:$0xff]
      %v243 = vld [vmem:[%s0 + $0x60] sm:$0xff]
      %v244 = vld [vmem:[%s0 + $0x68] sm:$0xff]
      %v245 = vld [vmem:[%s0 + $0x70] sm:$0xff]
      %v246 = vld [vmem:[%s0 + $0x78] sm:$0xff]
      %v247 = vld [vmem:[%s0 + $0x80] sm:$0xff]
      %v248 = vld [vmem:[%s0 + $0x88] sm:$0xff]
      %v249 = vld [vmem:[%s0 + $0x90] sm:$0xff]
      %v250 = vld [vmem:[%s0 + $0x98] sm:$0xff]
      %v251 = vld [vmem:[%s0 + $0xa0] sm:$0xff]
      %v252 = vld [vmem:[%s0 + $0xa8] sm:$0xff]
      %v253 = vld [vmem:[%s0 + $0xb0] sm:$0xff]
      %v254 = vld [vmem:[%s0 + $0xb8] sm:$0xff]
      %v255 = vld [vmem:[%s0 + $0xc0] sm:$0xff]
      %v256 = vld [vmem:[%s0 + $0xc8] sm:$0xff]
      %v257 = vld [vmem:[%s0 + $0xd0] sm:$0xff]
      %v258 = vld [vmem:[%s0 + $0xd8] sm:$0xff]
      %v259 = vld [vmem:[%s0 + $0xe0] sm:$0xff]
      %v260 = vld [vmem:[%s0 + $0xe8] sm:$0xff]
      %v261 = vld [vmem:[%s0 + $0xf0] sm:$0xff]
      %v262 = vld [vmem:[%s0 + $0xf8] sm:$0xff]
      %v295 = vunpack.c.l.b16 %v231
      %v296 = vunpack.c.h.b16 %v231
      %v297 = vunpack.c.l.b16 %v232
      %v298 = vunpack.c.h.b16 %v232
      %v299 = vunpack.c.l.b16 %v233
      %v300 = vunpack.c.h.b16 %v233
      %v301 = vunpack.c.l.b16 %v234
      %v302 = vunpack.c.h.b16 %v234
      %v303 = vunpack.c.l.b16 %v235
      %v304 = vunpack.c.h.b16 %v235
      %v305 = vunpack.c.l.b16 %v236
      %v306 = vunpack.c.h.b16 %v236
      %v307 = vunpack.c.l.b16 %v237
      %v308 = vunpack.c.h.b16 %v237
      %v309 = vunpack.c.l.b16 %v238
      %v310 = vunpack.c.h.b16 %v238
      %v311 = vunpack.c.l.b16 %v239
      %v312 = vunpack.c.h.b16 %v239
      %v313 = vunpack.c.l.b16 %v240
      %v314 = vunpack.c.h.b16 %v240
      %v315 = vunpack.c.l.b16 %v241
      %v316 = vunpack.c.h.b16 %v241
      %v317 = vunpack.c.l.b16 %v242
      %v318 = vunpack.c.h.b16 %v242
      %v319 = vunpack.c.l.b16 %v243
      %v320 = vunpack.c.h.b16 %v243
      %v321 = vunpack.c.l.b16 %v244
      %v322 = vunpack.c.h.b16 %v244
      %v323 = vunpack.c.l.b16 %v245
      %v324 = vunpack.c.h.b16 %v245
      %v325 = vunpack.c.l.b16 %v246
      %v326 = vunpack.c.h.b16 %v246
      %v327 = vunpack.c.l.b16 %v247
      %v328 = vunpack.c.h.b16 %v247
      %v329 = vunpack.c.l.b16 %v248
      %v330 = vunpack.c.h.b16 %v248
      %v331 = vunpack.c.l.b16 %v249
      %v332 = vunpack.c.h.b16 %v249
      %v333 = vunpack.c.l.b16 %v250
      %v334 = vunpack.c.h.b16 %v250
      %v335 = vunpack.c.l.b16 %v251
      %v336 = vunpack.c.h.b16 %v251
      %v337 = vunpack.c.l.b16 %v252
      %v338 = vunpack.c.h.b16 %v252
      %v339 = vunpack.c.l.b16 %v253
      %v340 = vunpack.c.h.b16 %v253
      %v341 = vunpack.c.l.b16 %v254
      %v342 = vunpack.c.h.b16 %v254
      %v343 = vunpack.c.l.b16 %v255
      %v344 = vunpack.c.h.b16 %v255
      %v345 = vunpack.c.l.b16 %v256
      %v346 = vunpack.c.h.b16 %v256
      %v347 = vunpack.c.l.b16 %v257
      %v348 = vunpack.c.h.b16 %v257
      %v349 = vunpack.c.l.b16 %v258
      %v350 = vunpack.c.h.b16 %v258
      %v351 = vunpack.c.l.b16 %v259
      %v352 = vunpack.c.h.b16 %v259
      %v353 = vunpack.c.l.b16 %v260
      %v354 = vunpack.c.h.b16 %v260
      %v355 = vunpack.c.l.b16 %v261
      %v356 = vunpack.c.h.b16 %v261
      %v357 = vunpack.c.l.b16 %v262
      %v358 = vunpack.c.h.b16 %v262
      %v359 = vpack.c.b16 %v299, %v295
      %v360 = vpack.c.b16 %v300, %v296
      %v361 = vpack.c.b16 %v301, %v297
      %v362 = vpack.c.b16 %v302, %v298
      %v363 = vpack.c.b16 %v307, %v303
      %v364 = vpack.c.b16 %v308, %v304
      %v365 = vpack.c.b16 %v309, %v305
      %v366 = vpack.c.b16 %v310, %v306
      %v367 = vpack.c.b16 %v315, %v311
      %v368 = vpack.c.b16 %v316, %v312
      %v369 = vpack.c.b16 %v317, %v313
      %v370 = vpack.c.b16 %v318, %v314
      %v371 = vpack.c.b16 %v323, %v319
      %v372 = vpack.c.b16 %v324, %v320
      %v373 = vpack.c.b16 %v325, %v321
      %v374 = vpack.c.b16 %v326, %v322
      %v375 = vpack.c.b16 %v331, %v327
      %v376 = vpack.c.b16 %v332, %v328
      %v377 = vpack.c.b16 %v333, %v329
      %v378 = vpack.c.b16 %v334, %v330
      %v379 = vpack.c.b16 %v339, %v335
      %v380 = vpack.c.b16 %v340, %v336
      %v381 = vpack.c.b16 %v341, %v337
      %v382 = vpack.c.b16 %v342, %v338
      %v383 = vpack.c.b16 %v347, %v343
      %v384 = vpack.c.b16 %v348, %v344
      %v385 = vpack.c.b16 %v349, %v345
      %v386 = vpack.c.b16 %v350, %v346
      %v387 = vpack.c.b16 %v355, %v351
      %v388 = vpack.c.b16 %v356, %v352
      %v389 = vpack.c.b16 %v357, %v353
      %v390 = vpack.c.b16 %v358, %v354
      %423 = vmatprep.subr.bf16.mxu0 %v388
      %424 = vmatpush1.bf16.msra.mxu0 %v387
      %425 = vmatprep.subr.bf16.mxu0 %v384
      %426 = vmatpush1.bf16.msra.mxu0 %v383
      %427 = vmatprep.subr.bf16.mxu0 %v380
      %428 = vmatpush1.bf16.msra.mxu0 %v379
      %429 = vmatprep.subr.bf16.mxu0 %v376
      %430 = vmatpush1.bf16.msra.mxu0 %v375
      %431 = vmatprep.subr.bf16.mxu0 %v372
      %432 = vmatpush1.bf16.msra.mxu0 %v371
      %433 = vmatprep.subr.bf16.mxu0 %v368
      %434 = vmatpush1.bf16.msra.mxu0 %v367
      %435 = vmatprep.subr.bf16.mxu0 %v364
      %436 = vmatpush1.bf16.msra.mxu0 %v363
      %437 = vmatprep.subr.bf16.mxu0 %v360
      %438 = vmatpush1.bf16.msra.mxu0 %v359
      %439 = vmatprep.subr.bf16.mxu0 0
      %440 = vmatpush2.bf16.msra.mxu0 0
      %441 = vmatprep.subr.bf16.mxu0 0
      %442 = vmatpush2.bf16.msra.mxu0 0
      %443 = vmatprep.subr.bf16.mxu0 0
      %444 = vmatpush2.bf16.msra.mxu0 0
      %445 = vmatprep.subr.bf16.mxu0 0
      %446 = vmatpush2.bf16.msra.mxu0 0
      %447 = vmatprep.subr.bf16.mxu0 0
      %448 = vmatpush2.bf16.msra.mxu0 0
      %449 = vmatprep.subr.bf16.mxu0 0
      %450 = vmatpush2.bf16.msra.mxu0 0
      %451 = vmatprep.subr.bf16.mxu0 0
      %452 = vmatpush2.bf16.msra.mxu0 0
      %453 = vmatprep.subr.bf16.mxu0 0
      %454 = vmatpush2.bf16.msra.mxu0 0
      %455 = vmatprep.mubr.bf16.mxu0 0
      %456 = vmatmul.mubr.bf16.gmra.mxu0 %v230
      %v457 = vpop.f32.mrf.mxu0
      %v458 = vadd.f32 0.0, %v457
      %v459 = vpop.f32.mrf.mxu0
      %v460 = vadd.f32 0.0, %v459
      %v461 = vpop.f32.mrf.mxu0
      %v462 = vpop.f32.mrf.mxu0
      %463 = vdwg.mxu0
      %464 = vmatprep.subr.bf16.mxu0 %v390
      %465 = vmatpush1.bf16.msra.mxu0 %v389
      %466 = vmatprep.subr.bf16.mxu0 %v386
      %467 = vmatpush1.bf16.msra.mxu0 %v385
      %468 = vmatprep.subr.bf16.mxu0 %v382
      %469 = vmatpush1.bf16.msra.mxu0 %v381
      %470 = vmatprep.subr.bf16.mxu0 %v378
      %471 = vmatpush1.bf16.msra.mxu0 %v377
      %472 = vmatprep.subr.bf16.mxu0 %v374
      %473 = vmatpush1.bf16.msra.mxu0 %v373
      %474 = vmatprep.subr.bf16.mxu0 %v370
      %475 = vmatpush1.bf16.msra.mxu0 %v369
      %476 = vmatprep.subr.bf16.mxu0 %v366
      %477 = vmatpush1.bf16.msra.mxu0 %v365
      %478 = vmatprep.subr.bf16.mxu0 %v362
      %479 = vmatpush1.bf16.msra.mxu0 %v361
      %480 = vmatprep.subr.bf16.mxu0 0
      %481 = vmatpush2.bf16.msra.mxu0 0
      %482 = vmatprep.subr.bf16.mxu0 0
      %483 = vmatpush2.bf16.msra.mxu0 0
      %484 = vmatprep.subr.bf16.mxu0 0
      %485 = vmatpush2.bf16.msra.mxu0 0
      %486 = vmatprep.subr.bf16.mxu0 0
      %487 = vmatpush2.bf16.msra.mxu0 0
      %488 = vmatprep.subr.bf16.mxu0 0
      %489 = vmatpush2.bf16.msra.mxu0 0
      %490 = vmatprep.subr.bf16.mxu0 0
      %491 = vmatpush2.bf16.msra.mxu0 0
      %492 = vmatprep.subr.bf16.mxu0 0
      %493 = vmatpush2.bf16.msra.mxu0 0
      %494 = vmatprep.subr.bf16.mxu0 0
      %495 = vmatpush2.bf16.msra.mxu0 0
      %496 = vmatprep.mubr.bf16.mxu0 0
      %497 = vmatmul.mubr.bf16.gmra.mxu0 %v230
      %v498 = vpop.f32.mrf.mxu0
      %v499 = vadd.f32 0.0, %v498
      %v500 = vpop.f32.mrf.mxu0
      %v501 = vadd.f32 0.0, %v500
      %v502 = vpop.f32.mrf.mxu0
      %v503 = vpop.f32.mrf.mxu0
      %504 = vdwg.mxu0
      %v505 = vadd.f32 %v458, %v460
      %v506 = vadd.f32 %v505, %v499
      %v507 = vadd.f32 %v506, %v501
      %508 = vadd.xlane.f32.xlu0 %v507
      %v509 = vpop.xlane.xlu0 %508
      %v510 = vmul.f32 %v509, 0.001953125
      %v511 = vsub.f32 %v458, %v510
      %v512 = vsub.f32 %v460, %v510
      %v513 = vsub.f32 %v499, %v510
      %v514 = vsub.f32 %v501, %v510
      %v515 = vmul.f32 %v511, %v511
      %v516 = vmul.f32 %v512, %v512
      %v517 = vmul.f32 %v513, %v513
      %v518 = vmul.f32 %v514, %v514
      %v519 = vadd.f32 %v515, %v516
      %v520 = vadd.f32 %v519, %v517
      %v521 = vadd.f32 %v520, %v518
      %522 = vadd.xlane.f32.xlu0 %v521
      %v523 = vpop.xlane.xlu0 %522
      %v524 = vmul.f32 %v523, 0.001953125
      %v525 = vld [vmem:[%s219] sm:$0xff]
      %v526 = vadd.f32 %v524, 1e-05
      %v527 = vrsqrt.pop %v526
      %v528 = vmul.f32 %v525, %v527
      %530 = vset.pattern.permute.xlu0 0
      %531 = vperm.xlu0 %530, %v528
      %v532 = vpop.permute.xlu0 %531
      %v534 = vmul.f32 %v511, %v532
      %v535 = vmul.f32 %v512, %v532
      %v536 = vmul.f32 %v513, %v532
      %v537 = vmul.f32 %v514, %v532
      %v538 = vld [vmem:[%s223] sm:$0xff]
      %540 = vset.pattern.permute.xlu0 0
      %541 = vperm.xlu0 %540, %v538
      %v542 = vpop.permute.xlu0 %541
      %v544 = vadd.f32 %v534, %v542
      %v545 = vadd.f32 %v535, %v542
      %v546 = vadd.f32 %v536, %v542
      %v547 = vadd.f32 %v537, %v542
      %vm548 = vcmp.gt.f32.partialorder %v544, 0.0
      %vm549 = vcmp.gt.f32.partialorder %v545, 0.0
      %vm550 = vcmp.gt.f32.partialorder %v546, 0.0
      %vm551 = vcmp.gt.f32.partialorder %v547, 0.0
      %v552 = vmul.f32 %v544, 0.2
      %v553 = vmul.f32 %v545, 0.2
      %v554 = vmul.f32 %v546, 0.2
      %v555 = vmul.f32 %v547, 0.2
      %v556 = vsel %vm548, %v544, %v552
      %v557 = vsel %vm549, %v545, %v553
      %v558 = vsel %vm550, %v546, %v554
      %v559 = vsel %vm551, %v547, %v555
      %v560 = vpack.c.bf16 %v556, %v556
      %v561 = vpack.c.bf16 %v557, %v557
      %v562 = vpack.c.bf16 %v558, %v558
      %v563 = vpack.c.bf16 %v559, %v559
      %v568 = vunpack.c.l.b16 %v560
      %v569 = vunpack.c.l.b16 %v561
      %v570 = vunpack.c.l.b16 %v562
      %v571 = vunpack.c.l.b16 %v563
      %v572 = vpack.c.b16 %v569, %v568
      %v573 = vpack.c.b16 %v571, %v570
      %576 = vst [vmem:[%s228] sm:$0xff] %v572
      %577 = vst [vmem:[%s228 + $0x8] sm:$0xff] %v573
      %p578 = scmp.lt.s32.totalorder %s15, 1
      %s579 = scalar_select %p578, %s15, 1
      %s580 = smul.addr %s579, 4
      %s581 = smul.addr %s580, 4
      %s582 = scalar_lea.vmem %s4, %s581
      // Predicated region
      $region37: #{discriminator_forward.6} parent=35 // pred_check
        %p583 = pneg %p132
      $region38: #{discriminator_forward.6} parent=35 // pred_check_branch
        %585 = sbr.rel (%p583) target = $region40
      $region39: #{discriminator_forward.6} parent=35 // pred_region
        _
      $region40: #{discriminator_forward.6} parent=35 // pred_fallthru
        _
    $region36: #{discriminator_forward.6} parent=5 // pred_fallthru
      _
    %p586 = scmp.le.s32.totalorder 2, %s10
    // Predicated region
    $region41: #{discriminator_forward.6} parent=5 // pred_check
      %p587 = pneg %p586
    $region42: #{discriminator_forward.6} parent=5 // pred_check_branch
      %589 = sbr.rel (%p587) target = $region44
    $region43: #{discriminator_forward.6} parent=5 // pred_region
      %s590 = ssub.s32 %s10, 2
      // Predicated region
      $region45: #{discriminator_forward.6} parent=43 // pred_check
        %p591 = pneg %p138
      $region46: #{discriminator_forward.6} parent=43 // pred_check_branch
        %593 = sbr.rel (%p591) target = $region48
      $region47: #{discriminator_forward.6} parent=43 // pred_region
        %p594 = scmp.lt.s32.totalorder %s16, 1
        %s595 = scalar_select %p594, %s16, 1
        %s596 = smul.addr %s595, 4
        %s597 = smul.addr %s596, 4
        %s598 = scalar_lea.vmem %s4, %s597
      $region48: #{discriminator_forward.6} parent=43 // pred_fallthru
        _
    $region44: #{discriminator_forward.6} parent=5 // pred_fallthru
      _
  $region6: #{discriminator_forward.6} parent=0 // loop_footer
    %s14 = sadd.s32 1, %s10
  $region7: #{discriminator_forward.6} parent=0 // loop_footer_branch
    %9 = sbr.rel target = $region3
  $region8: #{discriminator_forward.6} parent=0 // loop_exit
    _

// kernel: discriminator_forward.7
$region0: #{discriminator_forward.7}
  #allocation0 [shape = 'u32[]', space=smem, size = 0x4, offset = 0x4, fixed_abs, tag = 'smem constant byte address 0x4 - core index']
  #allocation1 [shape = 'u32[144,128]{1,0:T(1,128)}', space=vmem, size = 0x12000, scoped, tag = 'internal scratch']
  %s0 = inlined_call_operand.vmem [shape: bf16[256,128], index: 0, kind: input, shape index: {}]
  %s1 = inlined_call_operand.vmem [shape: bf16[32,256], index: 1, kind: input, shape index: {}]
  %s2 = inlined_call_operand.vmem [shape: f32[32,1], index: 2, kind: input, shape index: {}]
  %s3 = inlined_call_operand.vmem [shape: f32[32,1], index: 3, kind: input, shape index: {}]
  %s4 = inlined_call_operand.vmem [shape: bf16[32,128], index: 4, kind: output, shape index: {}]
  %s5 = sld [smem:[#allocation0]]
  $region49: #{discriminator_forward.7} parent=0
    _
  %s7 = ssub.s32 1, %s5
  %s8 = scalar_select 0, %s7, %s5
  loop: start=0, step=1, limit=4
  $region2: #{discriminator_forward.7} parent=0 // loop_pre_header
    _
  $region3: #{discriminator_forward.7} parent=0 // loop_header
    %s10 = sphi 0, %s14
    %p11 = scmp.ge.s32.totalorder %s10, 4
    %s18 = sphi 0, %s18
    %s20 = sphi 0, %s18
    %s21 = sphi 0, %s20
    %s35 = sphi 0, %s21
    %s41 = sphi 0, %s43
    %s44 = sphi 0, %s41
    %s45 = sphi 0, %s44
    %s61 = sphi 0, %s45
    %s67 = sphi 0, %s69
    %s70 = sphi 0, %s67
    %s71 = sphi 0, %s70
    %s87 = sphi 0, %s71
    %s93 = sphi 0, %s95
    %s96 = sphi 0, %s93
    %s97 = sphi 0, %s96
    %s113 = sphi 0, %s97
    %s119 = sphi 0, %s121
    %s122 = sphi 0, %s119
    %s123 = sphi 0, %s122
    %s139 = sphi 0, %s123
  $region4: #{discriminator_forward.7} parent=0 // loop_header_branch
    %13 = sbr.rel (%p11) target = $region8
  $region5: #{discriminator_forward.7} parent=0 // loop_body
    %s15 = ssub.s32 %s10, 1
    %s16 = ssub.s32 %s10, 2
    %s17 = sadd.s32 %s10, 1
    %s19 = sadd.s32 %s18, 1
    %p22 = scmp.eq.s32.totalorder %s10, 1
    %p23 = scmp.ne.s32.totalorder %s18, %s20
    %p24 = scmp.eq.s32.totalorder %s10, 0
    %p25 = por %p23, %p24
    %p26 = scmp.ne.s32.totalorder %s18, %s20
    %p27 = scmp.eq.s32.totalorder %s15, 1
    %p28 = por %p26, %p27
    %p29 = scmp.ne.s32.totalorder %s20, %s21
    %p30 = scmp.eq.s32.totalorder %s15, 0
    %p31 = por %p29, %p30
    %p32 = scmp.ne.s32.totalorder %s20, %s21
    %p33 = scmp.eq.s32.totalorder %s16, 1
    %p34 = por %p32, %p33
    %p36 = scmp.ne.s32.totalorder %s21, %s35
    %p37 = scmp.eq.s32.totalorder %s16, 0
    %p38 = por %p36, %p37
    %s39 = ssub.s32 %s10, %s17
    %p40 = scmp.eq.s32.totalorder %s39, 0
    %s42 = sadd.s32 %s41, 1
    %s43 = scalar_select %p40, %s41, %s42
    %p46 = pneg %p40
    %p47 = scmp.eq.s32.totalorder %s10, 1
    %p48 = por %p46, %p47
    %p49 = scmp.ne.s32.totalorder %s41, %s44
    %p50 = scmp.eq.s32.totalorder %s10, 0
    %p51 = por %p49, %p50
    %p52 = scmp.ne.s32.totalorder %s41, %s44
    %p53 = scmp.eq.s32.totalorder %s15, 1
    %p54 = por %p52, %p53
    %p55 = scmp.ne.s32.totalorder %s44, %s45
    %p56 = scmp.eq.s32.totalorder %s15, 0
    %p57 = por %p55, %p56
    %p58 = scmp.ne.s32.totalorder %s44, %s45
    %p59 = scmp.eq.s32.totalorder %s16, 1
    %p60 = por %p58, %p59
    %p62 = scmp.ne.s32.totalorder %s45, %s61
    %p63 = scmp.eq.s32.totalorder %s16, 0
    %p64 = por %p62, %p63
    %s65 = ssub.s32 %s10, %s17
    %p66 = scmp.eq.s32.totalorder %s65, 0
    %s68 = sadd.s32 %s67, 1
    %s69 = scalar_select %p66, %s67, %s68
    %p72 = pneg %p66
    %p73 = scmp.eq.s32.totalorder %s10, 1
    %p74 = por %p72, %p73
    %p75 = scmp.ne.s32.totalorder %s67, %s70
    %p76 = scmp.eq.s32.totalorder %s10, 0
    %p77 = por %p75, %p76
    %p78 = scmp.ne.s32.totalorder %s67, %s70
    %p79 = scmp.eq.s32.totalorder %s15, 1
    %p80 = por %p78, %p79
    %p81 = scmp.ne.s32.totalorder %s70, %s71
    %p82 = scmp.eq.s32.totalorder %s15, 0
    %p83 = por %p81, %p82
    %p84 = scmp.ne.s32.totalorder %s70, %s71
    %p85 = scmp.eq.s32.totalorder %s16, 1
    %p86 = por %p84, %p85
    %p88 = scmp.ne.s32.totalorder %s71, %s87
    %p89 = scmp.eq.s32.totalorder %s16, 0
    %p90 = por %p88, %p89
    %s91 = ssub.s32 %s10, %s17
    %p92 = scmp.eq.s32.totalorder %s91, 0
    %s94 = sadd.s32 %s93, 1
    %s95 = scalar_select %p92, %s93, %s94
    %p98 = pneg %p92
    %p99 = scmp.eq.s32.totalorder %s10, 1
    %p100 = por %p98, %p99
    %p101 = scmp.ne.s32.totalorder %s93, %s96
    %p102 = scmp.eq.s32.totalorder %s10, 0
    %p103 = por %p101, %p102
    %p104 = scmp.ne.s32.totalorder %s93, %s96
    %p105 = scmp.eq.s32.totalorder %s15, 1
    %p106 = por %p104, %p105
    %p107 = scmp.ne.s32.totalorder %s96, %s97
    %p108 = scmp.eq.s32.totalorder %s15, 0
    %p109 = por %p107, %p108
    %p110 = scmp.ne.s32.totalorder %s96, %s97
    %p111 = scmp.eq.s32.totalorder %s16, 1
    %p112 = por %p110, %p111
    %p114 = scmp.ne.s32.totalorder %s97, %s113
    %p115 = scmp.eq.s32.totalorder %s16, 0
    %p116 = por %p114, %p115
    %s117 = ssub.s32 %s10, %s17
    %p118 = scmp.eq.s32.totalorder %s117, 0
    %s120 = sadd.s32 %s119, 1
    %s121 = scalar_select %p118, %s119, %s120
    %p124 = pneg %p118
    %p125 = scmp.eq.s32.totalorder %s10, 1
    %p126 = por %p124, %p125
    %p127 = scmp.ne.s32.totalorder %s119, %s122
    %p128 = scmp.eq.s32.totalorder %s10, 0
    %p129 = por %p127, %p128
    %p130 = scmp.ne.s32.totalorder %s119, %s122
    %p131 = scmp.eq.s32.totalorder %s15, 1
    %p132 = por %p130, %p131
    %p133 = scmp.ne.s32.totalorder %s122, %s123
    %p134 = scmp.eq.s32.totalorder %s15, 0
    %p135 = por %p133, %p134
    %p136 = scmp.ne.s32.totalorder %s122, %s123
    %p137 = scmp.eq.s32.totalorder %s16, 1
    %p138 = por %p136, %p137
    %p140 = scmp.ne.s32.totalorder %s123, %s139
    %p141 = scmp.eq.s32.totalorder %s16, 0
    %p142 = por %p140, %p141
    %p143 = scmp.le.s32.totalorder 1, %s10
    %p144 = scmp.lt.s32.totalorder %s10, 3
    %p145 = pnand %p143, %p144
    %p146 = pneg %p145
    // Predicated region
    $region9: #{discriminator_forward.7} parent=5 // pred_check
      _
    $region10: #{discriminator_forward.7} parent=5 // pred_check_branch
      %148 = sbr.rel (%p145) target = $region12
    $region11: #{discriminator_forward.7} parent=5 // pred_region
      %s149 = ssub.s32 %s10, 1
      // Predicated region
      $region13: #{discriminator_forward.7} parent=11 // pred_check
        %p150 = pneg %p31
      $region14: #{discriminator_forward.7} parent=11 // pred_check_branch
        %152 = sbr.rel (%p150) target = $region16
      $region15: #{discriminator_forward.7} parent=11 // pred_region
        _
      $region16: #{discriminator_forward.7} parent=11 // pred_fallthru
        _
    $region12: #{discriminator_forward.7} parent=5 // pred_fallthru
      _
    %p153 = scmp.lt.s32.totalorder %s10, 2
    // Predicated region
    $region17: #{discriminator_forward.7} parent=5 // pred_check
      %p154 = pneg %p153
    $region18: #{discriminator_forward.7} parent=5 // pred_check_branch
      %156 = sbr.rel (%p154) target = $region20
    $region19: #{discriminator_forward.7} parent=5 // pred_region
      // Predicated region
      $region21: #{discriminator_forward.7} parent=19 // pred_check
        %p157 = pneg %p51
      $region22: #{discriminator_forward.7} parent=19 // pred_check_branch
        %159 = sbr.rel (%p157) target = $region24
      $region23: #{discriminator_forward.7} parent=19 // pred_region
        %s160 = smul.u32 2, %s10
        %p161 = scmp.lt.s32.totalorder %s160, 3
        %s162 = scalar_select %p161, %s160, 3
        %s163 = smul.addr %s162, 2
        %s164 = smul.addr %s163, 4
        %s165 = scalar_lea.vmem %s1, %s164
        %s166 = smul.u32 2, %s10
      $region24: #{discriminator_forward.7} parent=19 // pred_fallthru
        _
      // Predicated region
      $region25: #{discriminator_forward.7} parent=19 // pred_check
        %p167 = pneg %p77
      $region26: #{discriminator_forward.7} parent=19 // pred_check_branch
        %169 = sbr.rel (%p167) target = $region28
      $region27: #{discriminator_forward.7} parent=19 // pred_region
        %s170 = smul.u32 2, %s10
        %p171 = scmp.lt.s32.totalorder %s170, 3
        %s172 = scalar_select %p171, %s170, 3
        %s173 = smul.addr %s172, 8
        %s174 = scalar_lea.vmem %s2, %s173
        %s175 = smul.u32 2, %s10
      $region28: #{discriminator_forward.7} parent=19 // pred_fallthru
        _
      // Predicated region
      $region29: #{discriminator_forward.7} parent=19 // pred_check
        %p176 = pneg %p103
      $region30: #{discriminator_forward.7} parent=19 // pred_check_branch
        %178 = sbr.rel (%p176) target = $region32
      $region31: #{discriminator_forward.7} parent=19 // pred_region
        %s179 = smul.u32 2, %s10
        %p180 = scmp.lt.s32.totalorder %s179, 3
        %s181 = scalar_select %p180, %s179, 3
        %s182 = smul.addr %s181, 8
        %s183 = scalar_lea.vmem %s3, %s182
        %s184 = smul.u32 2, %s10
      $region32: #{discriminator_forward.7} parent=19 // pred_fallthru
        _
    $region20: #{discriminator_forward.7} parent=5 // pred_fallthru
      _
    %p185 = scmp.le.s32.totalorder 1, %s10
    %p186 = scmp.lt.s32.totalorder %s10, 3
    %p187 = pnand %p185, %p186
    %p188 = pneg %p187
    // Predicated region
    $region33: #{discriminator_forward.7} parent=5 // pred_check
      _
    $region34: #{discriminator_forward.7} parent=5 // pred_check_branch
      %190 = sbr.rel (%p187) target = $region36
    $region35: #{discriminator_forward.7} parent=5 // pred_region
      %s191 = ssub.s32 %s10, 1
      %p192 = pneg %p31
      %p193 = pneg %p28
      %s194 = smul.u32 2, %s15
      %p195 = scmp.lt.s32.totalorder %s194, 3
      %s196 = scalar_select %p195, %s194, 3
      %s197 = smul.addr %s196, 2
      %s198 = smul.addr %s197, 4
      %s199 = scalar_lea.vmem %s1, %s198
      %p200 = pneg %p57
      %p201 = pneg %p54
      %s202 = smul.u32 2, %s15
      %p203 = scmp.lt.s32.totalorder %s202, 3
      %s204 = scalar_select %p203, %s202, 3
      %s205 = smul.addr %s204, 8
      %s206 = scalar_lea.vmem %s2, %s205
      %p207 = pneg %p83
      %p208 = pneg %p80
      %s209 = smul.u32 2, %s15
      %p210 = scmp.lt.s32.totalorder %s209, 3
      %s211 = scalar_select %p210, %s209, 3
      %s212 = smul.addr %s211, 8
      %s213 = scalar_lea.vmem %s3, %s212
      %p214 = pneg %p109
      %p215 = pneg %p106
      %p216 = pneg %p135
      %p217 = pneg %p132
      %s218 = smul.u32 2, %s15
      %p219 = scmp.lt.s32.totalorder %s218, 3
      %s220 = scalar_select %p219, %s218, 3
      %s221 = smul.addr %s220, 4
      %s222 = scalar_lea.vmem %s4, %s221
      %s223 = smul.u32 2, %s15
      %p224 = scmp.lt.s32.totalorder %s223, 3
      %s225 = scalar_select %p224, %s223, 3
      %s226 = smul.addr %s225, 2
      %s227 = smul.addr %s226, 4
      %s228 = scalar_lea.vmem %s1, %s227
      %s229 = smul.u32 2, %s15
      %s230 = smul.u32 2, %s15
      %p231 = scmp.lt.s32.totalorder %s230, 3
      %s232 = scalar_select %p231, %s230, 3
      %s233 = smul.addr %s232, 8
      %s234 = scalar_lea.vmem %s2, %s233
      %s235 = smul.u32 2, %s15
      %s236 = smul.u32 2, %s15
      %p237 = scmp.lt.s32.totalorder %s236, 3
      %s238 = scalar_select %p237, %s236, 3
      %s239 = smul.addr %s238, 8
      %s240 = scalar_lea.vmem %s3, %s239
      %s241 = smul.u32 2, %s15
      %s242 = smul.u32 2, %s15
      %p243 = scmp.lt.s32.totalorder %s242, 3
      %s244 = scalar_select %p243, %s242, 3
      %s245 = smul.addr %s244, 4
      %s246 = scalar_lea.vmem %s4, %s245
      %s247 = smul.u32 2, %s15
      %v249 = vld [vmem:[%s228] sm:$0xff]
      %v250 = vld [vmem:[%s228 + $0x8] sm:$0xff]
      %v251 = vld [vmem:[%s0] sm:$0xf]
      %v252 = vld [vmem:[%s0 + $0x4] sm:$0xf]
      %v253 = vld [vmem:[%s0 + $0x8] sm:$0xf]
      %v254 = vld [vmem:[%s0 + $0xc] sm:$0xf]
      %v255 = vld [vmem:[%s0 + $0x10] sm:$0xf]
      %v256 = vld [vmem:[%s0 + $0x14] sm:$0xf]
      %v257 = vld [vmem:[%s0 + $0x18] sm:$0xf]
      %v258 = vld [vmem:[%s0 + $0x1c] sm:$0xf]
      %v259 = vld [vmem:[%s0 + $0x20] sm:$0xf]
      %v260 = vld [vmem:[%s0 + $0x24] sm:$0xf]
      %v261 = vld [vmem:[%s0 + $0x28] sm:$0xf]
      %v262 = vld [vmem:[%s0 + $0x2c] sm:$0xf]
      %v263 = vld [vmem:[%s0 + $0x30] sm:$0xf]
      %v264 = vld [vmem:[%s0 + $0x34] sm:$0xf]
      %v265 = vld [vmem:[%s0 + $0x38] sm:$0xf]
      %v266 = vld [vmem:[%s0 + $0x3c] sm:$0xf]
      %v267 = vld [vmem:[%s0 + $0x40] sm:$0xf]
      %v268 = vld [vmem:[%s0 + $0x44] sm:$0xf]
      %v269 = vld [vmem:[%s0 + $0x48] sm:$0xf]
      %v270 = vld [vmem:[%s0 + $0x4c] sm:$0xf]
      %v271 = vld [vmem:[%s0 + $0x50] sm:$0xf]
      %v272 = vld [vmem:[%s0 + $0x54] sm:$0xf]
      %v273 = vld [vmem:[%s0 + $0x58] sm:$0xf]
      %v274 = vld [vmem:[%s0 + $0x5c] sm:$0xf]
      %v275 = vld [vmem:[%s0 + $0x60] sm:$0xf]
      %v276 = vld [vmem:[%s0 + $0x64] sm:$0xf]
      %v277 = vld [vmem:[%s0 + $0x68] sm:$0xf]
      %v278 = vld [vmem:[%s0 + $0x6c] sm:$0xf]
      %v279 = vld [vmem:[%s0 + $0x70] sm:$0xf]
      %v280 = vld [vmem:[%s0 + $0x74] sm:$0xf]
      %v281 = vld [vmem:[%s0 + $0x78] sm:$0xf]
      %v282 = vld [vmem:[%s0 + $0x7c] sm:$0xf]
      %v285 = vunpack.c.l.b16 %v249
      %v286 = vunpack.c.h.b16 %v249
      %v287 = vunpack.c.l.b16 %v250
      %v288 = vunpack.c.h.b16 %v250
      %v289 = vpack.c.b16 %v287, %v285
      %v290 = vpack.c.b16 %v288, %v286
      %v325 = vunpack.c.l.b16 %v251
      %v326 = vunpack.c.l.b16 %v252
      %v327 = vunpack.c.l.b16 %v253
      %v328 = vunpack.c.l.b16 %v254
      %v329 = vunpack.c.l.b16 %v255
      %v330 = vunpack.c.l.b16 %v256
      %v331 = vunpack.c.l.b16 %v257
      %v332 = vunpack.c.l.b16 %v258
      %v333 = vunpack.c.l.b16 %v259
      %v334 = vunpack.c.l.b16 %v260
      %v335 = vunpack.c.l.b16 %v261
      %v336 = vunpack.c.l.b16 %v262
      %v337 = vunpack.c.l.b16 %v263
      %v338 = vunpack.c.l.b16 %v264
      %v339 = vunpack.c.l.b16 %v265
      %v340 = vunpack.c.l.b16 %v266
      %v341 = vunpack.c.l.b16 %v267
      %v342 = vunpack.c.l.b16 %v268
      %v343 = vunpack.c.l.b16 %v269
      %v344 = vunpack.c.l.b16 %v270
      %v345 = vunpack.c.l.b16 %v271
      %v346 = vunpack.c.l.b16 %v272
      %v347 = vunpack.c.l.b16 %v273
      %v348 = vunpack.c.l.b16 %v274
      %v349 = vunpack.c.l.b16 %v275
      %v350 = vunpack.c.l.b16 %v276
      %v351 = vunpack.c.l.b16 %v277
      %v352 = vunpack.c.l.b16 %v278
      %v353 = vunpack.c.l.b16 %v279
      %v354 = vunpack.c.l.b16 %v280
      %v355 = vunpack.c.l.b16 %v281
      %v356 = vunpack.c.l.b16 %v282
      %v357 = vpack.c.b16 %v326, %v325
      %v358 = vpack.c.b16 %v328, %v327
      %v359 = vpack.c.b16 %v330, %v329
      %v360 = vpack.c.b16 %v332, %v331
      %v361 = vpack.c.b16 %v334, %v333
      %v362 = vpack.c.b16 %v336, %v335
      %v363 = vpack.c.b16 %v338, %v337
      %v364 = vpack.c.b16 %v340, %v339
      %v365 = vpack.c.b16 %v342, %v341
      %v366 = vpack.c.b16 %v344, %v343
      %v367 = vpack.c.b16 %v346, %v345
      %v368 = vpack.c.b16 %v348, %v347
      %v369 = vpack.c.b16 %v350, %v349
      %v370 = vpack.c.b16 %v352, %v351
      %v371 = vpack.c.b16 %v354, %v353
      %v372 = vpack.c.b16 %v356, %v355
      %389 = vmatprep.subr.bf16.mxu0 0
      %390 = vmatpush1.bf16.msra.mxu0 %v364
      %391 = vmatprep.subr.bf16.mxu0 0
      %392 = vmatpush1.bf16.msra.mxu0 %v363
      %393 = vmatprep.subr.bf16.mxu0 0
      %394 = vmatpush1.bf16.msra.mxu0 %v362
      %395 = vmatprep.subr.bf16.mxu0 0
      %396 = vmatpush1.bf16.msra.mxu0 %v361
      %397 = vmatprep.subr.bf16.mxu0 0
      %398 = vmatpush1.bf16.msra.mxu0 %v360
      %399 = vmatprep.subr.bf16.mxu0 0
      %400 = vmatpush1.bf16.msra.mxu0 %v359
      %401 = vmatprep.subr.bf16.mxu0 0
      %402 = vmatpush1.bf16.msra.mxu0 %v358
      %403 = vmatprep.subr.bf16.mxu0 0
      %404 = vmatpush1.bf16.msra.mxu0 %v357
      %405 = vmatprep.subr.bf16.mxu0 0
      %406 = vmatpush2.bf16.msra.mxu0 %v372
      %407 = vmatprep.subr.bf16.mxu0 0
      %408 = vmatpush2.bf16.msra.mxu0 %v371
      %409 = vmatprep.subr.bf16.mxu0 0
      %410 = vmatpush2.bf16.msra.mxu0 %v370
      %411 = vmatprep.subr.bf16.mxu0 0
      %412 = vmatpush2.bf16.msra.mxu0 %v369
      %413 = vmatprep.subr.bf16.mxu0 0
      %414 = vmatpush2.bf16.msra.mxu0 %v368
      %415 = vmatprep.subr.bf16.mxu0 0
      %416 = vmatpush2.bf16.msra.mxu0 %v367
      %417 = vmatprep.subr.bf16.mxu0 0
      %418 = vmatpush2.bf16.msra.mxu0 %v366
      %419 = vmatprep.subr.bf16.mxu0 0
      %420 = vmatpush2.bf16.msra.mxu0 %v365
      %421 = vmatprep.mubr.bf16.mxu0 %v290
      %422 = vmatmul.mubr.bf16.gmra.mxu0 %v289
      %v423 = vpop.f32.mrf.mxu0
      %v424 = vadd.f32 0.0, %v423
      %v425 = vpop.f32.mrf.mxu0
      %v426 = vpop.f32.mrf.mxu0
      %v427 = vadd.f32 0.0, %v426
      %v428 = vpop.f32.mrf.mxu0
      %429 = vdwg.mxu0
      %430 = vadd.xlane.f32.xlu0 %v424
      %v431 = vpop.xlane.xlu0 %430
      %432 = vadd.xlane.f32.xlu0 %v427
      %v433 = vpop.xlane.xlu0 %432
      %v434 = vmul.f32 %v431, 0.0078125
      %v435 = vmul.f32 %v433, 0.0078125
      %v436 = vsub.f32 %v424, %v434
      %v437 = vsub.f32 %v427, %v435
      %v438 = vmul.f32 %v436, %v436
      %v439 = vmul.f32 %v437, %v437
      %440 = vadd.xlane.f32.xlu0 %v438
      %v441 = vpop.xlane.xlu0 %440
      %442 = vadd.xlane.f32.xlu0 %v439
      %v443 = vpop.xlane.xlu0 %442
      %v444 = vmul.f32 %v441, 0.0078125
      %v445 = vmul.f32 %v443, 0.0078125
      %v446 = vld [vmem:[%s234] sm:$0xff]
      %v447 = vld [vmem:[%s234 + $0x8] sm:$0xff]
      %v448 = vadd.f32 %v444, 1e-05
      %v449 = vadd.f32 %v445, 1e-05
      %v450 = vrsqrt.pop %v448
      %v451 = vrsqrt.pop %v449
      %v452 = vmul.f32 %v446, %v450
      %v453 = vmul.f32 %v447, %v451
      %455 = vset.pattern.permute.xlu0 0
      %456 = vperm.xlu0 %455, %v452
      %v457 = vpop.permute.xlu0 %456
      %460 = vset.pattern.permute.xlu0 0
      %461 = vperm.xlu0 %460, %v453
      %v462 = vpop.permute.xlu0 %461
      %v464 = vmul.f32 %v436, %v457
      %v465 = vmul.f32 %v437, %v462
      %v466 = vld [vmem:[%s240] sm:$0xff]
      %v467 = vld [vmem:[%s240 + $0x8] sm:$0xff]
      %469 = vset.pattern.permute.xlu0 0
      %470 = vperm.xlu0 %469, %v466
      %v471 = vpop.permute.xlu0 %470
      %474 = vset.pattern.permute.xlu0 0
      %475 = vperm.xlu0 %474, %v467
      %v476 = vpop.permute.xlu0 %475
      %v478 = vadd.f32 %v464, %v471
      %v479 = vadd.f32 %v465, %v476
      %vm480 = vcmp.gt.f32.partialorder %v478, 0.0
      %vm481 = vcmp.gt.f32.partialorder %v479, 0.0
      %v482 = vmul.f32 %v478, 0.2
      %v483 = vmul.f32 %v479, 0.2
      %v484 = vsel %vm480, %v478, %v482
      %v485 = vsel %vm481, %v479, %v483
      %v486 = vpack.c.bf16 %v485, %v484
      %v488 = vunpack.c.l.b16 %v486
      %v489 = vunpack.c.h.b16 %v486
      %v490 = vpack.c.b16 %v488, %v488
      %v491 = vpack.c.b16 %v489, %v489
      %494 = vst [vmem:[%s246] sm:$0xf] %v490
      %495 = vst [vmem:[%s246 + $0x4] sm:$0xf] %v491
      %s496 = smul.u32 2, %s15
      %p497 = scmp.lt.s32.totalorder %s496, 3
      %s498 = scalar_select %p497, %s496, 3
      %s499 = smul.addr %s498, 4
      %s500 = scalar_lea.vmem %s4, %s499
      // Predicated region
      $region37: #{discriminator_forward.7} parent=35 // pred_check
        %p501 = pneg %p132
      $region38: #{discriminator_forward.7} parent=35 // pred_check_branch
        %503 = sbr.rel (%p501) target = $region40
      $region39: #{discriminator_forward.7} parent=35 // pred_region
        %s504 = smul.u32 2, %s15
      $region40: #{discriminator_forward.7} parent=35 // pred_fallthru
        _
    $region36: #{discriminator_forward.7} parent=5 // pred_fallthru
      _
    %p505 = scmp.le.s32.totalorder 2, %s10
    // Predicated region
    $region41: #{discriminator_forward.7} parent=5 // pred_check
      %p506 = pneg %p505
    $region42: #{discriminator_forward.7} parent=5 // pred_check_branch
      %508 = sbr.rel (%p506) target = $region44
    $region43: #{discriminator_forward.7} parent=5 // pred_region
      %s509 = ssub.s32 %s10, 2
      // Predicated region
      $region45: #{discriminator_forward.7} parent=43 // pred_check
        %p510 = pneg %p138
      $region46: #{discriminator_forward.7} parent=43 // pred_check_branch
        %512 = sbr.rel (%p510) target = $region48
      $region47: #{discriminator_forward.7} parent=43 // pred_region
        %s513 = smul.u32 2, %s16
        %p514 = scmp.lt.s32.totalorder %s513, 3
        %s515 = scalar_select %p514, %s513, 3
        %s516 = smul.addr %s515, 4
        %s517 = scalar_lea.vmem %s4, %s516
      $region48: #{discriminator_forward.7} parent=43 // pred_fallthru
        _
    $region44: #{discriminator_forward.7} parent=5 // pred_fallthru
      _
  $region6: #{discriminator_forward.7} parent=0 // loop_footer
    %s14 = sadd.s32 1, %s10
  $region7: #{discriminator_forward.7} parent=0 // loop_footer_branch
    %9 = sbr.rel target = $region3
  $region8: #{discriminator_forward.7} parent=0 // loop_exit
    _

// kernel: discriminator_forward.8
$region0: #{discriminator_forward.8}
  #allocation0 [shape = 'u32[]', space=smem, size = 0x4, offset = 0x4, fixed_abs, tag = 'smem constant byte address 0x4 - core index']
  #allocation1 [shape = 'u32[144,128]{1,0:T(1,128)}', space=vmem, size = 0x12000, scoped, tag = 'internal scratch']
  %s0 = inlined_call_operand.vmem [shape: bf16[512,32], index: 0, kind: input, shape index: {}]
  %s1 = inlined_call_operand.vmem [shape: bf16[64,512], index: 1, kind: input, shape index: {}]
  %s2 = inlined_call_operand.vmem [shape: f32[64,1], index: 2, kind: input, shape index: {}]
  %s3 = inlined_call_operand.vmem [shape: f32[64,1], index: 3, kind: input, shape index: {}]
  %s4 = inlined_call_operand.vmem [shape: bf16[64,32], index: 4, kind: output, shape index: {}]
  %s5 = sld [smem:[#allocation0]]
  $region49: #{discriminator_forward.8} parent=0
    _
  %s7 = ssub.s32 1, %s5
  %s8 = scalar_select 0, %s7, %s5
  loop: start=0, step=1, limit=4
  $region2: #{discriminator_forward.8} parent=0 // loop_pre_header
    _
  $region3: #{discriminator_forward.8} parent=0 // loop_header
    %s10 = sphi 0, %s14
    %p11 = scmp.ge.s32.totalorder %s10, 4
    %s18 = sphi 0, %s18
    %s20 = sphi 0, %s18
    %s21 = sphi 0, %s20
    %s35 = sphi 0, %s21
    %s41 = sphi 0, %s43
    %s44 = sphi 0, %s41
    %s45 = sphi 0, %s44
    %s61 = sphi 0, %s45
    %s67 = sphi 0, %s69
    %s70 = sphi 0, %s67
    %s71 = sphi 0, %s70
    %s87 = sphi 0, %s71
    %s93 = sphi 0, %s95
    %s96 = sphi 0, %s93
    %s97 = sphi 0, %s96
    %s113 = sphi 0, %s97
    %s119 = sphi 0, %s121
    %s122 = sphi 0, %s119
    %s123 = sphi 0, %s122
    %s139 = sphi 0, %s123
  $region4: #{discriminator_forward.8} parent=0 // loop_header_branch
    %13 = sbr.rel (%p11) target = $region8
  $region5: #{discriminator_forward.8} parent=0 // loop_body
    %s15 = ssub.s32 %s10, 1
    %s16 = ssub.s32 %s10, 2
    %s17 = sadd.s32 %s10, 1
    %s19 = sadd.s32 %s18, 1
    %p22 = scmp.eq.s32.totalorder %s10, 1
    %p23 = scmp.ne.s32.totalorder %s18, %s20
    %p24 = scmp.eq.s32.totalorder %s10, 0
    %p25 = por %p23, %p24
    %p26 = scmp.ne.s32.totalorder %s18, %s20
    %p27 = scmp.eq.s32.totalorder %s15, 1
    %p28 = por %p26, %p27
    %p29 = scmp.ne.s32.totalorder %s20, %s21
    %p30 = scmp.eq.s32.totalorder %s15, 0
    %p31 = por %p29, %p30
    %p32 = scmp.ne.s32.totalorder %s20, %s21
    %p33 = scmp.eq.s32.totalorder %s16, 1
    %p34 = por %p32, %p33
    %p36 = scmp.ne.s32.totalorder %s21, %s35
    %p37 = scmp.eq.s32.totalorder %s16, 0
    %p38 = por %p36, %p37
    %s39 = ssub.s32 %s10, %s17
    %p40 = scmp.eq.s32.totalorder %s39, 0
    %s42 = sadd.s32 %s41, 1
    %s43 = scalar_select %p40, %s41, %s42
    %p46 = pneg %p40
    %p47 = scmp.eq.s32.totalorder %s10, 1
    %p48 = por %p46, %p47
    %p49 = scmp.ne.s32.totalorder %s41, %s44
    %p50 = scmp.eq.s32.totalorder %s10, 0
    %p51 = por %p49, %p50
    %p52 = scmp.ne.s32.totalorder %s41, %s44
    %p53 = scmp.eq.s32.totalorder %s15, 1
    %p54 = por %p52, %p53
    %p55 = scmp.ne.s32.totalorder %s44, %s45
    %p56 = scmp.eq.s32.totalorder %s15, 0
    %p57 = por %p55, %p56
    %p58 = scmp.ne.s32.totalorder %s44, %s45
    %p59 = scmp.eq.s32.totalorder %s16, 1
    %p60 = por %p58, %p59
    %p62 = scmp.ne.s32.totalorder %s45, %s61
    %p63 = scmp.eq.s32.totalorder %s16, 0
    %p64 = por %p62, %p63
    %s65 = ssub.s32 %s10, %s17
    %p66 = scmp.eq.s32.totalorder %s65, 0
    %s68 = sadd.s32 %s67, 1
    %s69 = scalar_select %p66, %s67, %s68
    %p72 = pneg %p66
    %p73 = scmp.eq.s32.totalorder %s10, 1
    %p74 = por %p72, %p73
    %p75 = scmp.ne.s32.totalorder %s67, %s70
    %p76 = scmp.eq.s32.totalorder %s10, 0
    %p77 = por %p75, %p76
    %p78 = scmp.ne.s32.totalorder %s67, %s70
    %p79 = scmp.eq.s32.totalorder %s15, 1
    %p80 = por %p78, %p79
    %p81 = scmp.ne.s32.totalorder %s70, %s71
    %p82 = scmp.eq.s32.totalorder %s15, 0
    %p83 = por %p81, %p82
    %p84 = scmp.ne.s32.totalorder %s70, %s71
    %p85 = scmp.eq.s32.totalorder %s16, 1
    %p86 = por %p84, %p85
    %p88 = scmp.ne.s32.totalorder %s71, %s87
    %p89 = scmp.eq.s32.totalorder %s16, 0
    %p90 = por %p88, %p89
    %s91 = ssub.s32 %s10, %s17
    %p92 = scmp.eq.s32.totalorder %s91, 0
    %s94 = sadd.s32 %s93, 1
    %s95 = scalar_select %p92, %s93, %s94
    %p98 = pneg %p92
    %p99 = scmp.eq.s32.totalorder %s10, 1
    %p100 = por %p98, %p99
    %p101 = scmp.ne.s32.totalorder %s93, %s96
    %p102 = scmp.eq.s32.totalorder %s10, 0
    %p103 = por %p101, %p102
    %p104 = scmp.ne.s32.totalorder %s93, %s96
    %p105 = scmp.eq.s32.totalorder %s15, 1
    %p106 = por %p104, %p105
    %p107 = scmp.ne.s32.totalorder %s96, %s97
    %p108 = scmp.eq.s32.totalorder %s15, 0
    %p109 = por %p107, %p108
    %p110 = scmp.ne.s32.totalorder %s96, %s97
    %p111 = scmp.eq.s32.totalorder %s16, 1
    %p112 = por %p110, %p111
    %p114 = scmp.ne.s32.totalorder %s97, %s113
    %p115 = scmp.eq.s32.totalorder %s16, 0
    %p116 = por %p114, %p115
    %s117 = ssub.s32 %s10, %s17
    %p118 = scmp.eq.s32.totalorder %s117, 0
    %s120 = sadd.s32 %s119, 1
    %s121 = scalar_select %p118, %s119, %s120
    %p124 = pneg %p118
    %p125 = scmp.eq.s32.totalorder %s10, 1
    %p126 = por %p124, %p125
    %p127 = scmp.ne.s32.totalorder %s119, %s122
    %p128 = scmp.eq.s32.totalorder %s10, 0
    %p129 = por %p127, %p128
    %p130 = scmp.ne.s32.totalorder %s119, %s122
    %p131 = scmp.eq.s32.totalorder %s15, 1
    %p132 = por %p130, %p131
    %p133 = scmp.ne.s32.totalorder %s122, %s123
    %p134 = scmp.eq.s32.totalorder %s15, 0
    %p135 = por %p133, %p134
    %p136 = scmp.ne.s32.totalorder %s122, %s123
    %p137 = scmp.eq.s32.totalorder %s16, 1
    %p138 = por %p136, %p137
    %p140 = scmp.ne.s32.totalorder %s123, %s139
    %p141 = scmp.eq.s32.totalorder %s16, 0
    %p142 = por %p140, %p141
    %p143 = scmp.le.s32.totalorder 1, %s10
    %p144 = scmp.lt.s32.totalorder %s10, 3
    %p145 = pnand %p143, %p144
    %p146 = pneg %p145
    // Predicated region
    $region9: #{discriminator_forward.8} parent=5 // pred_check
      _
    $region10: #{discriminator_forward.8} parent=5 // pred_check_branch
      %148 = sbr.rel (%p145) target = $region12
    $region11: #{discriminator_forward.8} parent=5 // pred_region
      %s149 = ssub.s32 %s10, 1
      // Predicated region
      $region13: #{discriminator_forward.8} parent=11 // pred_check
        %p150 = pneg %p31
      $region14: #{discriminator_forward.8} parent=11 // pred_check_branch
        %152 = sbr.rel (%p150) target = $region16
      $region15: #{discriminator_forward.8} parent=11 // pred_region
        _
      $region16: #{discriminator_forward.8} parent=11 // pred_fallthru
        _
    $region12: #{discriminator_forward.8} parent=5 // pred_fallthru
      _
    %p153 = scmp.lt.s32.totalorder %s10, 2
    // Predicated region
    $region17: #{discriminator_forward.8} parent=5 // pred_check
      %p154 = pneg %p153
    $region18: #{discriminator_forward.8} parent=5 // pred_check_branch
      %156 = sbr.rel (%p154) target = $region20
    $region19: #{discriminator_forward.8} parent=5 // pred_region
      // Predicated region
      $region21: #{discriminator_forward.8} parent=19 // pred_check
        %p157 = pneg %p51
      $region22: #{discriminator_forward.8} parent=19 // pred_check_branch
        %159 = sbr.rel (%p157) target = $region24
      $region23: #{discriminator_forward.8} parent=19 // pred_region
        %s160 = smul.u32 4, %s10
        %p161 = scmp.lt.s32.totalorder %s160, 7
        %s162 = scalar_select %p161, %s160, 7
        %s163 = smul.addr %s162, 4
        %s164 = smul.addr %s163, 4
        %s165 = scalar_lea.vmem %s1, %s164
        %s166 = smul.u32 4, %s10
      $region24: #{discriminator_forward.8} parent=19 // pred_fallthru
        _
      // Predicated region
      $region25: #{discriminator_forward.8} parent=19 // pred_check
        %p167 = pneg %p77
      $region26: #{discriminator_forward.8} parent=19 // pred_check_branch
        %169 = sbr.rel (%p167) target = $region28
      $region27: #{discriminator_forward.8} parent=19 // pred_region
        %s170 = smul.u32 4, %s10
        %p171 = scmp.lt.s32.totalorder %s170, 7
        %s172 = scalar_select %p171, %s170, 7
        %s173 = smul.addr %s172, 8
        %s174 = scalar_lea.vmem %s2, %s173
        %s175 = smul.u32 4, %s10
      $region28: #{discriminator_forward.8} parent=19 // pred_fallthru
        _
      // Predicated region
      $region29: #{discriminator_forward.8} parent=19 // pred_check
        %p176 = pneg %p103
      $region30: #{discriminator_forward.8} parent=19 // pred_check_branch
        %178 = sbr.rel (%p176) target = $region32
      $region31: #{discriminator_forward.8} parent=19 // pred_region
        %s179 = smul.u32 4, %s10
        %p180 = scmp.lt.s32.totalorder %s179, 7
        %s181 = scalar_select %p180, %s179, 7
        %s182 = smul.addr %s181, 8
        %s183 = scalar_lea.vmem %s3, %s182
        %s184 = smul.u32 4, %s10
      $region32: #{discriminator_forward.8} parent=19 // pred_fallthru
        _
    $region20: #{discriminator_forward.8} parent=5 // pred_fallthru
      _
    %p185 = scmp.le.s32.totalorder 1, %s10
    %p186 = scmp.lt.s32.totalorder %s10, 3
    %p187 = pnand %p185, %p186
    %p188 = pneg %p187
    // Predicated region
    $region33: #{discriminator_forward.8} parent=5 // pred_check
      _
    $region34: #{discriminator_forward.8} parent=5 // pred_check_branch
      %190 = sbr.rel (%p187) target = $region36
    $region35: #{discriminator_forward.8} parent=5 // pred_region
      %s191 = ssub.s32 %s10, 1
      %p192 = pneg %p31
      %p193 = pneg %p28
      %s194 = smul.u32 4, %s15
      %p195 = scmp.lt.s32.totalorder %s194, 7
      %s196 = scalar_select %p195, %s194, 7
      %s197 = smul.addr %s196, 4
      %s198 = smul.addr %s197, 4
      %s199 = scalar_lea.vmem %s1, %s198
      %p200 = pneg %p57
      %p201 = pneg %p54
      %s202 = smul.u32 4, %s15
      %p203 = scmp.lt.s32.totalorder %s202, 7
      %s204 = scalar_select %p203, %s202, 7
      %s205 = smul.addr %s204, 8
      %s206 = scalar_lea.vmem %s2, %s205
      %p207 = pneg %p83
      %p208 = pneg %p80
      %s209 = smul.u32 4, %s15
      %p210 = scmp.lt.s32.totalorder %s209, 7
      %s211 = scalar_select %p210, %s209, 7
      %s212 = smul.addr %s211, 8
      %s213 = scalar_lea.vmem %s3, %s212
      %p214 = pneg %p109
      %p215 = pneg %p106
      %p216 = pneg %p135
      %p217 = pneg %p132
      %s218 = smul.u32 4, %s15
      %p219 = scmp.lt.s32.totalorder %s218, 7
      %s220 = scalar_select %p219, %s218, 7
      %s221 = smul.addr %s220, 4
      %s222 = scalar_lea.vmem %s4, %s221
      %s223 = smul.u32 4, %s15
      %p224 = scmp.lt.s32.totalorder %s223, 7
      %s225 = scalar_select %p224, %s223, 7
      %s226 = smul.addr %s225, 4
      %s227 = smul.addr %s226, 4
      %s228 = scalar_lea.vmem %s1, %s227
      %s229 = smul.u32 4, %s15
      %s230 = smul.u32 4, %s15
      %p231 = scmp.lt.s32.totalorder %s230, 7
      %s232 = scalar_select %p231, %s230, 7
      %s233 = smul.addr %s232, 8
      %s234 = scalar_lea.vmem %s2, %s233
      %s235 = smul.u32 4, %s15
      %s236 = smul.u32 4, %s15
      %p237 = scmp.lt.s32.totalorder %s236, 7
      %s238 = scalar_select %p237, %s236, 7
      %s239 = smul.addr %s238, 8
      %s240 = scalar_lea.vmem %s3, %s239
      %s241 = smul.u32 4, %s15
      %s242 = smul.u32 4, %s15
      %p243 = scmp.lt.s32.totalorder %s242, 7
      %s244 = scalar_select %p243, %s242, 7
      %s245 = smul.addr %s244, 4
      %s246 = scalar_lea.vmem %s4, %s245
      %s247 = smul.u32 4, %s15
      %v249 = vld [vmem:[%s228] sm:$0xff]
      %v250 = vld [vmem:[%s228 + $0x8] sm:$0xff]
      %v251 = vld [vmem:[%s228 + $0x10] sm:$0xff]
      %v252 = vld [vmem:[%s228 + $0x18] sm:$0xff]
      %v253 = vld [vmem:[%s228 + $0x20] sm:$0xff]
      %v254 = vld [vmem:[%s228 + $0x28] sm:$0xff]
      %v255 = vld [vmem:[%s228 + $0x30] sm:$0xff]
      %v256 = vld [vmem:[%s228 + $0x38] sm:$0xff]
      %v257 = vld [vmem:[%s0] sm:$0xf]
      %v258 = vld [vmem:[%s0 + $0x4] sm:$0xf]
      %v259 = vld [vmem:[%s0 + $0x8] sm:$0xf]
      %v260 = vld [vmem:[%s0 + $0xc] sm:$0xf]
      %v261 = vld [vmem:[%s0 + $0x10] sm:$0xf]
      %v262 = vld [vmem:[%s0 + $0x14] sm:$0xf]
      %v263 = vld [vmem:[%s0 + $0x18] sm:$0xf]
      %v264 = vld [vmem:[%s0 + $0x1c] sm:$0xf]
      %v265 = vld [vmem:[%s0 + $0x20] sm:$0xf]
      %v266 = vld [vmem:[%s0 + $0x24] sm:$0xf]
      %v267 = vld [vmem:[%s0 + $0x28] sm:$0xf]
      %v268 = vld [vmem:[%s0 + $0x2c] sm:$0xf]
      %v269 = vld [vmem:[%s0 + $0x30] sm:$0xf]
      %v270 = vld [vmem:[%s0 + $0x34] sm:$0xf]
      %v271 = vld [vmem:[%s0 + $0x38] sm:$0xf]
      %v272 = vld [vmem:[%s0 + $0x3c] sm:$0xf]
      %v273 = vld [vmem:[%s0 + $0x40] sm:$0xf]
      %v274 = vld [vmem:[%s0 + $0x44] sm:$0xf]
      %v275 = vld [vmem:[%s0 + $0x48] sm:$0xf]
      %v276 = vld [vmem:[%s0 + $0x4c] sm:$0xf]
      %v277 = vld [vmem:[%s0 + $0x50] sm:$0xf]
      %v278 = vld [vmem:[%s0 + $0x54] sm:$0xf]
      %v279 = vld [vmem:[%s0 + $0x58] sm:$0xf]
      %v280 = vld [vmem:[%s0 + $0x5c] sm:$0xf]
      %v281 = vld [vmem:[%s0 + $0x60] sm:$0xf]
      %v282 = vld [vmem:[%s0 + $0x64] sm:$0xf]
      %v283 = vld [vmem:[%s0 + $0x68] sm:$0xf]
      %v284 = vld [vmem:[%s0 + $0x6c] sm:$0xf]
      %v285 = vld [vmem:[%s0 + $0x70] sm:$0xf]
      %v286 = vld [vmem:[%s0 + $0x74] sm:$0xf]
      %v287 = vld [vmem:[%s0 + $0x78] sm:$0xf]
      %v288 = vld [vmem:[%s0 + $0x7c] sm:$0xf]
      %v289 = vld [vmem:[%s0 + $0x80] sm:$0xf]
      %v290 = vld [vmem:[%s0 + $0x84] sm:$0xf]
      %v291 = vld [vmem:[%s0 + $0x88] sm:$0xf]
      %v292 = vld [vmem:[%s0 + $0x8c] sm:$0xf]
      %v293 = vld [vmem:[%s0 + $0x90] sm:$0xf]
      %v294 = vld [vmem:[%s0 + $0x94] sm:$0xf]
      %v295 = vld [vmem:[%s0 + $0x98] sm:$0xf]
      %v296 = vld [vmem:[%s0 + $0x9c] sm:$0xf]
      %v297 = vld [vmem:[%s0 + $0xa0] sm:$0xf]
      %v298 = vld [vmem:[%s0 + $0xa4] sm:$0xf]
      %v299 = vld [vmem:[%s0 + $0xa8] sm:$0xf]
      %v300 = vld [vmem:[%s0 + $0xac] sm:$0xf]
      %v301 = vld [vmem:[%s0 + $0xb0] sm:$0xf]
      %v302 = vld [vmem:[%s0 + $0xb4] sm:$0xf]
      %v303 = vld [vmem:[%s0 + $0xb8] sm:$0xf]
      %v304 = vld [vmem:[%s0 + $0xbc] sm:$0xf]
      %v305 = vld [vmem:[%s0 + $0xc0] sm:$0xf]
      %v306 = vld [vmem:[%s0 + $0xc4] sm:$0xf]
      %v307 = vld [vmem:[%s0 + $0xc8] sm:$0xf]
      %v308 = vld [vmem:[%s0 + $0xcc] sm:$0xf]
      %v309 = vld [vmem:[%s0 + $0xd0] sm:$0xf]
      %v310 = vld [vmem:[%s0 + $0xd4] sm:$0xf]
      %v311 = vld [vmem:[%s0 + $0xd8] sm:$0xf]
      %v312 = vld [vmem:[%s0 + $0xdc] sm:$0xf]
      %v313 = vld [vmem:[%s0 + $0xe0] sm:$0xf]
      %v314 = vld [vmem:[%s0 + $0xe4] sm:$0xf]
      %v315 = vld [vmem:[%s0 + $0xe8] sm:$0xf]
      %v316 = vld [vmem:[%s0 + $0xec] sm:$0xf]
      %v317 = vld [vmem:[%s0 + $0xf0] sm:$0xf]
      %v318 = vld [vmem:[%s0 + $0xf4] sm:$0xf]
      %v319 = vld [vmem:[%s0 + $0xf8] sm:$0xf]
      %v320 = vld [vmem:[%s0 + $0xfc] sm:$0xf]
      %v329 = vunpack.c.l.b16 %v249
      %v330 = vunpack.c.h.b16 %v249
      %v331 = vunpack.c.l.b16 %v250
      %v332 = vunpack.c.h.b16 %v250
      %v333 = vunpack.c.l.b16 %v251
      %v334 = vunpack.c.h.b16 %v251
      %v335 = vunpack.c.l.b16 %v252
      %v336 = vunpack.c.h.b16 %v252
      %v337 = vunpack.c.l.b16 %v253
      %v338 = vunpack.c.h.b16 %v253
      %v339 = vunpack.c.l.b16 %v254
      %v340 = vunpack.c.h.b16 %v254
      %v341 = vunpack.c.l.b16 %v255
      %v342 = vunpack.c.h.b16 %v255
      %v343 = vunpack.c.l.b16 %v256
      %v344 = vunpack.c.h.b16 %v256
      %v345 = vpack.c.b16 %v333, %v329
      %v346 = vpack.c.b16 %v334, %v330
      %v347 = vpack.c.b16 %v335, %v331
      %v348 = vpack.c.b16 %v336, %v332
      %v349 = vpack.c.b16 %v341, %v337
      %v350 = vpack.c.b16 %v342, %v338
      %v351 = vpack.c.b16 %v343, %v339
      %v352 = vpack.c.b16 %v344, %v340
      %v425 = vunpack.c.l.b16 %v257
      %v426 = vunpack.c.l.b16 %v258
      %v427 = vunpack.c.l.b16 %v259
      %v428 = vunpack.c.l.b16 %v260
      %v429 = vunpack.c.l.b16 %v261
      %v430 = vunpack.c.l.b16 %v262
      %v431 = vunpack.c.l.b16 %v263
      %v432 = vunpack.c.l.b16 %v264
      %v433 = vunpack.c.l.b16 %v265
      %v434 = vunpack.c.l.b16 %v266
      %v435 = vunpack.c.l.b16 %v267
      %v436 = vunpack.c.l.b16 %v268
      %v437 = vunpack.c.l.b16 %v269
      %v438 = vunpack.c.l.b16 %v270
      %v439 = vunpack.c.l.b16 %v271
      %v440 = vunpack.c.l.b16 %v272
      %v441 = vunpack.c.l.b16 %v273
      %v442 = vunpack.c.l.b16 %v274
      %v443 = vunpack.c.l.b16 %v275
      %v444 = vunpack.c.l.b16 %v276
      %v445 = vunpack.c.l.b16 %v277
      %v446 = vunpack.c.l.b16 %v278
      %v447 = vunpack.c.l.b16 %v279
      %v448 = vunpack.c.l.b16 %v280
      %v449 = vunpack.c.l.b16 %v281
      %v450 = vunpack.c.l.b16 %v282
      %v451 = vunpack.c.l.b16 %v283
      %v452 = vunpack.c.l.b16 %v284
      %v453 = vunpack.c.l.b16 %v285
      %v454 = vunpack.c.l.b16 %v286
      %v455 = vunpack.c.l.b16 %v287
      %v456 = vunpack.c.l.b16 %v288
      %v457 = vunpack.c.l.b16 %v289
      %v458 = vunpack.c.l.b16 %v290
      %v459 = vunpack.c.l.b16 %v291
      %v460 = vunpack.c.l.b16 %v292
      %v461 = vunpack.c.l.b16 %v293
      %v462 = vunpack.c.l.b16 %v294
      %v463 = vunpack.c.l.b16 %v295
      %v464 = vunpack.c.l.b16 %v296
      %v465 = vunpack.c.l.b16 %v297
      %v466 = vunpack.c.l.b16 %v298
      %v467 = vunpack.c.l.b16 %v299
      %v468 = vunpack.c.l.b16 %v300
      %v469 = vunpack.c.l.b16 %v301
      %v470 = vunpack.c.l.b16 %v302
      %v471 = vunpack.c.l.b16 %v303
      %v472 = vunpack.c.l.b16 %v304
      %v473 = vunpack.c.l.b16 %v305
      %v474 = vunpack.c.l.b16 %v306
      %v475 = vunpack.c.l.b16 %v307
      %v476 = vunpack.c.l.b16 %v308
      %v477 = vunpack.c.l.b16 %v309
      %v478 = vunpack.c.l.b16 %v310
      %v479 = vunpack.c.l.b16 %v311
      %v480 = vunpack.c.l.b16 %v312
      %v481 = vunpack.c.l.b16 %v313
      %v482 = vunpack.c.l.b16 %v314
      %v483 = vunpack.c.l.b16 %v315
      %v484 = vunpack.c.l.b16 %v316
      %v485 = vunpack.c.l.b16 %v317
      %v486 = vunpack.c.l.b16 %v318
      %v487 = vunpack.c.l.b16 %v319
      %v488 = vunpack.c.l.b16 %v320
      %v489 = vpack.c.b16 %v426, %v425
      %v490 = vpack.c.b16 %v428, %v427
      %v491 = vpack.c.b16 %v430, %v429
      %v492 = vpack.c.b16 %v432, %v431
      %v493 = vpack.c.b16 %v434, %v433
      %v494 = vpack.c.b16 %v436, %v435
      %v495 = vpack.c.b16 %v438, %v437
      %v496 = vpack.c.b16 %v440, %v439
      %v497 = vpack.c.b16 %v442, %v441
      %v498 = vpack.c.b16 %v444, %v443
      %v499 = vpack.c.b16 %v446, %v445
      %v500 = vpack.c.b16 %v448, %v447
      %v501 = vpack.c.b16 %v450, %v449
      %v502 = vpack.c.b16 %v452, %v451
      %v503 = vpack.c.b16 %v454, %v453
      %v504 = vpack.c.b16 %v456, %v455
      %v505 = vpack.c.b16 %v458, %v457
      %v506 = vpack.c.b16 %v460, %v459
      %v507 = vpack.c.b16 %v462, %v461
      %v508 = vpack.c.b16 %v464, %v463
      %v509 = vpack.c.b16 %v466, %v465
      %v510 = vpack.c.b16 %v468, %v467
      %v511 = vpack.c.b16 %v470, %v469
      %v512 = vpack.c.b16 %v472, %v471
      %v513 = vpack.c.b16 %v474, %v473
      %v514 = vpack.c.b16 %v476, %v475
      %v515 = vpack.c.b16 %v478, %v477
      %v516 = vpack.c.b16 %v480, %v479
      %v517 = vpack.c.b16 %v482, %v481
      %v518 = vpack.c.b16 %v484, %v483
      %v519 = vpack.c.b16 %v486, %v485
      %v520 = vpack.c.b16 %v488, %v487
      %553 = vmatprep.subr.bf16.mxu0 0
      %554 = vmatpush1.bf16.msra.mxu0 %v496
      %555 = vmatprep.subr.bf16.mxu0 0
      %556 = vmatpush1.bf16.msra.mxu0 %v495
      %557 = vmatprep.subr.bf16.mxu0 0
      %558 = vmatpush1.bf16.msra.mxu0 %v494
      %559 = vmatprep.subr.bf16.mxu0 0
      %560 = vmatpush1.bf16.msra.mxu0 %v493
      %561 = vmatprep.subr.bf16.mxu0 0
      %562 = vmatpush1.bf16.msra.mxu0 %v492
      %563 = vmatprep.subr.bf16.mxu0 0
      %564 = vmatpush1.bf16.msra.mxu0 %v491
      %565 = vmatprep.subr.bf16.mxu0 0
      %566 = vmatpush1.bf16.msra.mxu0 %v490
      %567 = vmatprep.subr.bf16.mxu0 0
      %568 = vmatpush1.bf16.msra.mxu0 %v489
      %569 = vmatprep.subr.bf16.mxu0 0
      %570 = vmatpush2.bf16.msra.mxu0 %v504
      %571 = vmatprep.subr.bf16.mxu0 0
      %572 = vmatpush2.bf16.msra.mxu0 %v503
      %573 = vmatprep.subr.bf16.mxu0 0
      %574 = vmatpush2.bf16.msra.mxu0 %v502
      %575 = vmatprep.subr.bf16.mxu0 0
      %576 = vmatpush2.bf16.msra.mxu0 %v501
      %577 = vmatprep.subr.bf16.mxu0 0
      %578 = vmatpush2.bf16.msra.mxu0 %v500
      %579 = vmatprep.subr.bf16.mxu0 0
      %580 = vmatpush2.bf16.msra.mxu0 %v499
      %581 = vmatprep.subr.bf16.mxu0 0
      %582 = vmatpush2.bf16.msra.mxu0 %v498
      %583 = vmatprep.subr.bf16.mxu0 0
      %584 = vmatpush2.bf16.msra.mxu0 %v497
      %585 = vmatprep.mubr.bf16.mxu0 %v346
      %586 = vmatmul.mubr.bf16.gmra.mxu0 %v345
      %v587 = vpop.f32.mrf.mxu0
      %v588 = vadd.f32 0.0, %v587
      %v589 = vpop.f32.mrf.mxu0
      %v590 = vpop.f32.mrf.mxu0
      %v591 = vadd.f32 0.0, %v590
      %v592 = vpop.f32.mrf.mxu0
      %593 = vmatprep.mubr.bf16.mxu0 %v350
      %594 = vmatmul.mubr.bf16.gmra.mxu0 %v349
      %v595 = vpop.f32.mrf.mxu0
      %v596 = vadd.f32 0.0, %v595
      %v597 = vpop.f32.mrf.mxu0
      %v598 = vpop.f32.mrf.mxu0
      %v599 = vadd.f32 0.0, %v598
      %v600 = vpop.f32.mrf.mxu0
      %601 = vdwg.mxu0
      %602 = vmatprep.subr.bf16.mxu0 0
      %603 = vmatpush1.bf16.msra.mxu0 %v512
      %604 = vmatprep.subr.bf16.mxu0 0
      %605 = vmatpush1.bf16.msra.mxu0 %v511
      %606 = vmatprep.subr.bf16.mxu0 0
      %607 = vmatpush1.bf16.msra.mxu0 %v510
      %608 = vmatprep.subr.bf16.mxu0 0
      %609 = vmatpush1.bf16.msra.mxu0 %v509
      %610 = vmatprep.subr.bf16.mxu0 0
      %611 = vmatpush1.bf16.msra.mxu0 %v508
      %612 = vmatprep.subr.bf16.mxu0 0
      %613 = vmatpush1.bf16.msra.mxu0 %v507
      %614 = vmatprep.subr.bf16.mxu0 0
      %615 = vmatpush1.bf16.msra.mxu0 %v506
      %616 = vmatprep.subr.bf16.mxu0 0
      %617 = vmatpush1.bf16.msra.mxu0 %v505
      %618 = vmatprep.subr.bf16.mxu0 0
      %619 = vmatpush2.bf16.msra.mxu0 %v520
      %620 = vmatprep.subr.bf16.mxu0 0
      %621 = vmatpush2.bf16.msra.mxu0 %v519
      %622 = vmatprep.subr.bf16.mxu0 0
      %623 = vmatpush2.bf16.msra.mxu0 %v518
      %624 = vmatprep.subr.bf16.mxu0 0
      %625 = vmatpush2.bf16.msra.mxu0 %v517
      %626 = vmatprep.subr.bf16.mxu0 0
      %627 = vmatpush2.bf16.msra.mxu0 %v516
      %628 = vmatprep.subr.bf16.mxu0 0
      %629 = vmatpush2.bf16.msra.mxu0 %v515
      %630 = vmatprep.subr.bf16.mxu0 0
      %631 = vmatpush2.bf16.msra.mxu0 %v514
      %632 = vmatprep.subr.bf16.mxu0 0
      %633 = vmatpush2.bf16.msra.mxu0 %v513
      %634 = vmatprep.mubr.bf16.mxu0 %v348
      %635 = vmatmul.mubr.bf16.gmra.mxu0 %v347
      %v636 = vpop.f32.mrf.mxu0
      %v637 = vadd.f32 %v588, %v636
      %v638 = vpop.f32.mrf.mxu0
      %v639 = vpop.f32.mrf.mxu0
      %v640 = vadd.f32 %v591, %v639
      %v641 = vpop.f32.mrf.mxu0
      %642 = vmatprep.mubr.bf16.mxu0 %v352
      %643 = vmatmul.mubr.bf16.gmra.mxu0 %v351
      %v644 = vpop.f32.mrf.mxu0
      %v645 = vadd.f32 %v596, %v644
      %v646 = vpop.f32.mrf.mxu0
      %v647 = vpop.f32.mrf.mxu0
      %v648 = vadd.f32 %v599, %v647
      %v649 = vpop.f32.mrf.mxu0
      %650 = vdwg.mxu0
      %vm651 = vcmask 261120
      %v652 = vsel %vm651, %v637, 0.0
      %653 = vadd.xlane.f32.xlu0 %v652
      %v654 = vpop.xlane.xlu0 %653
      %v655 = vsel %vm651, %v640, 0.0
      %656 = vadd.xlane.f32.xlu0 %v655
      %v657 = vpop.xlane.xlu0 %656
      %v658 = vsel %vm651, %v645, 0.0
      %659 = vadd.xlane.f32.xlu0 %v658
      %v660 = vpop.xlane.xlu0 %659
      %v661 = vsel %vm651, %v648, 0.0
      %662 = vadd.xlane.f32.xlu0 %v661
      %v663 = vpop.xlane.xlu0 %662
      %v664 = vmul.f32 %v654, 0.03125
      %v665 = vmul.f32 %v657, 0.03125
      %v666 = vmul.f32 %v660, 0.03125
      %v667 = vmul.f32 %v663, 0.03125
      %v668 = vsub.f32 %v637, %v664
      %v669 = vsub.f32 %v640, %v665
      %v670 = vsub.f32 %v645, %v666
      %v671 = vsub.f32 %v648, %v667
      %v672 = vmul.f32 %v668, %v668
      %v673 = vmul.f32 %v669, %v669
      %v674 = vmul.f32 %v670, %v670
      %v675 = vmul.f32 %v671, %v671
      %v676 = vsel %vm651, %v672, 0.0
      %677 = vadd.xlane.f32.xlu0 %v676
      %v678 = vpop.xlane.xlu0 %677
      %v679 = vsel %vm651, %v673, 0.0
      %680 = vadd.xlane.f32.xlu0 %v679
      %v681 = vpop.xlane.xlu0 %680
      %v682 = vsel %vm651, %v674, 0.0
      %683 = vadd.xlane.f32.xlu0 %v682
      %v684 = vpop.xlane.xlu0 %683
      %v685 = vsel %vm651, %v675, 0.0
      %686 = vadd.xlane.f32.xlu0 %v685
      %v687 = vpop.xlane.xlu0 %686
      %v688 = vmul.f32 %v678, 0.03125
      %v689 = vmul.f32 %v681, 0.03125
      %v690 = vmul.f32 %v684, 0.03125
      %v691 = vmul.f32 %v687, 0.03125
      %v692 = vld [vmem:[%s234] sm:$0xff]
      %v693 = vld [vmem:[%s234 + $0x8] sm:$0xff]
      %v694 = vld [vmem:[%s234 + $0x10] sm:$0xff]
      %v695 = vld [vmem:[%s234 + $0x18] sm:$0xff]
      %v696 = vadd.f32 %v688, 1e-05
      %v697 = vadd.f32 %v689, 1e-05
      %v698 = vadd.f32 %v690, 1e-05
      %v699 = vadd.f32 %v691, 1e-05
      %v700 = vrsqrt.pop %v696
      %v701 = vrsqrt.pop %v697
      %v702 = vrsqrt.pop %v698
      %v703 = vrsqrt.pop %v699
      %v704 = vmul.f32 %v692, %v700
      %v705 = vmul.f32 %v693, %v701
      %v706 = vmul.f32 %v694, %v702
      %v707 = vmul.f32 %v695, %v703
      %709 = vset.pattern.permute.xlu0 0
      %710 = vperm.xlu0 %709, %v704
      %v711 = vpop.permute.xlu0 %710
      %714 = vset.pattern.permute.xlu0 0
      %715 = vperm.xlu0 %714, %v705
      %v716 = vpop.permute.xlu0 %715
      %719 = vset.pattern.permute.xlu0 0
      %720 = vperm.xlu0 %719, %v706
      %v721 = vpop.permute.xlu0 %720
      %724 = vset.pattern.permute.xlu0 0
      %725 = vperm.xlu0 %724, %v707
      %v726 = vpop.permute.xlu0 %725
      %v728 = vmul.f32 %v668, %v711
      %v729 = vmul.f32 %v669, %v716
      %v730 = vmul.f32 %v670, %v721
      %v731 = vmul.f32 %v671, %v726
      %v732 = vld [vmem:[%s240] sm:$0xff]
      %v733 = vld [vmem:[%s240 + $0x8] sm:$0xff]
      %v734 = vld [vmem:[%s240 + $0x10] sm:$0xff]
      %v735 = vld [vmem:[%s240 + $0x18] sm:$0xff]
      %737 = vset.pattern.permute.xlu0 0
      %738 = vperm.xlu0 %737, %v732
      %v739 = vpop.permute.xlu0 %738
      %742 = vset.pattern.permute.xlu0 0
      %743 = vperm.xlu0 %742, %v733
      %v744 = vpop.permute.xlu0 %743
      %747 = vset.pattern.permute.xlu0 0
      %748 = vperm.xlu0 %747, %v734
      %v749 = vpop.permute.xlu0 %748
      %752 = vset.pattern.permute.xlu0 0
      %753 = vperm.xlu0 %752, %v735
      %v754 = vpop.permute.xlu0 %753
      %v756 = vadd.f32 %v728, %v739
      %v757 = vadd.f32 %v729, %v744
      %v758 = vadd.f32 %v730, %v749
      %v759 = vadd.f32 %v731, %v754
      %vm760 = vcmp.gt.f32.partialorder %v756, 0.0
      %vm761 = vcmp.gt.f32.partialorder %v757, 0.0
      %vm762 = vcmp.gt.f32.partialorder %v758, 0.0
      %vm763 = vcmp.gt.f32.partialorder %v759, 0.0
      %v764 = vmul.f32 %v756, 0.2
      %v765 = vmul.f32 %v757, 0.2
      %v766 = vmul.f32 %v758, 0.2
      %v767 = vmul.f32 %v759, 0.2
      %v768 = vsel %vm760, %v756, %v764
      %v769 = vsel %vm761, %v757, %v765
      %v770 = vsel %vm762, %v758, %v766
      %v771 = vsel %vm763, %v759, %v767
      %v772 = vpack.c.bf16 %v769, %v768
      %v773 = vpack.c.bf16 %v771, %v770
      %v776 = vunpack.c.l.b16 %v772
      %v777 = vunpack.c.h.b16 %v772
      %v778 = vunpack.c.l.b16 %v773
      %v779 = vunpack.c.h.b16 %v773
      %v780 = vpack.c.b16 %v776, %v776
      %v781 = vpack.c.b16 %v777, %v777
      %v782 = vpack.c.b16 %v778, %v778
      %v783 = vpack.c.b16 %v779, %v779
      %vm788 = vcmask 257024
      %789 = vst.msk [vmem:[%s246] sm:$0xf] %vm788, %v780
      %790 = vst.msk [vmem:[%s246 + $0x4] sm:$0xf] %vm788, %v781
      %791 = vst.msk [vmem:[%s246 + $0x8] sm:$0xf] %vm788, %v782
      %792 = vst.msk [vmem:[%s246 + $0xc] sm:$0xf] %vm788, %v783
      %s793 = smul.u32 4, %s15
      %p794 = scmp.lt.s32.totalorder %s793, 7
      %s795 = scalar_select %p794, %s793, 7
      %s796 = smul.addr %s795, 4
      %s797 = scalar_lea.vmem %s4, %s796
      // Predicated region
      $region37: #{discriminator_forward.8} parent=35 // pred_check
        %p798 = pneg %p132
      $region38: #{discriminator_forward.8} parent=35 // pred_check_branch
        %800 = sbr.rel (%p798) target = $region40
      $region39: #{discriminator_forward.8} parent=35 // pred_region
        %s801 = smul.u32 4, %s15
      $region40: #{discriminator_forward.8} parent=35 // pred_fallthru
        _
    $region36: #{discriminator_forward.8} parent=5 // pred_fallthru
      _
    %p802 = scmp.le.s32.totalorder 2, %s10
    // Predicated region
    $region41: #{discriminator_forward.8} parent=5 // pred_check
      %p803 = pneg %p802
    $region42: #{discriminator_forward.8} parent=5 // pred_check_branch
      %805 = sbr.rel (%p803) target = $region44
    $region43: #{discriminator_forward.8} parent=5 // pred_region
      %s806 = ssub.s32 %s10, 2
      // Predicated region
      $region45: #{discriminator_forward.8} parent=43 // pred_check
        %p807 = pneg %p138
      $region46: #{discriminator_forward.8} parent=43 // pred_check_branch
        %809 = sbr.rel (%p807) target = $region48
      $region47: #{discriminator_forward.8} parent=43 // pred_region
        %s810 = smul.u32 4, %s16
        %p811 = scmp.lt.s32.totalorder %s810, 7
        %s812 = scalar_select %p811, %s810, 7
        %s813 = smul.addr %s812, 4
        %s814 = scalar_lea.vmem %s4, %s813
      $region48: #{discriminator_forward.8} parent=43 // pred_fallthru
        _
    $region44: #{discriminator_forward.8} parent=5 // pred_fallthru
      _
  $region6: #{discriminator_forward.8} parent=0 // loop_footer
    %s14 = sadd.s32 1, %s10
  $region7: #{discriminator_forward.8} parent=0 // loop_footer_branch
    %9 = sbr.rel target = $region3
  $region8: #{discriminator_forward.8} parent=0 // loop_exit
    _

// kernel: discriminator_forward.9
$region0: #{discriminator_forward.9}
  #allocation0 [shape = 'u32[]', space=smem, size = 0x4, offset = 0x4, fixed_abs, tag = 'smem constant byte address 0x4 - core index']
  #allocation1 [shape = 'u32[144,128]{1,0:T(1,128)}', space=vmem, size = 0x12000, scoped, tag = 'internal scratch']
  #allocation2 [shape = 'f32[1,1]{1,0:T(1,128)S(1)}', space=vmem, size = 0x200, scoped, tag = 'scoped memory for discriminator_forward.9']
  %s0 = inlined_call_operand.vmem [shape: bf16[1024,2], index: 0, kind: input, shape index: {}]
  %s1 = inlined_call_operand.vmem [shape: bf16[1,1024], index: 1, kind: input, shape index: {}]
  %s2 = inlined_call_operand.<no memory space> [shape: f32[1,1], index: 2, kind: input, shape index: {}]
  %s3 = inlined_call_operand.hbm [shape: f32[1,2], index: 3, kind: output, shape index: {}]
  %s4 = sld [smem:[#allocation0]]
  $region22: #{discriminator_forward.9} parent=0
    _
  %s6 = ssub.s32 1, %s4
  %s7 = scalar_select 0, %s6, %s4
  %v8 = vstv %s2
  %9 = vst [vmem:[#allocation2] sm:$0x1] %v8
  $region1: #{discriminator_forward.9} parent=0
    #allocation3 [shape = 'u8[512]{0}', space=vmem, size = 0x400, scoped, tag = 'output window, operand 0, single buffered']
    #allocation4 [shape = 's32[1]{0}', space=sflag, size = 0x4, scoped, tag = 'scoped memory for discriminator_forward.9']
    %10 = vsyncpa [#allocation4], 0
    // Predicated region
    $region2: #{discriminator_forward.9} parent=1 // pred_check
      _
    $region3: #{discriminator_forward.9} parent=1 // pred_check_branch
      %12 = sbr.rel (0) target = $region5
    $region4: #{discriminator_forward.9} parent=1 // pred_region
      _
    $region5: #{discriminator_forward.9} parent=1 // pred_fallthru
      _
    // Predicated region
    $region6: #{discriminator_forward.9} parent=1 // pred_check
      _
    $region7: #{discriminator_forward.9} parent=1 // pred_check_branch
      %14 = sbr.rel (0) target = $region9
    $region8: #{discriminator_forward.9} parent=1 // pred_region
      _
    $region9: #{discriminator_forward.9} parent=1 // pred_fallthru
      _
    // Predicated region
    $region10: #{discriminator_forward.9} parent=1 // pred_check
      _
    $region11: #{discriminator_forward.9} parent=1 // pred_check_branch
      %16 = sbr.rel (0) target = $region13
    $region12: #{discriminator_forward.9} parent=1 // pred_region
      _
    $region13: #{discriminator_forward.9} parent=1 // pred_fallthru
      _
    %v18 = vld [vmem:[%s1] sm:$0xff]
    %v19 = vld [vmem:[%s0] sm:$0xf]
    %v20 = vld [vmem:[%s0 + $0x4] sm:$0xf]
    %v21 = vld [vmem:[%s0 + $0x8] sm:$0xf]
    %v22 = vld [vmem:[%s0 + $0xc] sm:$0xf]
    %v23 = vld [vmem:[%s0 + $0x10] sm:$0xf]
    %v24 = vld [vmem:[%s0 + $0x14] sm:$0xf]
    %v25 = vld [vmem:[%s0 + $0x18] sm:$0xf]
    %v26 = vld [vmem:[%s0 + $0x1c] sm:$0xf]
    %v27 = vld [vmem:[%s0 + $0x20] sm:$0xf]
    %v28 = vld [vmem:[%s0 + $0x24] sm:$0xf]
    %v29 = vld [vmem:[%s0 + $0x28] sm:$0xf]
    %v30 = vld [vmem:[%s0 + $0x2c] sm:$0xf]
    %v31 = vld [vmem:[%s0 + $0x30] sm:$0xf]
    %v32 = vld [vmem:[%s0 + $0x34] sm:$0xf]
    %v33 = vld [vmem:[%s0 + $0x38] sm:$0xf]
    %v34 = vld [vmem:[%s0 + $0x3c] sm:$0xf]
    %v35 = vld [vmem:[%s0 + $0x40] sm:$0xf]
    %v36 = vld [vmem:[%s0 + $0x44] sm:$0xf]
    %v37 = vld [vmem:[%s0 + $0x48] sm:$0xf]
    %v38 = vld [vmem:[%s0 + $0x4c] sm:$0xf]
    %v39 = vld [vmem:[%s0 + $0x50] sm:$0xf]
    %v40 = vld [vmem:[%s0 + $0x54] sm:$0xf]
    %v41 = vld [vmem:[%s0 + $0x58] sm:$0xf]
    %v42 = vld [vmem:[%s0 + $0x5c] sm:$0xf]
    %v43 = vld [vmem:[%s0 + $0x60] sm:$0xf]
    %v44 = vld [vmem:[%s0 + $0x64] sm:$0xf]
    %v45 = vld [vmem:[%s0 + $0x68] sm:$0xf]
    %v46 = vld [vmem:[%s0 + $0x6c] sm:$0xf]
    %v47 = vld [vmem:[%s0 + $0x70] sm:$0xf]
    %v48 = vld [vmem:[%s0 + $0x74] sm:$0xf]
    %v49 = vld [vmem:[%s0 + $0x78] sm:$0xf]
    %v50 = vld [vmem:[%s0 + $0x7c] sm:$0xf]
    %v51 = vld [vmem:[%s0 + $0x80] sm:$0xf]
    %v52 = vld [vmem:[%s0 + $0x84] sm:$0xf]
    %v53 = vld [vmem:[%s0 + $0x88] sm:$0xf]
    %v54 = vld [vmem:[%s0 + $0x8c] sm:$0xf]
    %v55 = vld [vmem:[%s0 + $0x90] sm:$0xf]
    %v56 = vld [vmem:[%s0 + $0x94] sm:$0xf]
    %v57 = vld [vmem:[%s0 + $0x98] sm:$0xf]
    %v58 = vld [vmem:[%s0 + $0x9c] sm:$0xf]
    %v59 = vld [vmem:[%s0 + $0xa0] sm:$0xf]
    %v60 = vld [vmem:[%s0 + $0xa4] sm:$0xf]
    %v61 = vld [vmem:[%s0 + $0xa8] sm:$0xf]
    %v62 = vld [vmem:[%s0 + $0xac] sm:$0xf]
    %v63 = vld [vmem:[%s0 + $0xb0] sm:$0xf]
    %v64 = vld [vmem:[%s0 + $0xb4] sm:$0xf]
    %v65 = vld [vmem:[%s0 + $0xb8] sm:$0xf]
    %v66 = vld [vmem:[%s0 + $0xbc] sm:$0xf]
    %v67 = vld [vmem:[%s0 + $0xc0] sm:$0xf]
    %v68 = vld [vmem:[%s0 + $0xc4] sm:$0xf]
    %v69 = vld [vmem:[%s0 + $0xc8] sm:$0xf]
    %v70 = vld [vmem:[%s0 + $0xcc] sm:$0xf]
    %v71 = vld [vmem:[%s0 + $0xd0] sm:$0xf]
    %v72 = vld [vmem:[%s0 + $0xd4] sm:$0xf]
    %v73 = vld [vmem:[%s0 + $0xd8] sm:$0xf]
    %v74 = vld [vmem:[%s0 + $0xdc] sm:$0xf]
    %v75 = vld [vmem:[%s0 + $0xe0] sm:$0xf]
    %v76 = vld [vmem:[%s0 + $0xe4] sm:$0xf]
    %v77 = vld [vmem:[%s0 + $0xe8] sm:$0xf]
    %v78 = vld [vmem:[%s0 + $0xec] sm:$0xf]
    %v79 = vld [vmem:[%s0 + $0xf0] sm:$0xf]
    %v80 = vld [vmem:[%s0 + $0xf4] sm:$0xf]
    %v81 = vld [vmem:[%s0 + $0xf8] sm:$0xf]
    %v82 = vld [vmem:[%s0 + $0xfc] sm:$0xf]
    %v83 = vld [vmem:[%s0 + $0x100] sm:$0xf]
    %v84 = vld [vmem:[%s0 + $0x104] sm:$0xf]
    %v85 = vld [vmem:[%s0 + $0x108] sm:$0xf]
    %v86 = vld [vmem:[%s0 + $0x10c] sm:$0xf]
    %v87 = vld [vmem:[%s0 + $0x110] sm:$0xf]
    %v88 = vld [vmem:[%s0 + $0x114] sm:$0xf]
    %v89 = vld [vmem:[%s0 + $0x118] sm:$0xf]
    %v90 = vld [vmem:[%s0 + $0x11c] sm:$0xf]
    %v91 = vld [vmem:[%s0 + $0x120] sm:$0xf]
    %v92 = vld [vmem:[%s0 + $0x124] sm:$0xf]
    %v93 = vld [vmem:[%s0 + $0x128] sm:$0xf]
    %v94 = vld [vmem:[%s0 + $0x12c] sm:$0xf]
    %v95 = vld [vmem:[%s0 + $0x130] sm:$0xf]
    %v96 = vld [vmem:[%s0 + $0x134] sm:$0xf]
    %v97 = vld [vmem:[%s0 + $0x138] sm:$0xf]
    %v98 = vld [vmem:[%s0 + $0x13c] sm:$0xf]
    %v99 = vld [vmem:[%s0 + $0x140] sm:$0xf]
    %v100 = vld [vmem:[%s0 + $0x144] sm:$0xf]
    %v101 = vld [vmem:[%s0 + $0x148] sm:$0xf]
    %v102 = vld [vmem:[%s0 + $0x14c] sm:$0xf]
    %v103 = vld [vmem:[%s0 + $0x150] sm:$0xf]
    %v104 = vld [vmem:[%s0 + $0x154] sm:$0xf]
    %v105 = vld [vmem:[%s0 + $0x158] sm:$0xf]
    %v106 = vld [vmem:[%s0 + $0x15c] sm:$0xf]
    %v107 = vld [vmem:[%s0 + $0x160] sm:$0xf]
    %v108 = vld [vmem:[%s0 + $0x164] sm:$0xf]
    %v109 = vld [vmem:[%s0 + $0x168] sm:$0xf]
    %v110 = vld [vmem:[%s0 + $0x16c] sm:$0xf]
    %v111 = vld [vmem:[%s0 + $0x170] sm:$0xf]
    %v112 = vld [vmem:[%s0 + $0x174] sm:$0xf]
    %v113 = vld [vmem:[%s0 + $0x178] sm:$0xf]
    %v114 = vld [vmem:[%s0 + $0x17c] sm:$0xf]
    %v115 = vld [vmem:[%s0 + $0x180] sm:$0xf]
    %v116 = vld [vmem:[%s0 + $0x184] sm:$0xf]
    %v117 = vld [vmem:[%s0 + $0x188] sm:$0xf]
    %v118 = vld [vmem:[%s0 + $0x18c] sm:$0xf]
    %v119 = vld [vmem:[%s0 + $0x190] sm:$0xf]
    %v120 = vld [vmem:[%s0 + $0x194] sm:$0xf]
    %v121 = vld [vmem:[%s0 + $0x198] sm:$0xf]
    %v122 = vld [vmem:[%s0 + $0x19c] sm:$0xf]
    %v123 = vld [vmem:[%s0 + $0x1a0] sm:$0xf]
    %v124 = vld [vmem:[%s0 + $0x1a4] sm:$0xf]
    %v125 = vld [vmem:[%s0 + $0x1a8] sm:$0xf]
    %v126 = vld [vmem:[%s0 + $0x1ac] sm:$0xf]
    %v127 = vld [vmem:[%s0 + $0x1b0] sm:$0xf]
    %v128 = vld [vmem:[%s0 + $0x1b4] sm:$0xf]
    %v129 = vld [vmem:[%s0 + $0x1b8] sm:$0xf]
    %v130 = vld [vmem:[%s0 + $0x1bc] sm:$0xf]
    %v131 = vld [vmem:[%s0 + $0x1c0] sm:$0xf]
    %v132 = vld [vmem:[%s0 + $0x1c4] sm:$0xf]
    %v133 = vld [vmem:[%s0 + $0x1c8] sm:$0xf]
    %v134 = vld [vmem:[%s0 + $0x1cc] sm:$0xf]
    %v135 = vld [vmem:[%s0 + $0x1d0] sm:$0xf]
    %v136 = vld [vmem:[%s0 + $0x1d4] sm:$0xf]
    %v137 = vld [vmem:[%s0 + $0x1d8] sm:$0xf]
    %v138 = vld [vmem:[%s0 + $0x1dc] sm:$0xf]
    %v139 = vld [vmem:[%s0 + $0x1e0] sm:$0xf]
    %v140 = vld [vmem:[%s0 + $0x1e4] sm:$0xf]
    %v141 = vld [vmem:[%s0 + $0x1e8] sm:$0xf]
    %v142 = vld [vmem:[%s0 + $0x1ec] sm:$0xf]
    %v143 = vld [vmem:[%s0 + $0x1f0] sm:$0xf]
    %v144 = vld [vmem:[%s0 + $0x1f4] sm:$0xf]
    %v145 = vld [vmem:[%s0 + $0x1f8] sm:$0xf]
    %v146 = vld [vmem:[%s0 + $0x1fc] sm:$0xf]
    %v147 = vld [vmem:[#allocation2] sm:$0x1]
    %149 = vset.pattern.permute.xlu0 0
    %150 = vperm.xlu0 %149, %v147
    %v151 = vpop.permute.xlu0 %150
    %v153 = vlaneseq
    %v154 = vshrl.u32 %v153, 7
    %v155 = vsub.s32 0, %v154
    %v156 = vrot.slane %v151, %v155
    %v158 = vcombine.high %v18, %v18
    %v160 = vunpack.c.l.s4 1966171168
    %v161 = vunpack.c.0.s8 %v160
    %v162 = vlaneseq
    %v163 = vshrl.u32 %v162, 7
    %v164 = vsub.s32 %v161, %v163
    %v165 = vrot.slane %v18, %v164
    %v167 = vunpack.c.l.s4 1966171168
    %v168 = vunpack.c.0.s8 %v167
    %v169 = vlaneseq
    %v170 = vshrl.u32 %v169, 7
    %v171 = vsub.s32 %v168, %v170
    %v172 = vrot.slane %v158, %v171
    %v173 = vcombine.high %v165, %v165
    %v174 = vcombine.high %v172, %v172
    %v176 = vunpack.c.l.s4 1966171168
    %v177 = vunpack.c.0.s8 %v176
    %v178 = vlaneseq
    %v179 = vshrl.u32 %v178, 7
    %v180 = vsub.s32 %v177, %v179
    %v181 = vrot.slane %v165, %v180
    %v183 = vunpack.c.l.s4 1966171168
    %v184 = vunpack.c.0.s8 %v183
    %v185 = vlaneseq
    %v186 = vshrl.u32 %v185, 7
    %v187 = vsub.s32 %v184, %v186
    %v188 = vrot.slane %v172, %v187
    %v190 = vunpack.c.l.s4 1966171168
    %v191 = vunpack.c.0.s8 %v190
    %v192 = vlaneseq
    %v193 = vshrl.u32 %v192, 7
    %v194 = vsub.s32 %v191, %v193
    %v195 = vrot.slane %v173, %v194
    %v197 = vunpack.c.l.s4 1966171168
    %v198 = vunpack.c.0.s8 %v197
    %v199 = vlaneseq
    %v200 = vshrl.u32 %v199, 7
    %v201 = vsub.s32 %v198, %v200
    %v202 = vrot.slane %v174, %v201
    %v203 = vcombine.high %v181, %v181
    %v204 = vcombine.high %v188, %v188
    %v205 = vcombine.high %v195, %v195
    %v206 = vcombine.high %v202, %v202
    %v343 = vunpack.c.l.b16 %v19
    %v344 = vunpack.c.l.b16 %v20
    %v345 = vunpack.c.l.b16 %v21
    %v346 = vunpack.c.l.b16 %v22
    %v347 = vunpack.c.l.b16 %v23
    %v348 = vunpack.c.l.b16 %v24
    %v349 = vunpack.c.l.b16 %v25
    %v350 = vunpack.c.l.b16 %v26
    %v351 = vunpack.c.l.b16 %v27
    %v352 = vunpack.c.l.b16 %v28
    %v353 = vunpack.c.l.b16 %v29
    %v354 = vunpack.c.l.b16 %v30
    %v355 = vunpack.c.l.b16 %v31
    %v356 = vunpack.c.l.b16 %v32
    %v357 = vunpack.c.l.b16 %v33
    %v358 = vunpack.c.l.b16 %v34
    %v359 = vunpack.c.l.b16 %v35
    %v360 = vunpack.c.l.b16 %v36
    %v361 = vunpack.c.l.b16 %v37
    %v362 = vunpack.c.l.b16 %v38
    %v363 = vunpack.c.l.b16 %v39
    %v364 = vunpack.c.l.b16 %v40
    %v365 = vunpack.c.l.b16 %v41
    %v366 = vunpack.c.l.b16 %v42
    %v367 = vunpack.c.l.b16 %v43
    %v368 = vunpack.c.l.b16 %v44
    %v369 = vunpack.c.l.b16 %v45
    %v370 = vunpack.c.l.b16 %v46
    %v371 = vunpack.c.l.b16 %v47
    %v372 = vunpack.c.l.b16 %v48
    %v373 = vunpack.c.l.b16 %v49
    %v374 = vunpack.c.l.b16 %v50
    %v375 = vunpack.c.l.b16 %v51
    %v376 = vunpack.c.l.b16 %v52
    %v377 = vunpack.c.l.b16 %v53
    %v378 = vunpack.c.l.b16 %v54
    %v379 = vunpack.c.l.b16 %v55
    %v380 = vunpack.c.l.b16 %v56
    %v381 = vunpack.c.l.b16 %v57
    %v382 = vunpack.c.l.b16 %v58
    %v383 = vunpack.c.l.b16 %v59
    %v384 = vunpack.c.l.b16 %v60
    %v385 = vunpack.c.l.b16 %v61
    %v386 = vunpack.c.l.b16 %v62
    %v387 = vunpack.c.l.b16 %v63
    %v388 = vunpack.c.l.b16 %v64
    %v389 = vunpack.c.l.b16 %v65
    %v390 = vunpack.c.l.b16 %v66
    %v391 = vunpack.c.l.b16 %v67
    %v392 = vunpack.c.l.b16 %v68
    %v393 = vunpack.c.l.b16 %v69
    %v394 = vunpack.c.l.b16 %v70
    %v395 = vunpack.c.l.b16 %v71
    %v396 = vunpack.c.l.b16 %v72
    %v397 = vunpack.c.l.b16 %v73
    %v398 = vunpack.c.l.b16 %v74
    %v399 = vunpack.c.l.b16 %v75
    %v400 = vunpack.c.l.b16 %v76
    %v401 = vunpack.c.l.b16 %v77
    %v402 = vunpack.c.l.b16 %v78
    %v403 = vunpack.c.l.b16 %v79
    %v404 = vunpack.c.l.b16 %v80
    %v405 = vunpack.c.l.b16 %v81
    %v406 = vunpack.c.l.b16 %v82
    %v407 = vunpack.c.l.b16 %v83
    %v408 = vunpack.c.l.b16 %v84
    %v409 = vunpack.c.l.b16 %v85
    %v410 = vunpack.c.l.b16 %v86
    %v411 = vunpack.c.l.b16 %v87
    %v412 = vunpack.c.l.b16 %v88
    %v413 = vunpack.c.l.b16 %v89
    %v414 = vunpack.c.l.b16 %v90
    %v415 = vunpack.c.l.b16 %v91
    %v416 = vunpack.c.l.b16 %v92
    %v417 = vunpack.c.l.b16 %v93
    %v418 = vunpack.c.l.b16 %v94
    %v419 = vunpack.c.l.b16 %v95
    %v420 = vunpack.c.l.b16 %v96
    %v421 = vunpack.c.l.b16 %v97
    %v422 = vunpack.c.l.b16 %v98
    %v423 = vunpack.c.l.b16 %v99
    %v424 = vunpack.c.l.b16 %v100
    %v425 = vunpack.c.l.b16 %v101
    %v426 = vunpack.c.l.b16 %v102
    %v427 = vunpack.c.l.b16 %v103
    %v428 = vunpack.c.l.b16 %v104
    %v429 = vunpack.c.l.b16 %v105
    %v430 = vunpack.c.l.b16 %v106
    %v431 = vunpack.c.l.b16 %v107
    %v432 = vunpack.c.l.b16 %v108
    %v433 = vunpack.c.l.b16 %v109
    %v434 = vunpack.c.l.b16 %v110
    %v435 = vunpack.c.l.b16 %v111
    %v436 = vunpack.c.l.b16 %v112
    %v437 = vunpack.c.l.b16 %v113
    %v438 = vunpack.c.l.b16 %v114
    %v439 = vunpack.c.l.b16 %v115
    %v440 = vunpack.c.l.b16 %v116
    %v441 = vunpack.c.l.b16 %v117
    %v442 = vunpack.c.l.b16 %v118
    %v443 = vunpack.c.l.b16 %v119
    %v444 = vunpack.c.l.b16 %v120
    %v445 = vunpack.c.l.b16 %v121
    %v446 = vunpack.c.l.b16 %v122
    %v447 = vunpack.c.l.b16 %v123
    %v448 = vunpack.c.l.b16 %v124
    %v449 = vunpack.c.l.b16 %v125
    %v450 = vunpack.c.l.b16 %v126
    %v451 = vunpack.c.l.b16 %v127
    %v452 = vunpack.c.l.b16 %v128
    %v453 = vunpack.c.l.b16 %v129
    %v454 = vunpack.c.l.b16 %v130
    %v455 = vunpack.c.l.b16 %v131
    %v456 = vunpack.c.l.b16 %v132
    %v457 = vunpack.c.l.b16 %v133
    %v458 = vunpack.c.l.b16 %v134
    %v459 = vunpack.c.l.b16 %v135
    %v460 = vunpack.c.l.b16 %v136
    %v461 = vunpack.c.l.b16 %v137
    %v462 = vunpack.c.l.b16 %v138
    %v463 = vunpack.c.l.b16 %v139
    %v464 = vunpack.c.l.b16 %v140
    %v465 = vunpack.c.l.b16 %v141
    %v466 = vunpack.c.l.b16 %v142
    %v467 = vunpack.c.l.b16 %v143
    %v468 = vunpack.c.l.b16 %v144
    %v469 = vunpack.c.l.b16 %v145
    %v470 = vunpack.c.l.b16 %v146
    %v471 = vpack.c.b16 %v344, %v343
    %v472 = vpack.c.b16 %v346, %v345
    %v473 = vpack.c.b16 %v348, %v347
    %v474 = vpack.c.b16 %v350, %v349
    %v475 = vpack.c.b16 %v352, %v351
    %v476 = vpack.c.b16 %v354, %v353
    %v477 = vpack.c.b16 %v356, %v355
    %v478 = vpack.c.b16 %v358, %v357
    %v479 = vpack.c.b16 %v360, %v359
    %v480 = vpack.c.b16 %v362, %v361
    %v481 = vpack.c.b16 %v364, %v363
    %v482 = vpack.c.b16 %v366, %v365
    %v483 = vpack.c.b16 %v368, %v367
    %v484 = vpack.c.b16 %v370, %v369
    %v485 = vpack.c.b16 %v372, %v371
    %v486 = vpack.c.b16 %v374, %v373
    %v487 = vpack.c.b16 %v376, %v375
    %v488 = vpack.c.b16 %v378, %v377
    %v489 = vpack.c.b16 %v380, %v379
    %v490 = vpack.c.b16 %v382, %v381
    %v491 = vpack.c.b16 %v384, %v383
    %v492 = vpack.c.b16 %v386, %v385
    %v493 = vpack.c.b16 %v388, %v387
    %v494 = vpack.c.b16 %v390, %v389
    %v495 = vpack.c.b16 %v392, %v391
    %v496 = vpack.c.b16 %v394, %v393
    %v497 = vpack.c.b16 %v396, %v395
    %v498 = vpack.c.b16 %v398, %v397
    %v499 = vpack.c.b16 %v400, %v399
    %v500 = vpack.c.b16 %v402, %v401
    %v501 = vpack.c.b16 %v404, %v403
    %v502 = vpack.c.b16 %v406, %v405
    %v503 = vpack.c.b16 %v408, %v407
    %v504 = vpack.c.b16 %v410, %v409
    %v505 = vpack.c.b16 %v412, %v411
    %v506 = vpack.c.b16 %v414, %v413
    %v507 = vpack.c.b16 %v416, %v415
    %v508 = vpack.c.b16 %v418, %v417
    %v509 = vpack.c.b16 %v420, %v419
    %v510 = vpack.c.b16 %v422, %v421
    %v511 = vpack.c.b16 %v424, %v423
    %v512 = vpack.c.b16 %v426, %v425
    %v513 = vpack.c.b16 %v428, %v427
    %v514 = vpack.c.b16 %v430, %v429
    %v515 = vpack.c.b16 %v432, %v431
    %v516 = vpack.c.b16 %v434, %v433
    %v517 = vpack.c.b16 %v436, %v435
    %v518 = vpack.c.b16 %v438, %v437
    %v519 = vpack.c.b16 %v440, %v439
    %v520 = vpack.c.b16 %v442, %v441
    %v521 = vpack.c.b16 %v444, %v443
    %v522 = vpack.c.b16 %v446, %v445
    %v523 = vpack.c.b16 %v448, %v447
    %v524 = vpack.c.b16 %v450, %v449
    %v525 = vpack.c.b16 %v452, %v451
    %v526 = vpack.c.b16 %v454, %v453
    %v527 = vpack.c.b16 %v456, %v455
    %v528 = vpack.c.b16 %v458, %v457
    %v529 = vpack.c.b16 %v460, %v459
    %v530 = vpack.c.b16 %v462, %v461
    %v531 = vpack.c.b16 %v464, %v463
    %v532 = vpack.c.b16 %v466, %v465
    %v533 = vpack.c.b16 %v468, %v467
    %v534 = vpack.c.b16 %v470, %v469
    %599 = vmatprep.subr.bf16.mxu0 0
    %600 = vmatpush1.bf16.msra.mxu0 %v478
    %601 = vmatprep.subr.bf16.mxu0 0
    %602 = vmatpush1.bf16.msra.mxu0 %v477
    %603 = vmatprep.subr.bf16.mxu0 0
    %604 = vmatpush1.bf16.msra.mxu0 %v476
    %605 = vmatprep.subr.bf16.mxu0 0
    %606 = vmatpush1.bf16.msra.mxu0 %v475
    %607 = vmatprep.subr.bf16.mxu0 0
    %608 = vmatpush1.bf16.msra.mxu0 %v474
    %609 = vmatprep.subr.bf16.mxu0 0
    %610 = vmatpush1.bf16.msra.mxu0 %v473
    %611 = vmatprep.subr.bf16.mxu0 0
    %612 = vmatpush1.bf16.msra.mxu0 %v472
    %613 = vmatprep.subr.bf16.mxu0 0
    %614 = vmatpush1.bf16.msra.mxu0 %v471
    %615 = vmatprep.subr.bf16.mxu0 0
    %616 = vmatpush2.bf16.msra.mxu0 %v486
    %617 = vmatprep.subr.bf16.mxu0 0
    %618 = vmatpush2.bf16.msra.mxu0 %v485
    %619 = vmatprep.subr.bf16.mxu0 0
    %620 = vmatpush2.bf16.msra.mxu0 %v484
    %621 = vmatprep.subr.bf16.mxu0 0
    %622 = vmatpush2.bf16.msra.mxu0 %v483
    %623 = vmatprep.subr.bf16.mxu0 0
    %624 = vmatpush2.bf16.msra.mxu0 %v482
    %625 = vmatprep.subr.bf16.mxu0 0
    %626 = vmatpush2.bf16.msra.mxu0 %v481
    %627 = vmatprep.subr.bf16.mxu0 0
    %628 = vmatpush2.bf16.msra.mxu0 %v480
    %629 = vmatprep.subr.bf16.mxu0 0
    %630 = vmatpush2.bf16.msra.mxu0 %v479
    %631 = vmatprep.mubr.bf16.mxu0 %v195
    %632 = vmatmul.mubr.bf16.gmra.mxu0 %v181
    %v633 = vpop.f32.mrf.mxu0
    %v634 = vadd.f32 %v156, %v633
    %v635 = vpop.f32.mrf.mxu0
    %v636 = vpop.f32.mrf.mxu0
    %v637 = vpop.f32.mrf.mxu0
    %638 = vdwg.mxu0
    %639 = vmatprep.subr.bf16.mxu0 0
    %640 = vmatpush1.bf16.msra.mxu0 %v494
    %641 = vmatprep.subr.bf16.mxu0 0
    %642 = vmatpush1.bf16.msra.mxu0 %v493
    %643 = vmatprep.subr.bf16.mxu0 0
    %644 = vmatpush1.bf16.msra.mxu0 %v492
    %645 = vmatprep.subr.bf16.mxu0 0
    %646 = vmatpush1.bf16.msra.mxu0 %v491
    %647 = vmatprep.subr.bf16.mxu0 0
    %648 = vmatpush1.bf16.msra.mxu0 %v490
    %649 = vmatprep.subr.bf16.mxu0 0
    %650 = vmatpush1.bf16.msra.mxu0 %v489
    %651 = vmatprep.subr.bf16.mxu0 0
    %652 = vmatpush1.bf16.msra.mxu0 %v488
    %653 = vmatprep.subr.bf16.mxu0 0
    %654 = vmatpush1.bf16.msra.mxu0 %v487
    %655 = vmatprep.subr.bf16.mxu0 0
    %656 = vmatpush2.bf16.msra.mxu0 %v502
    %657 = vmatprep.subr.bf16.mxu0 0
    %658 = vmatpush2.bf16.msra.mxu0 %v501
    %659 = vmatprep.subr.bf16.mxu0 0
    %660 = vmatpush2.bf16.msra.mxu0 %v500
    %661 = vmatprep.subr.bf16.mxu0 0
    %662 = vmatpush2.bf16.msra.mxu0 %v499
    %663 = vmatprep.subr.bf16.mxu0 0
    %664 = vmatpush2.bf16.msra.mxu0 %v498
    %665 = vmatprep.subr.bf16.mxu0 0
    %666 = vmatpush2.bf16.msra.mxu0 %v497
    %667 = vmatprep.subr.bf16.mxu0 0
    %668 = vmatpush2.bf16.msra.mxu0 %v496
    %669 = vmatprep.subr.bf16.mxu0 0
    %670 = vmatpush2.bf16.msra.mxu0 %v495
    %671 = vmatprep.mubr.bf16.mxu0 %v205
    %672 = vmatmul.mubr.bf16.gmra.mxu0 %v203
    %v673 = vpop.f32.mrf.mxu0
    %v674 = vadd.f32 %v634, %v673
    %v675 = vpop.f32.mrf.mxu0
    %v676 = vpop.f32.mrf.mxu0
    %v677 = vpop.f32.mrf.mxu0
    %678 = vdwg.mxu0
    %679 = vmatprep.subr.bf16.mxu0 0
    %680 = vmatpush1.bf16.msra.mxu0 %v510
    %681 = vmatprep.subr.bf16.mxu0 0
    %682 = vmatpush1.bf16.msra.mxu0 %v509
    %683 = vmatprep.subr.bf16.mxu0 0
    %684 = vmatpush1.bf16.msra.mxu0 %v508
    %685 = vmatprep.subr.bf16.mxu0 0
    %686 = vmatpush1.bf16.msra.mxu0 %v507
    %687 = vmatprep.subr.bf16.mxu0 0
    %688 = vmatpush1.bf16.msra.mxu0 %v506
    %689 = vmatprep.subr.bf16.mxu0 0
    %690 = vmatpush1.bf16.msra.mxu0 %v505
    %691 = vmatprep.subr.bf16.mxu0 0
    %692 = vmatpush1.bf16.msra.mxu0 %v504
    %693 = vmatprep.subr.bf16.mxu0 0
    %694 = vmatpush1.bf16.msra.mxu0 %v503
    %695 = vmatprep.subr.bf16.mxu0 0
    %696 = vmatpush2.bf16.msra.mxu0 %v518
    %697 = vmatprep.subr.bf16.mxu0 0
    %698 = vmatpush2.bf16.msra.mxu0 %v517
    %699 = vmatprep.subr.bf16.mxu0 0
    %700 = vmatpush2.bf16.msra.mxu0 %v516
    %701 = vmatprep.subr.bf16.mxu0 0
    %702 = vmatpush2.bf16.msra.mxu0 %v515
    %703 = vmatprep.subr.bf16.mxu0 0
    %704 = vmatpush2.bf16.msra.mxu0 %v514
    %705 = vmatprep.subr.bf16.mxu0 0
    %706 = vmatpush2.bf16.msra.mxu0 %v513
    %707 = vmatprep.subr.bf16.mxu0 0
    %708 = vmatpush2.bf16.msra.mxu0 %v512
    %709 = vmatprep.subr.bf16.mxu0 0
    %710 = vmatpush2.bf16.msra.mxu0 %v511
    %711 = vmatprep.mubr.bf16.mxu0 %v202
    %712 = vmatmul.mubr.bf16.gmra.mxu0 %v188
    %v713 = vpop.f32.mrf.mxu0
    %v714 = vadd.f32 %v674, %v713
    %v715 = vpop.f32.mrf.mxu0
    %v716 = vpop.f32.mrf.mxu0
    %v717 = vpop.f32.mrf.mxu0
    %718 = vdwg.mxu0
    %719 = vmatprep.subr.bf16.mxu0 0
    %720 = vmatpush1.bf16.msra.mxu0 %v526
    %721 = vmatprep.subr.bf16.mxu0 0
    %722 = vmatpush1.bf16.msra.mxu0 %v525
    %723 = vmatprep.subr.bf16.mxu0 0
    %724 = vmatpush1.bf16.msra.mxu0 %v524
    %725 = vmatprep.subr.bf16.mxu0 0
    %726 = vmatpush1.bf16.msra.mxu0 %v523
    %727 = vmatprep.subr.bf16.mxu0 0
    %728 = vmatpush1.bf16.msra.mxu0 %v522
    %729 = vmatprep.subr.bf16.mxu0 0
    %730 = vmatpush1.bf16.msra.mxu0 %v521
    %731 = vmatprep.subr.bf16.mxu0 0
    %732 = vmatpush1.bf16.msra.mxu0 %v520
    %733 = vmatprep.subr.bf16.mxu0 0
    %734 = vmatpush1.bf16.msra.mxu0 %v519
    %735 = vmatprep.subr.bf16.mxu0 0
    %736 = vmatpush2.bf16.msra.mxu0 %v534
    %737 = vmatprep.subr.bf16.mxu0 0
    %738 = vmatpush2.bf16.msra.mxu0 %v533
    %739 = vmatprep.subr.bf16.mxu0 0
    %740 = vmatpush2.bf16.msra.mxu0 %v532
    %741 = vmatprep.subr.bf16.mxu0 0
    %742 = vmatpush2.bf16.msra.mxu0 %v531
    %743 = vmatprep.subr.bf16.mxu0 0
    %744 = vmatpush2.bf16.msra.mxu0 %v530
    %745 = vmatprep.subr.bf16.mxu0 0
    %746 = vmatpush2.bf16.msra.mxu0 %v529
    %747 = vmatprep.subr.bf16.mxu0 0
    %748 = vmatpush2.bf16.msra.mxu0 %v528
    %749 = vmatprep.subr.bf16.mxu0 0
    %750 = vmatpush2.bf16.msra.mxu0 %v527
    %751 = vmatprep.mubr.bf16.mxu0 %v206
    %752 = vmatmul.mubr.bf16.gmra.mxu0 %v204
    %v753 = vpop.f32.mrf.mxu0
    %v754 = vadd.f32 %v714, %v753
    %v755 = vpop.f32.mrf.mxu0
    %v756 = vpop.f32.mrf.mxu0
    %v757 = vpop.f32.mrf.mxu0
    %758 = vdwg.mxu0
    %v759 = vsub.f32 0.0, %v754
    %v760 = vmul.f32 %v759, 1.442695
    %v761 = vpow.pop %v760
    %v762 = vadd.f32 %v761, 1.0
    %v763 = vrcp.pop %v762
    %v764 = vmul.f32 1.0, %v763
    %vm765 = vcmask 8192
    %766 = vst.msk [vmem:[#allocation3] sm:$0x1] %vm765, %v764
    // Predicated region
    $region14: #{discriminator_forward.9} parent=1 // pred_check
      _
    $region15: #{discriminator_forward.9} parent=1 // pred_check_branch
      %768 = sbr.rel (0) target = $region17
    $region16: #{discriminator_forward.9} parent=1 // pred_region
      %s770 = ssub.s32 16, 16
      %771 = vsyncadd [#allocation4], %s770
      %s773 = sshll.u32 [#allocation3], 4
      %s774 = int_to_ptr.vmem [resolvable:$true] %s773
      %776 = dma.vmem_to_hbm [thread:$0]  %s774, 16, %s3, [#allocation4]
    $region17: #{discriminator_forward.9} parent=1 // pred_fallthru
      _
    // Predicated region
    $region18: #{discriminator_forward.9} parent=1 // pred_check
      _
    $region19: #{discriminator_forward.9} parent=1 // pred_check_branch
      %778 = sbr.rel (0) target = $region21
    $region20: #{discriminator_forward.9} parent=1 // pred_region
      %779 = dma.done [#allocation4], 16
    $region21: #{discriminator_forward.9} parent=1 // pred_fallthru
      _
    %780 = vsyncpa [#allocation4], 1

</llo_original>
